<compile_context>
chip_gen: v6e
topology: v6e:2x2x1
jax: 0.10.0
libtpu: 0.0.40
codegen_flags: <defaults>
</compile_context>

<pallas_src>
import functools

import jax
import jax.numpy as jnp
from jax.experimental import pallas as pl
from jax.experimental.pallas import tpu as pltpu

# ---- "config" (synthetic, deterministic) -----------------------------------
VOCAB = 32            # len(config.ws_input)
PAD = 0               # config.ws_input.PAD
EMB_DIM = 32          # config.embedding_dim
HIDDEN = 32           # config.encoder_hidden_size
NUM_LAYERS = 2        # config.encoder_num_layers
SUBLANES = 8          # f32 sublane count; batch is padded up to a multiple of this.


def _encoder_gru_kernel(x_ref, len_ref, wih0_ref, bih0_ref, whh0_ref, bhh0_ref,
                        wf_ref, bf_ref, out_ref, hid_ref, *, T, B, H, L):
    """Whole GRU recurrence in one invocation (everything resident in VMEM)."""
    lengths = len_ref[...]                       # (B, 1) int32
    wih0 = wih0_ref[...]                         # (E, 3H)
    bih0 = bih0_ref[...]                         # (1, 3H)
    whh0 = whh0_ref[...]                         # (H, 3H)
    bhh0 = bhh0_ref[...]                         # (1, 3H)

    # Hoisted off the serial path: layer-0 input projections and validity masks
    # are recurrence-independent, so the scheduler can overlap them freely.
    gi0 = [jnp.dot(x_ref[t], wih0, preferred_element_type=jnp.float32) + bih0
           for t in range(T)]                    # T x (B, 3H)
    masks = [lengths > t for t in range(T)]      # T x (B, 1) bool

    h = [jnp.zeros((B, H), jnp.float32) for _ in range(L)]
    outs = []
    for t in range(T):                           # static unrolled loop (T small)
        mask = masks[t]

        # ---- layer 0: only the hidden matmul sits on the serial chain --------
        gi = gi0[t]
        gh = jnp.dot(h[0], whh0, preferred_element_type=jnp.float32) + bhh0
        rz = jax.nn.sigmoid(gi[:, :2 * H] + gh[:, :2 * H])          # fused r,z
        r, z = rz[:, :H], rz[:, H:]
        n = jnp.tanh(gi[:, 2 * H:] + r * gh[:, 2 * H:])
        h_new = (1.0 - z) * n + z * h[0]
        h[0] = jnp.where(mask, h_new, h[0])      # freeze past sequence length
        layer_in = h[0]

        # ---- layers 1..L-1: single fused [x, h] @ (2H, 4H) matmul per step ---
        for l in range(1, L):
            xh = jnp.concatenate([layer_in, h[l]], axis=-1)          # (B, 2H)
            g = jnp.dot(xh, wf_ref[l - 1],
                        preferred_element_type=jnp.float32) + bf_ref[l - 1]
            rz = jax.nn.sigmoid(g[:, :2 * H])
            r, z = rz[:, :H], rz[:, H:]
            n = jnp.tanh(g[:, 2 * H:3 * H] + r * g[:, 3 * H:])
            h_new = (1.0 - z) * n + z * h[l]
            h[l] = jnp.where(mask, h_new, h[l])
            layer_in = h[l]

        # padded positions emit the padding value (PAD == 0)
        outs.append(jnp.where(mask, layer_in, jnp.float32(PAD)))

    # Lane-dense writeback: (B, T*H) is exactly row-major (B, T, H); the wrapper
    # reshape back to (B, T, H) is free.
    out_ref[...] = jnp.concatenate(outs, axis=-1).astype(out_ref.dtype)
    for l in range(L):
        hid_ref[l] = h[l].astype(hid_ref.dtype)


def _prepare_kernel_params(wih_t, whh_t, bih, bhh):
    """Repack stacked nn.GRU weights (pre-transposed (in, 3H)) for the kernel."""
    L, E, threeH = wih_t.shape
    H = threeH // 3
    # Stacked wih_t implies layer-l>0 input size == H; guard it explicitly.
    assert L == 1 or E == H, "stacked wih_t assumes embedding_dim == hidden_size"

    wih0, bih0 = wih_t[0], bih[0]                # (E, 3H), (1, 3H)
    whh0, bhh0 = whh_t[0], bhh[0]                # (H, 3H), (1, 3H)

    if L > 1:
        wih_u, whh_u = wih_t[1:], whh_t[1:]      # (L-1, H, 3H) each
        zw = jnp.zeros((L - 1, H, H), jnp.float32)
        # columns: [rz (input+hidden summed) | n_input | n_hidden]
        top = jnp.concatenate([wih_u[..., :2 * H], wih_u[..., 2 * H:], zw], axis=-1)
        bot = jnp.concatenate([whh_u[..., :2 * H], zw, whh_u[..., 2 * H:]], axis=-1)
        wf = jnp.concatenate([top, bot], axis=1)                      # (L-1, 2H, 4H)
        bf = jnp.concatenate([bih[1:, :, :2 * H] + bhh[1:, :, :2 * H],
                              bih[1:, :, 2 * H:],
                              bhh[1:, :, 2 * H:]], axis=-1)           # (L-1, 1, 4H)
    else:
        # dummy (unused) so the pallas_call never sees a zero-sized operand
        wf = jnp.zeros((1, 2 * H, 4 * H), jnp.float32)
        bf = jnp.zeros((1, 1, 4 * H), jnp.float32)
    return wih0, bih0, whh0, bhh0, wf, bf


def gru_packed_pallas(x_tbe, lengths, wih0, bih0, whh0, bhh0, wf, bf, num_layers):
    """x_tbe: (T, B, E) f32, lengths: (B, 1) i32.  Returns (out (B,T,H), hidden (L,B,H))."""
    T, B, _E = x_tbe.shape
    H = whh0.shape[0]
    kernel = functools.partial(_encoder_gru_kernel, T=T, B=B, H=H, L=num_layers)

    def vspec():
        return pl.BlockSpec(memory_space=pltpu.MemorySpace.VMEM)

    out_flat, hidden = pl.pallas_call(
        kernel,
        out_shape=(jax.ShapeDtypeStruct((B, T * H), jnp.float32),
                   jax.ShapeDtypeStruct((num_layers, B, H), jnp.float32)),
        in_specs=[vspec() for _ in range(8)],
        out_specs=(vspec(), vspec()),
    )(x_tbe, lengths, wih0, bih0, whh0, bhh0, wf, bf)
    return out_flat.reshape(B, T, H), hidden


def encoder_forward(tokens, input_length, params):
    """Mirrors Encoder.forward: (input, input_length) -> (out, hidden)."""
    emb_table, wih_t, whh_t, bih, bhh = params
    B, T = tokens.shape
    L = wih_t.shape[0]

    # Embedding lookup (gather) stays in plain-JAX glue; padding_idx row is zero.
    # Time-major so the kernel reads whole (B, E) timestep blocks off axis 0.
    embedded = jnp.take(emb_table, tokens.T, axis=0).astype(jnp.float32)  # (T, B, E)

    # Pad batch to the f32 sublane count; padded rows get length 0 so they stay
    # zero through the recurrence and are sliced away afterwards.
    Bp = max(SUBLANES, -(-B // SUBLANES) * SUBLANES)
    pad = Bp - B
    x = jnp.pad(embedded, ((0, 0), (0, pad), (0, 0)))
    lengths = jnp.pad(input_length.astype(jnp.int32), (0, pad)).reshape(-1, 1)

    wih0, bih0, whh0, bhh0, wf, bf = _prepare_kernel_params(wih_t, whh_t, bih, bhh)
    out, hidden = gru_packed_pallas(x, lengths, wih0, bih0, whh0, bhh0, wf, bf, L)
    return out[:B], hidden[:, :B]        # (B, T, H) batch-first, (L, B, H)


# ---- pure-JAX reference for validation --------------------------------------
def reference_forward(tokens, input_length, params):
    emb_table, wih_t, whh_t, bih, bhh = params
    B, T = tokens.shape
    L = wih_t.shape[0]
    H = wih_t.shape[2] // 3
    hi = jax.lax.Precision.HIGHEST
    x = jnp.take(emb_table, tokens, axis=0)                   # (B, T, E)
    h = jnp.zeros((L, B, H), jnp.float32)
    outs = []
    for t in range(T):
        mask = (input_length > t)[:, None]
        layer_in = x[:, t]
        new_h = []
        for l in range(L):
            gi = jnp.dot(layer_in, wih_t[l], precision=hi) + bih[l]
            gh = jnp.dot(h[l], whh_t[l], precision=hi) + bhh[l]
            r = jax.nn.sigmoid(gi[:, :H] + gh[:, :H])
            z = jax.nn.sigmoid(gi[:, H:2 * H] + gh[:, H:2 * H])
            n = jnp.tanh(gi[:, 2 * H:] + r * gh[:, 2 * H:])
            hl = (1 - z) * n + z * h[l]
            hl = jnp.where(mask, hl, h[l])
            new_h.append(hl)
            layer_in = hl
        h = jnp.stack(new_h)
        outs.append(jnp.where(mask, layer_in, 0.0))
    return jnp.stack(outs, axis=1), h


if __name__ == "__main__":
    key = jax.random.PRNGKey(0)
    B, T = 2, 8
    k_emb, k_wih, k_whh, k_bih, k_bhh, k_tok = jax.random.split(key, 6)

    # Deterministic parameter init (shapes follow nn.Embedding / nn.GRU).
    emb_table = 0.1 * jax.random.normal(k_emb, (VOCAB, EMB_DIM), jnp.float32)
    emb_table = emb_table.at[PAD].set(0.0)                    # padding_idx
    # PyTorch stores weight_ih_l{l}: (3H, in); we keep them pre-transposed (in, 3H).
    wih_t = 0.1 * jax.random.normal(k_wih, (NUM_LAYERS, EMB_DIM, 3 * HIDDEN), jnp.float32)
    whh_t = 0.1 * jax.random.normal(k_whh, (NUM_LAYERS, HIDDEN, 3 * HIDDEN), jnp.float32)
    bih = 0.1 * jax.random.normal(k_bih, (NUM_LAYERS, 1, 3 * HIDDEN), jnp.float32)
    bhh = 0.1 * jax.random.normal(k_bhh, (NUM_LAYERS, 1, 3 * HIDDEN), jnp.float32)
    params = (emb_table, wih_t, whh_t, bih, bhh)

    # Inputs: token ids padded with PAD; lengths sorted descending
    # (pack_padded_sequence default enforce_sorted=True).
    input_length = jnp.array([8, 5], dtype=jnp.int32)
    tokens = jax.random.randint(k_tok, (B, T), 1, VOCAB, dtype=jnp.int32)
    pad_mask = jnp.arange(T)[None, :] < input_length[:, None]
    tokens = jnp.where(pad_mask, tokens, PAD)

    out, hidden = encoder_forward(tokens, input_length, params)
    out = jax.block_until_ready(out)
    hidden = jax.block_until_ready(hidden)

    ref_out, ref_hidden = reference_forward(tokens, input_length, params)
    assert out.shape == (B, T, HIDDEN)
    assert hidden.shape == (NUM_LAYERS, B, HIDDEN)
    assert jnp.allclose(out, ref_out, rtol=1e-3, atol=1e-3)
    assert jnp.allclose(hidden, ref_hidden, rtol=1e-3, atol=1e-3)

    print("KERNEL_OK")
</pallas_src>

<mosaic_0001>
module attributes {stable_mosaic.version = 11 : i64} {
  func.func @_encoder_gru_kernel(%arg0: memref<8x8x32xf32, #tpu.memory_space<vmem>>, %arg1: memref<8x1xi32, #tpu.memory_space<vmem>>, %arg2: memref<32x96xf32, #tpu.memory_space<vmem>>, %arg3: memref<1x96xf32, #tpu.memory_space<vmem>>, %arg4: memref<32x96xf32, #tpu.memory_space<vmem>>, %arg5: memref<1x96xf32, #tpu.memory_space<vmem>>, %arg6: memref<1x64x128xf32, #tpu.memory_space<vmem>>, %arg7: memref<1x1x128xf32, #tpu.memory_space<vmem>>, %arg8: memref<8x256xf32, #tpu.memory_space<vmem>>, %arg9: memref<2x8x32xf32, #tpu.memory_space<vmem>>) attributes {dimension_semantics = [], scalar_prefetch = 0 : i64, scratch_operands = 0 : i64, tpu.core_type = #tpu.core_type<tc>} {
    %c0 = arith.constant 0 : index
    %c0_0 = arith.constant 0 : index
    %0 = vector.load %arg1[%c0, %c0_0] : memref<8x1xi32, #tpu.memory_space<vmem>>, vector<8x1xi32>
    %c0_1 = arith.constant 0 : index
    %c0_2 = arith.constant 0 : index
    %1 = vector.load %arg2[%c0_1, %c0_2] : memref<32x96xf32, #tpu.memory_space<vmem>>, vector<32x96xf32>
    %c0_3 = arith.constant 0 : index
    %c0_4 = arith.constant 0 : index
    %2 = vector.load %arg3[%c0_3, %c0_4] : memref<1x96xf32, #tpu.memory_space<vmem>>, vector<1x96xf32>
    %c0_5 = arith.constant 0 : index
    %c0_6 = arith.constant 0 : index
    %3 = vector.load %arg4[%c0_5, %c0_6] : memref<32x96xf32, #tpu.memory_space<vmem>>, vector<32x96xf32>
    %c0_7 = arith.constant 0 : index
    %c0_8 = arith.constant 0 : index
    %4 = vector.load %arg5[%c0_7, %c0_8] : memref<1x96xf32, #tpu.memory_space<vmem>>, vector<1x96xf32>
    %c0_9 = arith.constant 0 : index
    %c0_10 = arith.constant 0 : index
    %c0_11 = arith.constant 0 : index
    %5 = vector.load %arg0[%c0_9, %c0_10, %c0_11] : memref<8x8x32xf32, #tpu.memory_space<vmem>>, vector<1x8x32xf32>
    %6 = vector.shape_cast %5 : vector<1x8x32xf32> to vector<8x32xf32>
    %cst = arith.constant dense<0.000000e+00> : vector<8x96xf32>
    %7 = tpu.matmul %6, %1, %cst {dimension_numbers = #tpu.dot_dimension_numbers<[1], [0], [0], [1], [0, 0, 1, 1], [], []>} : vector<8x32xf32>, vector<32x96xf32>, vector<8x96xf32> -> vector<8x96xf32>
    %8 = vector.broadcast %2 : vector<1x96xf32> to vector<8x96xf32>
    %9 = arith.addf %7, %8 : vector<8x96xf32>
    %c1 = arith.constant 1 : index
    %c0_12 = arith.constant 0 : index
    %c0_13 = arith.constant 0 : index
    %10 = vector.load %arg0[%c1, %c0_12, %c0_13] : memref<8x8x32xf32, #tpu.memory_space<vmem>>, vector<1x8x32xf32>
    %11 = vector.shape_cast %10 : vector<1x8x32xf32> to vector<8x32xf32>
    %cst_14 = arith.constant dense<0.000000e+00> : vector<8x96xf32>
    %12 = tpu.matmul %11, %1, %cst_14 {dimension_numbers = #tpu.dot_dimension_numbers<[1], [0], [0], [1], [0, 0, 1, 1], [], []>} : vector<8x32xf32>, vector<32x96xf32>, vector<8x96xf32> -> vector<8x96xf32>
    %13 = vector.broadcast %2 : vector<1x96xf32> to vector<8x96xf32>
    %14 = arith.addf %12, %13 : vector<8x96xf32>
    %c2 = arith.constant 2 : index
    %c0_15 = arith.constant 0 : index
    %c0_16 = arith.constant 0 : index
    %15 = vector.load %arg0[%c2, %c0_15, %c0_16] : memref<8x8x32xf32, #tpu.memory_space<vmem>>, vector<1x8x32xf32>
    %16 = vector.shape_cast %15 : vector<1x8x32xf32> to vector<8x32xf32>
    %cst_17 = arith.constant dense<0.000000e+00> : vector<8x96xf32>
    %17 = tpu.matmul %16, %1, %cst_17 {dimension_numbers = #tpu.dot_dimension_numbers<[1], [0], [0], [1], [0, 0, 1, 1], [], []>} : vector<8x32xf32>, vector<32x96xf32>, vector<8x96xf32> -> vector<8x96xf32>
    %18 = vector.broadcast %2 : vector<1x96xf32> to vector<8x96xf32>
    %19 = arith.addf %17, %18 : vector<8x96xf32>
    %c3 = arith.constant 3 : index
    %c0_18 = arith.constant 0 : index
    %c0_19 = arith.constant 0 : index
    %20 = vector.load %arg0[%c3, %c0_18, %c0_19] : memref<8x8x32xf32, #tpu.memory_space<vmem>>, vector<1x8x32xf32>
    %21 = vector.shape_cast %20 : vector<1x8x32xf32> to vector<8x32xf32>
    %cst_20 = arith.constant dense<0.000000e+00> : vector<8x96xf32>
    %22 = tpu.matmul %21, %1, %cst_20 {dimension_numbers = #tpu.dot_dimension_numbers<[1], [0], [0], [1], [0, 0, 1, 1], [], []>} : vector<8x32xf32>, vector<32x96xf32>, vector<8x96xf32> -> vector<8x96xf32>
    %23 = vector.broadcast %2 : vector<1x96xf32> to vector<8x96xf32>
    %24 = arith.addf %22, %23 : vector<8x96xf32>
    %c4 = arith.constant 4 : index
    %c0_21 = arith.constant 0 : index
    %c0_22 = arith.constant 0 : index
    %25 = vector.load %arg0[%c4, %c0_21, %c0_22] : memref<8x8x32xf32, #tpu.memory_space<vmem>>, vector<1x8x32xf32>
    %26 = vector.shape_cast %25 : vector<1x8x32xf32> to vector<8x32xf32>
    %cst_23 = arith.constant dense<0.000000e+00> : vector<8x96xf32>
    %27 = tpu.matmul %26, %1, %cst_23 {dimension_numbers = #tpu.dot_dimension_numbers<[1], [0], [0], [1], [0, 0, 1, 1], [], []>} : vector<8x32xf32>, vector<32x96xf32>, vector<8x96xf32> -> vector<8x96xf32>
    %28 = vector.broadcast %2 : vector<1x96xf32> to vector<8x96xf32>
    %29 = arith.addf %27, %28 : vector<8x96xf32>
    %c5 = arith.constant 5 : index
    %c0_24 = arith.constant 0 : index
    %c0_25 = arith.constant 0 : index
    %30 = vector.load %arg0[%c5, %c0_24, %c0_25] : memref<8x8x32xf32, #tpu.memory_space<vmem>>, vector<1x8x32xf32>
    %31 = vector.shape_cast %30 : vector<1x8x32xf32> to vector<8x32xf32>
    %cst_26 = arith.constant dense<0.000000e+00> : vector<8x96xf32>
    %32 = tpu.matmul %31, %1, %cst_26 {dimension_numbers = #tpu.dot_dimension_numbers<[1], [0], [0], [1], [0, 0, 1, 1], [], []>} : vector<8x32xf32>, vector<32x96xf32>, vector<8x96xf32> -> vector<8x96xf32>
    %33 = vector.broadcast %2 : vector<1x96xf32> to vector<8x96xf32>
    %34 = arith.addf %32, %33 : vector<8x96xf32>
    %c6 = arith.constant 6 : index
    %c0_27 = arith.constant 0 : index
    %c0_28 = arith.constant 0 : index
    %35 = vector.load %arg0[%c6, %c0_27, %c0_28] : memref<8x8x32xf32, #tpu.memory_space<vmem>>, vector<1x8x32xf32>
    %36 = vector.shape_cast %35 : vector<1x8x32xf32> to vector<8x32xf32>
    %cst_29 = arith.constant dense<0.000000e+00> : vector<8x96xf32>
    %37 = tpu.matmul %36, %1, %cst_29 {dimension_numbers = #tpu.dot_dimension_numbers<[1], [0], [0], [1], [0, 0, 1, 1], [], []>} : vector<8x32xf32>, vector<32x96xf32>, vector<8x96xf32> -> vector<8x96xf32>
    %38 = vector.broadcast %2 : vector<1x96xf32> to vector<8x96xf32>
    %39 = arith.addf %37, %38 : vector<8x96xf32>
    %c7 = arith.constant 7 : index
    %c0_30 = arith.constant 0 : index
    %c0_31 = arith.constant 0 : index
    %40 = vector.load %arg0[%c7, %c0_30, %c0_31] : memref<8x8x32xf32, #tpu.memory_space<vmem>>, vector<1x8x32xf32>
    %41 = vector.shape_cast %40 : vector<1x8x32xf32> to vector<8x32xf32>
    %cst_32 = arith.constant dense<0.000000e+00> : vector<8x96xf32>
    %42 = tpu.matmul %41, %1, %cst_32 {dimension_numbers = #tpu.dot_dimension_numbers<[1], [0], [0], [1], [0, 0, 1, 1], [], []>} : vector<8x32xf32>, vector<32x96xf32>, vector<8x96xf32> -> vector<8x96xf32>
    %43 = vector.broadcast %2 : vector<1x96xf32> to vector<8x96xf32>
    %44 = arith.addf %42, %43 : vector<8x96xf32>
    %c0_i32 = arith.constant 0 : i32
    %45 = vector.broadcast %c0_i32 : i32 to vector<8x1xi32>
    %46 = arith.cmpi sgt, %0, %45 : vector<8x1xi32>
    %c1_i32 = arith.constant 1 : i32
    %47 = vector.broadcast %c1_i32 : i32 to vector<8x1xi32>
    %48 = arith.cmpi sgt, %0, %47 : vector<8x1xi32>
    %c2_i32 = arith.constant 2 : i32
    %49 = vector.broadcast %c2_i32 : i32 to vector<8x1xi32>
    %50 = arith.cmpi sgt, %0, %49 : vector<8x1xi32>
    %c3_i32 = arith.constant 3 : i32
    %51 = vector.broadcast %c3_i32 : i32 to vector<8x1xi32>
    %52 = arith.cmpi sgt, %0, %51 : vector<8x1xi32>
    %c4_i32 = arith.constant 4 : i32
    %53 = vector.broadcast %c4_i32 : i32 to vector<8x1xi32>
    %54 = arith.cmpi sgt, %0, %53 : vector<8x1xi32>
    %c5_i32 = arith.constant 5 : i32
    %55 = vector.broadcast %c5_i32 : i32 to vector<8x1xi32>
    %56 = arith.cmpi sgt, %0, %55 : vector<8x1xi32>
    %c6_i32 = arith.constant 6 : i32
    %57 = vector.broadcast %c6_i32 : i32 to vector<8x1xi32>
    %58 = arith.cmpi sgt, %0, %57 : vector<8x1xi32>
    %c7_i32 = arith.constant 7 : i32
    %59 = vector.broadcast %c7_i32 : i32 to vector<8x1xi32>
    %60 = arith.cmpi sgt, %0, %59 : vector<8x1xi32>
    %cst_33 = arith.constant 0.000000e+00 : f32
    %61 = vector.broadcast %cst_33 : f32 to vector<8x32xf32>
    %cst_34 = arith.constant 0.000000e+00 : f32
    %62 = vector.broadcast %cst_34 : f32 to vector<8x32xf32>
    %cst_35 = arith.constant dense<0.000000e+00> : vector<8x96xf32>
    %63 = tpu.matmul %61, %3, %cst_35 {dimension_numbers = #tpu.dot_dimension_numbers<[1], [0], [0], [1], [0, 0, 1, 1], [], []>} : vector<8x32xf32>, vector<32x96xf32>, vector<8x96xf32> -> vector<8x96xf32>
    %64 = vector.broadcast %4 : vector<1x96xf32> to vector<8x96xf32>
    %65 = arith.addf %63, %64 : vector<8x96xf32>
    %66 = vector.extract_strided_slice %9 {offsets = [0, 0], sizes = [8, 64], strides = [1, 1]} : vector<8x96xf32> to vector<8x64xf32>
    %67 = vector.extract_strided_slice %65 {offsets = [0, 0], sizes = [8, 64], strides = [1, 1]} : vector<8x96xf32> to vector<8x64xf32>
    %68 = arith.addf %66, %67 : vector<8x64xf32>
    %69 = arith.negf %68 : vector<8x64xf32>
    %70 = math.exp %69 : vector<8x64xf32>
    %cst_36 = arith.constant 1.000000e+00 : f32
    %71 = vector.broadcast %cst_36 : f32 to vector<8x64xf32>
    %72 = arith.addf %71, %70 : vector<8x64xf32>
    %73 = arith.divf %71, %72 : vector<8x64xf32>
    %74 = vector.extract_strided_slice %73 {offsets = [0, 0], sizes = [8, 32], strides = [1, 1]} : vector<8x64xf32> to vector<8x32xf32>
    %75 = vector.extract_strided_slice %73 {offsets = [0, 32], sizes = [8, 32], strides = [1, 1]} : vector<8x64xf32> to vector<8x32xf32>
    %76 = vector.extract_strided_slice %9 {offsets = [0, 64], sizes = [8, 32], strides = [1, 1]} : vector<8x96xf32> to vector<8x32xf32>
    %77 = vector.extract_strided_slice %65 {offsets = [0, 64], sizes = [8, 32], strides = [1, 1]} : vector<8x96xf32> to vector<8x32xf32>
    %78 = arith.mulf %74, %77 : vector<8x32xf32>
    %79 = arith.addf %76, %78 : vector<8x32xf32>
    %80 = math.tanh %79 : vector<8x32xf32>
    %cst_37 = arith.constant 1.000000e+00 : f32
    %81 = vector.broadcast %cst_37 : f32 to vector<8x32xf32>
    %82 = arith.subf %81, %75 : vector<8x32xf32>
    %83 = arith.mulf %82, %80 : vector<8x32xf32>
    %84 = arith.mulf %75, %61 : vector<8x32xf32>
    %85 = arith.addf %83, %84 : vector<8x32xf32>
    %86 = vector.shape_cast %46 : vector<8x1xi1> to vector<8x1xi1>
    %87 = vector.broadcast %86 : vector<8x1xi1> to vector<8x32xi1>
    %88 = arith.select %87, %85, %61 : vector<8x32xi1>, vector<8x32xf32>
    %89 = tpu.concatenate %88, %62 in 1 : vector<8x32xf32>, vector<8x32xf32> -> vector<8x64xf32>
    %c0_38 = arith.constant 0 : index
    %c0_39 = arith.constant 0 : index
    %c0_40 = arith.constant 0 : index
    %90 = vector.load %arg6[%c0_38, %c0_39, %c0_40] : memref<1x64x128xf32, #tpu.memory_space<vmem>>, vector<1x64x128xf32>
    %91 = vector.shape_cast %90 : vector<1x64x128xf32> to vector<64x128xf32>
    %cst_41 = arith.constant dense<0.000000e+00> : vector<8x128xf32>
    %92 = tpu.matmul %89, %91, %cst_41 {dimension_numbers = #tpu.dot_dimension_numbers<[1], [0], [0], [1], [0, 0, 1, 1], [], []>} : vector<8x64xf32>, vector<64x128xf32>, vector<8x128xf32> -> vector<8x128xf32>
    %c0_42 = arith.constant 0 : index
    %c0_43 = arith.constant 0 : index
    %c0_44 = arith.constant 0 : index
    %93 = vector.load %arg7[%c0_42, %c0_43, %c0_44] : memref<1x1x128xf32, #tpu.memory_space<vmem>>, vector<1x1x128xf32>
    %94 = vector.shape_cast %93 : vector<1x1x128xf32> to vector<1x128xf32>
    %95 = vector.broadcast %94 : vector<1x128xf32> to vector<8x128xf32>
    %96 = arith.addf %92, %95 : vector<8x128xf32>
    %97 = vector.extract_strided_slice %96 {offsets = [0, 0], sizes = [8, 64], strides = [1, 1]} : vector<8x128xf32> to vector<8x64xf32>
    %98 = arith.negf %97 : vector<8x64xf32>
    %99 = math.exp %98 : vector<8x64xf32>
    %cst_45 = arith.constant 1.000000e+00 : f32
    %100 = vector.broadcast %cst_45 : f32 to vector<8x64xf32>
    %101 = arith.addf %100, %99 : vector<8x64xf32>
    %102 = arith.divf %100, %101 : vector<8x64xf32>
    %103 = vector.extract_strided_slice %102 {offsets = [0, 0], sizes = [8, 32], strides = [1, 1]} : vector<8x64xf32> to vector<8x32xf32>
    %104 = vector.extract_strided_slice %102 {offsets = [0, 32], sizes = [8, 32], strides = [1, 1]} : vector<8x64xf32> to vector<8x32xf32>
    %105 = vector.extract_strided_slice %96 {offsets = [0, 64], sizes = [8, 32], strides = [1, 1]} : vector<8x128xf32> to vector<8x32xf32>
    %106 = vector.extract_strided_slice %96 {offsets = [0, 96], sizes = [8, 32], strides = [1, 1]} : vector<8x128xf32> to vector<8x32xf32>
    %107 = arith.mulf %103, %106 : vector<8x32xf32>
    %108 = arith.addf %105, %107 : vector<8x32xf32>
    %109 = math.tanh %108 : vector<8x32xf32>
    %cst_46 = arith.constant 1.000000e+00 : f32
    %110 = vector.broadcast %cst_46 : f32 to vector<8x32xf32>
    %111 = arith.subf %110, %104 : vector<8x32xf32>
    %112 = arith.mulf %111, %109 : vector<8x32xf32>
    %113 = arith.mulf %104, %62 : vector<8x32xf32>
    %114 = arith.addf %112, %113 : vector<8x32xf32>
    %115 = vector.shape_cast %46 : vector<8x1xi1> to vector<8x1xi1>
    %116 = vector.broadcast %115 : vector<8x1xi1> to vector<8x32xi1>
    %117 = arith.select %116, %114, %62 : vector<8x32xi1>, vector<8x32xf32>
    %cst_47 = arith.constant 0.000000e+00 : f32
    %118 = vector.shape_cast %46 : vector<8x1xi1> to vector<8x1xi1>
    %119 = vector.broadcast %118 : vector<8x1xi1> to vector<8x32xi1>
    %120 = vector.broadcast %cst_47 : f32 to vector<8x32xf32>
    %121 = arith.select %119, %117, %120 : vector<8x32xi1>, vector<8x32xf32>
    %cst_48 = arith.constant dense<0.000000e+00> : vector<8x96xf32>
    %122 = tpu.matmul %88, %3, %cst_48 {dimension_numbers = #tpu.dot_dimension_numbers<[1], [0], [0], [1], [0, 0, 1, 1], [], []>} : vector<8x32xf32>, vector<32x96xf32>, vector<8x96xf32> -> vector<8x96xf32>
    %123 = vector.broadcast %4 : vector<1x96xf32> to vector<8x96xf32>
    %124 = arith.addf %122, %123 : vector<8x96xf32>
    %125 = vector.extract_strided_slice %14 {offsets = [0, 0], sizes = [8, 64], strides = [1, 1]} : vector<8x96xf32> to vector<8x64xf32>
    %126 = vector.extract_strided_slice %124 {offsets = [0, 0], sizes = [8, 64], strides = [1, 1]} : vector<8x96xf32> to vector<8x64xf32>
    %127 = arith.addf %125, %126 : vector<8x64xf32>
    %128 = arith.negf %127 : vector<8x64xf32>
    %129 = math.exp %128 : vector<8x64xf32>
    %cst_49 = arith.constant 1.000000e+00 : f32
    %130 = vector.broadcast %cst_49 : f32 to vector<8x64xf32>
    %131 = arith.addf %130, %129 : vector<8x64xf32>
    %132 = arith.divf %130, %131 : vector<8x64xf32>
    %133 = vector.extract_strided_slice %132 {offsets = [0, 0], sizes = [8, 32], strides = [1, 1]} : vector<8x64xf32> to vector<8x32xf32>
    %134 = vector.extract_strided_slice %132 {offsets = [0, 32], sizes = [8, 32], strides = [1, 1]} : vector<8x64xf32> to vector<8x32xf32>
    %135 = vector.extract_strided_slice %14 {offsets = [0, 64], sizes = [8, 32], strides = [1, 1]} : vector<8x96xf32> to vector<8x32xf32>
    %136 = vector.extract_strided_slice %124 {offsets = [0, 64], sizes = [8, 32], strides = [1, 1]} : vector<8x96xf32> to vector<8x32xf32>
    %137 = arith.mulf %133, %136 : vector<8x32xf32>
    %138 = arith.addf %135, %137 : vector<8x32xf32>
    %139 = math.tanh %138 : vector<8x32xf32>
    %cst_50 = arith.constant 1.000000e+00 : f32
    %140 = vector.broadcast %cst_50 : f32 to vector<8x32xf32>
    %141 = arith.subf %140, %134 : vector<8x32xf32>
    %142 = arith.mulf %141, %139 : vector<8x32xf32>
    %143 = arith.mulf %134, %88 : vector<8x32xf32>
    %144 = arith.addf %142, %143 : vector<8x32xf32>
    %145 = vector.shape_cast %48 : vector<8x1xi1> to vector<8x1xi1>
    %146 = vector.broadcast %145 : vector<8x1xi1> to vector<8x32xi1>
    %147 = arith.select %146, %144, %88 : vector<8x32xi1>, vector<8x32xf32>
    %148 = tpu.concatenate %147, %117 in 1 : vector<8x32xf32>, vector<8x32xf32> -> vector<8x64xf32>
    %c0_51 = arith.constant 0 : index
    %c0_52 = arith.constant 0 : index
    %c0_53 = arith.constant 0 : index
    %149 = vector.load %arg6[%c0_51, %c0_52, %c0_53] : memref<1x64x128xf32, #tpu.memory_space<vmem>>, vector<1x64x128xf32>
    %150 = vector.shape_cast %149 : vector<1x64x128xf32> to vector<64x128xf32>
    %cst_54 = arith.constant dense<0.000000e+00> : vector<8x128xf32>
    %151 = tpu.matmul %148, %150, %cst_54 {dimension_numbers = #tpu.dot_dimension_numbers<[1], [0], [0], [1], [0, 0, 1, 1], [], []>} : vector<8x64xf32>, vector<64x128xf32>, vector<8x128xf32> -> vector<8x128xf32>
    %c0_55 = arith.constant 0 : index
    %c0_56 = arith.constant 0 : index
    %c0_57 = arith.constant 0 : index
    %152 = vector.load %arg7[%c0_55, %c0_56, %c0_57] : memref<1x1x128xf32, #tpu.memory_space<vmem>>, vector<1x1x128xf32>
    %153 = vector.shape_cast %152 : vector<1x1x128xf32> to vector<1x128xf32>
    %154 = vector.broadcast %153 : vector<1x128xf32> to vector<8x128xf32>
    %155 = arith.addf %151, %154 : vector<8x128xf32>
    %156 = vector.extract_strided_slice %155 {offsets = [0, 0], sizes = [8, 64], strides = [1, 1]} : vector<8x128xf32> to vector<8x64xf32>
    %157 = arith.negf %156 : vector<8x64xf32>
    %158 = math.exp %157 : vector<8x64xf32>
    %cst_58 = arith.constant 1.000000e+00 : f32
    %159 = vector.broadcast %cst_58 : f32 to vector<8x64xf32>
    %160 = arith.addf %159, %158 : vector<8x64xf32>
    %161 = arith.divf %159, %160 : vector<8x64xf32>
    %162 = vector.extract_strided_slice %161 {offsets = [0, 0], sizes = [8, 32], strides = [1, 1]} : vector<8x64xf32> to vector<8x32xf32>
    %163 = vector.extract_strided_slice %161 {offsets = [0, 32], sizes = [8, 32], strides = [1, 1]} : vector<8x64xf32> to vector<8x32xf32>
    %164 = vector.extract_strided_slice %155 {offsets = [0, 64], sizes = [8, 32], strides = [1, 1]} : vector<8x128xf32> to vector<8x32xf32>
    %165 = vector.extract_strided_slice %155 {offsets = [0, 96], sizes = [8, 32], strides = [1, 1]} : vector<8x128xf32> to vector<8x32xf32>
    %166 = arith.mulf %162, %165 : vector<8x32xf32>
    %167 = arith.addf %164, %166 : vector<8x32xf32>
    %168 = math.tanh %167 : vector<8x32xf32>
    %cst_59 = arith.constant 1.000000e+00 : f32
    %169 = vector.broadcast %cst_59 : f32 to vector<8x32xf32>
    %170 = arith.subf %169, %163 : vector<8x32xf32>
    %171 = arith.mulf %170, %168 : vector<8x32xf32>
    %172 = arith.mulf %163, %117 : vector<8x32xf32>
    %173 = arith.addf %171, %172 : vector<8x32xf32>
    %174 = vector.shape_cast %48 : vector<8x1xi1> to vector<8x1xi1>
    %175 = vector.broadcast %174 : vector<8x1xi1> to vector<8x32xi1>
    %176 = arith.select %175, %173, %117 : vector<8x32xi1>, vector<8x32xf32>
    %cst_60 = arith.constant 0.000000e+00 : f32
    %177 = vector.shape_cast %48 : vector<8x1xi1> to vector<8x1xi1>
    %178 = vector.broadcast %177 : vector<8x1xi1> to vector<8x32xi1>
    %179 = vector.broadcast %cst_60 : f32 to vector<8x32xf32>
    %180 = arith.select %178, %176, %179 : vector<8x32xi1>, vector<8x32xf32>
    %cst_61 = arith.constant dense<0.000000e+00> : vector<8x96xf32>
    %181 = tpu.matmul %147, %3, %cst_61 {dimension_numbers = #tpu.dot_dimension_numbers<[1], [0], [0], [1], [0, 0, 1, 1], [], []>} : vector<8x32xf32>, vector<32x96xf32>, vector<8x96xf32> -> vector<8x96xf32>
    %182 = vector.broadcast %4 : vector<1x96xf32> to vector<8x96xf32>
    %183 = arith.addf %181, %182 : vector<8x96xf32>
    %184 = vector.extract_strided_slice %19 {offsets = [0, 0], sizes = [8, 64], strides = [1, 1]} : vector<8x96xf32> to vector<8x64xf32>
    %185 = vector.extract_strided_slice %183 {offsets = [0, 0], sizes = [8, 64], strides = [1, 1]} : vector<8x96xf32> to vector<8x64xf32>
    %186 = arith.addf %184, %185 : vector<8x64xf32>
    %187 = arith.negf %186 : vector<8x64xf32>
    %188 = math.exp %187 : vector<8x64xf32>
    %cst_62 = arith.constant 1.000000e+00 : f32
    %189 = vector.broadcast %cst_62 : f32 to vector<8x64xf32>
    %190 = arith.addf %189, %188 : vector<8x64xf32>
    %191 = arith.divf %189, %190 : vector<8x64xf32>
    %192 = vector.extract_strided_slice %191 {offsets = [0, 0], sizes = [8, 32], strides = [1, 1]} : vector<8x64xf32> to vector<8x32xf32>
    %193 = vector.extract_strided_slice %191 {offsets = [0, 32], sizes = [8, 32], strides = [1, 1]} : vector<8x64xf32> to vector<8x32xf32>
    %194 = vector.extract_strided_slice %19 {offsets = [0, 64], sizes = [8, 32], strides = [1, 1]} : vector<8x96xf32> to vector<8x32xf32>
    %195 = vector.extract_strided_slice %183 {offsets = [0, 64], sizes = [8, 32], strides = [1, 1]} : vector<8x96xf32> to vector<8x32xf32>
    %196 = arith.mulf %192, %195 : vector<8x32xf32>
    %197 = arith.addf %194, %196 : vector<8x32xf32>
    %198 = math.tanh %197 : vector<8x32xf32>
    %cst_63 = arith.constant 1.000000e+00 : f32
    %199 = vector.broadcast %cst_63 : f32 to vector<8x32xf32>
    %200 = arith.subf %199, %193 : vector<8x32xf32>
    %201 = arith.mulf %200, %198 : vector<8x32xf32>
    %202 = arith.mulf %193, %147 : vector<8x32xf32>
    %203 = arith.addf %201, %202 : vector<8x32xf32>
    %204 = vector.shape_cast %50 : vector<8x1xi1> to vector<8x1xi1>
    %205 = vector.broadcast %204 : vector<8x1xi1> to vector<8x32xi1>
    %206 = arith.select %205, %203, %147 : vector<8x32xi1>, vector<8x32xf32>
    %207 = tpu.concatenate %206, %176 in 1 : vector<8x32xf32>, vector<8x32xf32> -> vector<8x64xf32>
    %c0_64 = arith.constant 0 : index
    %c0_65 = arith.constant 0 : index
    %c0_66 = arith.constant 0 : index
    %208 = vector.load %arg6[%c0_64, %c0_65, %c0_66] : memref<1x64x128xf32, #tpu.memory_space<vmem>>, vector<1x64x128xf32>
    %209 = vector.shape_cast %208 : vector<1x64x128xf32> to vector<64x128xf32>
    %cst_67 = arith.constant dense<0.000000e+00> : vector<8x128xf32>
    %210 = tpu.matmul %207, %209, %cst_67 {dimension_numbers = #tpu.dot_dimension_numbers<[1], [0], [0], [1], [0, 0, 1, 1], [], []>} : vector<8x64xf32>, vector<64x128xf32>, vector<8x128xf32> -> vector<8x128xf32>
    %c0_68 = arith.constant 0 : index
    %c0_69 = arith.constant 0 : index
    %c0_70 = arith.constant 0 : index
    %211 = vector.load %arg7[%c0_68, %c0_69, %c0_70] : memref<1x1x128xf32, #tpu.memory_space<vmem>>, vector<1x1x128xf32>
    %212 = vector.shape_cast %211 : vector<1x1x128xf32> to vector<1x128xf32>
    %213 = vector.broadcast %212 : vector<1x128xf32> to vector<8x128xf32>
    %214 = arith.addf %210, %213 : vector<8x128xf32>
    %215 = vector.extract_strided_slice %214 {offsets = [0, 0], sizes = [8, 64], strides = [1, 1]} : vector<8x128xf32> to vector<8x64xf32>
    %216 = arith.negf %215 : vector<8x64xf32>
    %217 = math.exp %216 : vector<8x64xf32>
    %cst_71 = arith.constant 1.000000e+00 : f32
    %218 = vector.broadcast %cst_71 : f32 to vector<8x64xf32>
    %219 = arith.addf %218, %217 : vector<8x64xf32>
    %220 = arith.divf %218, %219 : vector<8x64xf32>
    %221 = vector.extract_strided_slice %220 {offsets = [0, 0], sizes = [8, 32], strides = [1, 1]} : vector<8x64xf32> to vector<8x32xf32>
    %222 = vector.extract_strided_slice %220 {offsets = [0, 32], sizes = [8, 32], strides = [1, 1]} : vector<8x64xf32> to vector<8x32xf32>
    %223 = vector.extract_strided_slice %214 {offsets = [0, 64], sizes = [8, 32], strides = [1, 1]} : vector<8x128xf32> to vector<8x32xf32>
    %224 = vector.extract_strided_slice %214 {offsets = [0, 96], sizes = [8, 32], strides = [1, 1]} : vector<8x128xf32> to vector<8x32xf32>
    %225 = arith.mulf %221, %224 : vector<8x32xf32>
    %226 = arith.addf %223, %225 : vector<8x32xf32>
    %227 = math.tanh %226 : vector<8x32xf32>
    %cst_72 = arith.constant 1.000000e+00 : f32
    %228 = vector.broadcast %cst_72 : f32 to vector<8x32xf32>
    %229 = arith.subf %228, %222 : vector<8x32xf32>
    %230 = arith.mulf %229, %227 : vector<8x32xf32>
    %231 = arith.mulf %222, %176 : vector<8x32xf32>
    %232 = arith.addf %230, %231 : vector<8x32xf32>
    %233 = vector.shape_cast %50 : vector<8x1xi1> to vector<8x1xi1>
    %234 = vector.broadcast %233 : vector<8x1xi1> to vector<8x32xi1>
    %235 = arith.select %234, %232, %176 : vector<8x32xi1>, vector<8x32xf32>
    %cst_73 = arith.constant 0.000000e+00 : f32
    %236 = vector.shape_cast %50 : vector<8x1xi1> to vector<8x1xi1>
    %237 = vector.broadcast %236 : vector<8x1xi1> to vector<8x32xi1>
    %238 = vector.broadcast %cst_73 : f32 to vector<8x32xf32>
    %239 = arith.select %237, %235, %238 : vector<8x32xi1>, vector<8x32xf32>
    %cst_74 = arith.constant dense<0.000000e+00> : vector<8x96xf32>
    %240 = tpu.matmul %206, %3, %cst_74 {dimension_numbers = #tpu.dot_dimension_numbers<[1], [0], [0], [1], [0, 0, 1, 1], [], []>} : vector<8x32xf32>, vector<32x96xf32>, vector<8x96xf32> -> vector<8x96xf32>
    %241 = vector.broadcast %4 : vector<1x96xf32> to vector<8x96xf32>
    %242 = arith.addf %240, %241 : vector<8x96xf32>
    %243 = vector.extract_strided_slice %24 {offsets = [0, 0], sizes = [8, 64], strides = [1, 1]} : vector<8x96xf32> to vector<8x64xf32>
    %244 = vector.extract_strided_slice %242 {offsets = [0, 0], sizes = [8, 64], strides = [1, 1]} : vector<8x96xf32> to vector<8x64xf32>
    %245 = arith.addf %243, %244 : vector<8x64xf32>
    %246 = arith.negf %245 : vector<8x64xf32>
    %247 = math.exp %246 : vector<8x64xf32>
    %cst_75 = arith.constant 1.000000e+00 : f32
    %248 = vector.broadcast %cst_75 : f32 to vector<8x64xf32>
    %249 = arith.addf %248, %247 : vector<8x64xf32>
    %250 = arith.divf %248, %249 : vector<8x64xf32>
    %251 = vector.extract_strided_slice %250 {offsets = [0, 0], sizes = [8, 32], strides = [1, 1]} : vector<8x64xf32> to vector<8x32xf32>
    %252 = vector.extract_strided_slice %250 {offsets = [0, 32], sizes = [8, 32], strides = [1, 1]} : vector<8x64xf32> to vector<8x32xf32>
    %253 = vector.extract_strided_slice %24 {offsets = [0, 64], sizes = [8, 32], strides = [1, 1]} : vector<8x96xf32> to vector<8x32xf32>
    %254 = vector.extract_strided_slice %242 {offsets = [0, 64], sizes = [8, 32], strides = [1, 1]} : vector<8x96xf32> to vector<8x32xf32>
    %255 = arith.mulf %251, %254 : vector<8x32xf32>
    %256 = arith.addf %253, %255 : vector<8x32xf32>
    %257 = math.tanh %256 : vector<8x32xf32>
    %cst_76 = arith.constant 1.000000e+00 : f32
    %258 = vector.broadcast %cst_76 : f32 to vector<8x32xf32>
    %259 = arith.subf %258, %252 : vector<8x32xf32>
    %260 = arith.mulf %259, %257 : vector<8x32xf32>
    %261 = arith.mulf %252, %206 : vector<8x32xf32>
    %262 = arith.addf %260, %261 : vector<8x32xf32>
    %263 = vector.shape_cast %52 : vector<8x1xi1> to vector<8x1xi1>
    %264 = vector.broadcast %263 : vector<8x1xi1> to vector<8x32xi1>
    %265 = arith.select %264, %262, %206 : vector<8x32xi1>, vector<8x32xf32>
    %266 = tpu.concatenate %265, %235 in 1 : vector<8x32xf32>, vector<8x32xf32> -> vector<8x64xf32>
    %c0_77 = arith.constant 0 : index
    %c0_78 = arith.constant 0 : index
    %c0_79 = arith.constant 0 : index
    %267 = vector.load %arg6[%c0_77, %c0_78, %c0_79] : memref<1x64x128xf32, #tpu.memory_space<vmem>>, vector<1x64x128xf32>
    %268 = vector.shape_cast %267 : vector<1x64x128xf32> to vector<64x128xf32>
    %cst_80 = arith.constant dense<0.000000e+00> : vector<8x128xf32>
    %269 = tpu.matmul %266, %268, %cst_80 {dimension_numbers = #tpu.dot_dimension_numbers<[1], [0], [0], [1], [0, 0, 1, 1], [], []>} : vector<8x64xf32>, vector<64x128xf32>, vector<8x128xf32> -> vector<8x128xf32>
    %c0_81 = arith.constant 0 : index
    %c0_82 = arith.constant 0 : index
    %c0_83 = arith.constant 0 : index
    %270 = vector.load %arg7[%c0_81, %c0_82, %c0_83] : memref<1x1x128xf32, #tpu.memory_space<vmem>>, vector<1x1x128xf32>
    %271 = vector.shape_cast %270 : vector<1x1x128xf32> to vector<1x128xf32>
    %272 = vector.broadcast %271 : vector<1x128xf32> to vector<8x128xf32>
    %273 = arith.addf %269, %272 : vector<8x128xf32>
    %274 = vector.extract_strided_slice %273 {offsets = [0, 0], sizes = [8, 64], strides = [1, 1]} : vector<8x128xf32> to vector<8x64xf32>
    %275 = arith.negf %274 : vector<8x64xf32>
    %276 = math.exp %275 : vector<8x64xf32>
    %cst_84 = arith.constant 1.000000e+00 : f32
    %277 = vector.broadcast %cst_84 : f32 to vector<8x64xf32>
    %278 = arith.addf %277, %276 : vector<8x64xf32>
    %279 = arith.divf %277, %278 : vector<8x64xf32>
    %280 = vector.extract_strided_slice %279 {offsets = [0, 0], sizes = [8, 32], strides = [1, 1]} : vector<8x64xf32> to vector<8x32xf32>
    %281 = vector.extract_strided_slice %279 {offsets = [0, 32], sizes = [8, 32], strides = [1, 1]} : vector<8x64xf32> to vector<8x32xf32>
    %282 = vector.extract_strided_slice %273 {offsets = [0, 64], sizes = [8, 32], strides = [1, 1]} : vector<8x128xf32> to vector<8x32xf32>
    %283 = vector.extract_strided_slice %273 {offsets = [0, 96], sizes = [8, 32], strides = [1, 1]} : vector<8x128xf32> to vector<8x32xf32>
    %284 = arith.mulf %280, %283 : vector<8x32xf32>
    %285 = arith.addf %282, %284 : vector<8x32xf32>
    %286 = math.tanh %285 : vector<8x32xf32>
    %cst_85 = arith.constant 1.000000e+00 : f32
    %287 = vector.broadcast %cst_85 : f32 to vector<8x32xf32>
    %288 = arith.subf %287, %281 : vector<8x32xf32>
    %289 = arith.mulf %288, %286 : vector<8x32xf32>
    %290 = arith.mulf %281, %235 : vector<8x32xf32>
    %291 = arith.addf %289, %290 : vector<8x32xf32>
    %292 = vector.shape_cast %52 : vector<8x1xi1> to vector<8x1xi1>
    %293 = vector.broadcast %292 : vector<8x1xi1> to vector<8x32xi1>
    %294 = arith.select %293, %291, %235 : vector<8x32xi1>, vector<8x32xf32>
    %cst_86 = arith.constant 0.000000e+00 : f32
    %295 = vector.shape_cast %52 : vector<8x1xi1> to vector<8x1xi1>
    %296 = vector.broadcast %295 : vector<8x1xi1> to vector<8x32xi1>
    %297 = vector.broadcast %cst_86 : f32 to vector<8x32xf32>
    %298 = arith.select %296, %294, %297 : vector<8x32xi1>, vector<8x32xf32>
    %cst_87 = arith.constant dense<0.000000e+00> : vector<8x96xf32>
    %299 = tpu.matmul %265, %3, %cst_87 {dimension_numbers = #tpu.dot_dimension_numbers<[1], [0], [0], [1], [0, 0, 1, 1], [], []>} : vector<8x32xf32>, vector<32x96xf32>, vector<8x96xf32> -> vector<8x96xf32>
    %300 = vector.broadcast %4 : vector<1x96xf32> to vector<8x96xf32>
    %301 = arith.addf %299, %300 : vector<8x96xf32>
    %302 = vector.extract_strided_slice %29 {offsets = [0, 0], sizes = [8, 64], strides = [1, 1]} : vector<8x96xf32> to vector<8x64xf32>
    %303 = vector.extract_strided_slice %301 {offsets = [0, 0], sizes = [8, 64], strides = [1, 1]} : vector<8x96xf32> to vector<8x64xf32>
    %304 = arith.addf %302, %303 : vector<8x64xf32>
    %305 = arith.negf %304 : vector<8x64xf32>
    %306 = math.exp %305 : vector<8x64xf32>
    %cst_88 = arith.constant 1.000000e+00 : f32
    %307 = vector.broadcast %cst_88 : f32 to vector<8x64xf32>
    %308 = arith.addf %307, %306 : vector<8x64xf32>
    %309 = arith.divf %307, %308 : vector<8x64xf32>
    %310 = vector.extract_strided_slice %309 {offsets = [0, 0], sizes = [8, 32], strides = [1, 1]} : vector<8x64xf32> to vector<8x32xf32>
    %311 = vector.extract_strided_slice %309 {offsets = [0, 32], sizes = [8, 32], strides = [1, 1]} : vector<8x64xf32> to vector<8x32xf32>
    %312 = vector.extract_strided_slice %29 {offsets = [0, 64], sizes = [8, 32], strides = [1, 1]} : vector<8x96xf32> to vector<8x32xf32>
    %313 = vector.extract_strided_slice %301 {offsets = [0, 64], sizes = [8, 32], strides = [1, 1]} : vector<8x96xf32> to vector<8x32xf32>
    %314 = arith.mulf %310, %313 : vector<8x32xf32>
    %315 = arith.addf %312, %314 : vector<8x32xf32>
    %316 = math.tanh %315 : vector<8x32xf32>
    %cst_89 = arith.constant 1.000000e+00 : f32
    %317 = vector.broadcast %cst_89 : f32 to vector<8x32xf32>
    %318 = arith.subf %317, %311 : vector<8x32xf32>
    %319 = arith.mulf %318, %316 : vector<8x32xf32>
    %320 = arith.mulf %311, %265 : vector<8x32xf32>
    %321 = arith.addf %319, %320 : vector<8x32xf32>
    %322 = vector.shape_cast %54 : vector<8x1xi1> to vector<8x1xi1>
    %323 = vector.broadcast %322 : vector<8x1xi1> to vector<8x32xi1>
    %324 = arith.select %323, %321, %265 : vector<8x32xi1>, vector<8x32xf32>
    %325 = tpu.concatenate %324, %294 in 1 : vector<8x32xf32>, vector<8x32xf32> -> vector<8x64xf32>
    %c0_90 = arith.constant 0 : index
    %c0_91 = arith.constant 0 : index
    %c0_92 = arith.constant 0 : index
    %326 = vector.load %arg6[%c0_90, %c0_91, %c0_92] : memref<1x64x128xf32, #tpu.memory_space<vmem>>, vector<1x64x128xf32>
    %327 = vector.shape_cast %326 : vector<1x64x128xf32> to vector<64x128xf32>
    %cst_93 = arith.constant dense<0.000000e+00> : vector<8x128xf32>
    %328 = tpu.matmul %325, %327, %cst_93 {dimension_numbers = #tpu.dot_dimension_numbers<[1], [0], [0], [1], [0, 0, 1, 1], [], []>} : vector<8x64xf32>, vector<64x128xf32>, vector<8x128xf32> -> vector<8x128xf32>
    %c0_94 = arith.constant 0 : index
    %c0_95 = arith.constant 0 : index
    %c0_96 = arith.constant 0 : index
    %329 = vector.load %arg7[%c0_94, %c0_95, %c0_96] : memref<1x1x128xf32, #tpu.memory_space<vmem>>, vector<1x1x128xf32>
    %330 = vector.shape_cast %329 : vector<1x1x128xf32> to vector<1x128xf32>
    %331 = vector.broadcast %330 : vector<1x128xf32> to vector<8x128xf32>
    %332 = arith.addf %328, %331 : vector<8x128xf32>
    %333 = vector.extract_strided_slice %332 {offsets = [0, 0], sizes = [8, 64], strides = [1, 1]} : vector<8x128xf32> to vector<8x64xf32>
    %334 = arith.negf %333 : vector<8x64xf32>
    %335 = math.exp %334 : vector<8x64xf32>
    %cst_97 = arith.constant 1.000000e+00 : f32
    %336 = vector.broadcast %cst_97 : f32 to vector<8x64xf32>
    %337 = arith.addf %336, %335 : vector<8x64xf32>
    %338 = arith.divf %336, %337 : vector<8x64xf32>
    %339 = vector.extract_strided_slice %338 {offsets = [0, 0], sizes = [8, 32], strides = [1, 1]} : vector<8x64xf32> to vector<8x32xf32>
    %340 = vector.extract_strided_slice %338 {offsets = [0, 32], sizes = [8, 32], strides = [1, 1]} : vector<8x64xf32> to vector<8x32xf32>
    %341 = vector.extract_strided_slice %332 {offsets = [0, 64], sizes = [8, 32], strides = [1, 1]} : vector<8x128xf32> to vector<8x32xf32>
    %342 = vector.extract_strided_slice %332 {offsets = [0, 96], sizes = [8, 32], strides = [1, 1]} : vector<8x128xf32> to vector<8x32xf32>
    %343 = arith.mulf %339, %342 : vector<8x32xf32>
    %344 = arith.addf %341, %343 : vector<8x32xf32>
    %345 = math.tanh %344 : vector<8x32xf32>
    %cst_98 = arith.constant 1.000000e+00 : f32
    %346 = vector.broadcast %cst_98 : f32 to vector<8x32xf32>
    %347 = arith.subf %346, %340 : vector<8x32xf32>
    %348 = arith.mulf %347, %345 : vector<8x32xf32>
    %349 = arith.mulf %340, %294 : vector<8x32xf32>
    %350 = arith.addf %348, %349 : vector<8x32xf32>
    %351 = vector.shape_cast %54 : vector<8x1xi1> to vector<8x1xi1>
    %352 = vector.broadcast %351 : vector<8x1xi1> to vector<8x32xi1>
    %353 = arith.select %352, %350, %294 : vector<8x32xi1>, vector<8x32xf32>
    %cst_99 = arith.constant 0.000000e+00 : f32
    %354 = vector.shape_cast %54 : vector<8x1xi1> to vector<8x1xi1>
    %355 = vector.broadcast %354 : vector<8x1xi1> to vector<8x32xi1>
    %356 = vector.broadcast %cst_99 : f32 to vector<8x32xf32>
    %357 = arith.select %355, %353, %356 : vector<8x32xi1>, vector<8x32xf32>
    %cst_100 = arith.constant dense<0.000000e+00> : vector<8x96xf32>
    %358 = tpu.matmul %324, %3, %cst_100 {dimension_numbers = #tpu.dot_dimension_numbers<[1], [0], [0], [1], [0, 0, 1, 1], [], []>} : vector<8x32xf32>, vector<32x96xf32>, vector<8x96xf32> -> vector<8x96xf32>
    %359 = vector.broadcast %4 : vector<1x96xf32> to vector<8x96xf32>
    %360 = arith.addf %358, %359 : vector<8x96xf32>
    %361 = vector.extract_strided_slice %34 {offsets = [0, 0], sizes = [8, 64], strides = [1, 1]} : vector<8x96xf32> to vector<8x64xf32>
    %362 = vector.extract_strided_slice %360 {offsets = [0, 0], sizes = [8, 64], strides = [1, 1]} : vector<8x96xf32> to vector<8x64xf32>
    %363 = arith.addf %361, %362 : vector<8x64xf32>
    %364 = arith.negf %363 : vector<8x64xf32>
    %365 = math.exp %364 : vector<8x64xf32>
    %cst_101 = arith.constant 1.000000e+00 : f32
    %366 = vector.broadcast %cst_101 : f32 to vector<8x64xf32>
    %367 = arith.addf %366, %365 : vector<8x64xf32>
    %368 = arith.divf %366, %367 : vector<8x64xf32>
    %369 = vector.extract_strided_slice %368 {offsets = [0, 0], sizes = [8, 32], strides = [1, 1]} : vector<8x64xf32> to vector<8x32xf32>
    %370 = vector.extract_strided_slice %368 {offsets = [0, 32], sizes = [8, 32], strides = [1, 1]} : vector<8x64xf32> to vector<8x32xf32>
    %371 = vector.extract_strided_slice %34 {offsets = [0, 64], sizes = [8, 32], strides = [1, 1]} : vector<8x96xf32> to vector<8x32xf32>
    %372 = vector.extract_strided_slice %360 {offsets = [0, 64], sizes = [8, 32], strides = [1, 1]} : vector<8x96xf32> to vector<8x32xf32>
    %373 = arith.mulf %369, %372 : vector<8x32xf32>
    %374 = arith.addf %371, %373 : vector<8x32xf32>
    %375 = math.tanh %374 : vector<8x32xf32>
    %cst_102 = arith.constant 1.000000e+00 : f32
    %376 = vector.broadcast %cst_102 : f32 to vector<8x32xf32>
    %377 = arith.subf %376, %370 : vector<8x32xf32>
    %378 = arith.mulf %377, %375 : vector<8x32xf32>
    %379 = arith.mulf %370, %324 : vector<8x32xf32>
    %380 = arith.addf %378, %379 : vector<8x32xf32>
    %381 = vector.shape_cast %56 : vector<8x1xi1> to vector<8x1xi1>
    %382 = vector.broadcast %381 : vector<8x1xi1> to vector<8x32xi1>
    %383 = arith.select %382, %380, %324 : vector<8x32xi1>, vector<8x32xf32>
    %384 = tpu.concatenate %383, %353 in 1 : vector<8x32xf32>, vector<8x32xf32> -> vector<8x64xf32>
    %c0_103 = arith.constant 0 : index
    %c0_104 = arith.constant 0 : index
    %c0_105 = arith.constant 0 : index
    %385 = vector.load %arg6[%c0_103, %c0_104, %c0_105] : memref<1x64x128xf32, #tpu.memory_space<vmem>>, vector<1x64x128xf32>
    %386 = vector.shape_cast %385 : vector<1x64x128xf32> to vector<64x128xf32>
    %cst_106 = arith.constant dense<0.000000e+00> : vector<8x128xf32>
    %387 = tpu.matmul %384, %386, %cst_106 {dimension_numbers = #tpu.dot_dimension_numbers<[1], [0], [0], [1], [0, 0, 1, 1], [], []>} : vector<8x64xf32>, vector<64x128xf32>, vector<8x128xf32> -> vector<8x128xf32>
    %c0_107 = arith.constant 0 : index
    %c0_108 = arith.constant 0 : index
    %c0_109 = arith.constant 0 : index
    %388 = vector.load %arg7[%c0_107, %c0_108, %c0_109] : memref<1x1x128xf32, #tpu.memory_space<vmem>>, vector<1x1x128xf32>
    %389 = vector.shape_cast %388 : vector<1x1x128xf32> to vector<1x128xf32>
    %390 = vector.broadcast %389 : vector<1x128xf32> to vector<8x128xf32>
    %391 = arith.addf %387, %390 : vector<8x128xf32>
    %392 = vector.extract_strided_slice %391 {offsets = [0, 0], sizes = [8, 64], strides = [1, 1]} : vector<8x128xf32> to vector<8x64xf32>
    %393 = arith.negf %392 : vector<8x64xf32>
    %394 = math.exp %393 : vector<8x64xf32>
    %cst_110 = arith.constant 1.000000e+00 : f32
    %395 = vector.broadcast %cst_110 : f32 to vector<8x64xf32>
    %396 = arith.addf %395, %394 : vector<8x64xf32>
    %397 = arith.divf %395, %396 : vector<8x64xf32>
    %398 = vector.extract_strided_slice %397 {offsets = [0, 0], sizes = [8, 32], strides = [1, 1]} : vector<8x64xf32> to vector<8x32xf32>
    %399 = vector.extract_strided_slice %397 {offsets = [0, 32], sizes = [8, 32], strides = [1, 1]} : vector<8x64xf32> to vector<8x32xf32>
    %400 = vector.extract_strided_slice %391 {offsets = [0, 64], sizes = [8, 32], strides = [1, 1]} : vector<8x128xf32> to vector<8x32xf32>
    %401 = vector.extract_strided_slice %391 {offsets = [0, 96], sizes = [8, 32], strides = [1, 1]} : vector<8x128xf32> to vector<8x32xf32>
    %402 = arith.mulf %398, %401 : vector<8x32xf32>
    %403 = arith.addf %400, %402 : vector<8x32xf32>
    %404 = math.tanh %403 : vector<8x32xf32>
    %cst_111 = arith.constant 1.000000e+00 : f32
    %405 = vector.broadcast %cst_111 : f32 to vector<8x32xf32>
    %406 = arith.subf %405, %399 : vector<8x32xf32>
    %407 = arith.mulf %406, %404 : vector<8x32xf32>
    %408 = arith.mulf %399, %353 : vector<8x32xf32>
    %409 = arith.addf %407, %408 : vector<8x32xf32>
    %410 = vector.shape_cast %56 : vector<8x1xi1> to vector<8x1xi1>
    %411 = vector.broadcast %410 : vector<8x1xi1> to vector<8x32xi1>
    %412 = arith.select %411, %409, %353 : vector<8x32xi1>, vector<8x32xf32>
    %cst_112 = arith.constant 0.000000e+00 : f32
    %413 = vector.shape_cast %56 : vector<8x1xi1> to vector<8x1xi1>
    %414 = vector.broadcast %413 : vector<8x1xi1> to vector<8x32xi1>
    %415 = vector.broadcast %cst_112 : f32 to vector<8x32xf32>
    %416 = arith.select %414, %412, %415 : vector<8x32xi1>, vector<8x32xf32>
    %cst_113 = arith.constant dense<0.000000e+00> : vector<8x96xf32>
    %417 = tpu.matmul %383, %3, %cst_113 {dimension_numbers = #tpu.dot_dimension_numbers<[1], [0], [0], [1], [0, 0, 1, 1], [], []>} : vector<8x32xf32>, vector<32x96xf32>, vector<8x96xf32> -> vector<8x96xf32>
    %418 = vector.broadcast %4 : vector<1x96xf32> to vector<8x96xf32>
    %419 = arith.addf %417, %418 : vector<8x96xf32>
    %420 = vector.extract_strided_slice %39 {offsets = [0, 0], sizes = [8, 64], strides = [1, 1]} : vector<8x96xf32> to vector<8x64xf32>
    %421 = vector.extract_strided_slice %419 {offsets = [0, 0], sizes = [8, 64], strides = [1, 1]} : vector<8x96xf32> to vector<8x64xf32>
    %422 = arith.addf %420, %421 : vector<8x64xf32>
    %423 = arith.negf %422 : vector<8x64xf32>
    %424 = math.exp %423 : vector<8x64xf32>
    %cst_114 = arith.constant 1.000000e+00 : f32
    %425 = vector.broadcast %cst_114 : f32 to vector<8x64xf32>
    %426 = arith.addf %425, %424 : vector<8x64xf32>
    %427 = arith.divf %425, %426 : vector<8x64xf32>
    %428 = vector.extract_strided_slice %427 {offsets = [0, 0], sizes = [8, 32], strides = [1, 1]} : vector<8x64xf32> to vector<8x32xf32>
    %429 = vector.extract_strided_slice %427 {offsets = [0, 32], sizes = [8, 32], strides = [1, 1]} : vector<8x64xf32> to vector<8x32xf32>
    %430 = vector.extract_strided_slice %39 {offsets = [0, 64], sizes = [8, 32], strides = [1, 1]} : vector<8x96xf32> to vector<8x32xf32>
    %431 = vector.extract_strided_slice %419 {offsets = [0, 64], sizes = [8, 32], strides = [1, 1]} : vector<8x96xf32> to vector<8x32xf32>
    %432 = arith.mulf %428, %431 : vector<8x32xf32>
    %433 = arith.addf %430, %432 : vector<8x32xf32>
    %434 = math.tanh %433 : vector<8x32xf32>
    %cst_115 = arith.constant 1.000000e+00 : f32
    %435 = vector.broadcast %cst_115 : f32 to vector<8x32xf32>
    %436 = arith.subf %435, %429 : vector<8x32xf32>
    %437 = arith.mulf %436, %434 : vector<8x32xf32>
    %438 = arith.mulf %429, %383 : vector<8x32xf32>
    %439 = arith.addf %437, %438 : vector<8x32xf32>
    %440 = vector.shape_cast %58 : vector<8x1xi1> to vector<8x1xi1>
    %441 = vector.broadcast %440 : vector<8x1xi1> to vector<8x32xi1>
    %442 = arith.select %441, %439, %383 : vector<8x32xi1>, vector<8x32xf32>
    %443 = tpu.concatenate %442, %412 in 1 : vector<8x32xf32>, vector<8x32xf32> -> vector<8x64xf32>
    %c0_116 = arith.constant 0 : index
    %c0_117 = arith.constant 0 : index
    %c0_118 = arith.constant 0 : index
    %444 = vector.load %arg6[%c0_116, %c0_117, %c0_118] : memref<1x64x128xf32, #tpu.memory_space<vmem>>, vector<1x64x128xf32>
    %445 = vector.shape_cast %444 : vector<1x64x128xf32> to vector<64x128xf32>
    %cst_119 = arith.constant dense<0.000000e+00> : vector<8x128xf32>
    %446 = tpu.matmul %443, %445, %cst_119 {dimension_numbers = #tpu.dot_dimension_numbers<[1], [0], [0], [1], [0, 0, 1, 1], [], []>} : vector<8x64xf32>, vector<64x128xf32>, vector<8x128xf32> -> vector<8x128xf32>
    %c0_120 = arith.constant 0 : index
    %c0_121 = arith.constant 0 : index
    %c0_122 = arith.constant 0 : index
    %447 = vector.load %arg7[%c0_120, %c0_121, %c0_122] : memref<1x1x128xf32, #tpu.memory_space<vmem>>, vector<1x1x128xf32>
    %448 = vector.shape_cast %447 : vector<1x1x128xf32> to vector<1x128xf32>
    %449 = vector.broadcast %448 : vector<1x128xf32> to vector<8x128xf32>
    %450 = arith.addf %446, %449 : vector<8x128xf32>
    %451 = vector.extract_strided_slice %450 {offsets = [0, 0], sizes = [8, 64], strides = [1, 1]} : vector<8x128xf32> to vector<8x64xf32>
    %452 = arith.negf %451 : vector<8x64xf32>
    %453 = math.exp %452 : vector<8x64xf32>
    %cst_123 = arith.constant 1.000000e+00 : f32
    %454 = vector.broadcast %cst_123 : f32 to vector<8x64xf32>
    %455 = arith.addf %454, %453 : vector<8x64xf32>
    %456 = arith.divf %454, %455 : vector<8x64xf32>
    %457 = vector.extract_strided_slice %456 {offsets = [0, 0], sizes = [8, 32], strides = [1, 1]} : vector<8x64xf32> to vector<8x32xf32>
    %458 = vector.extract_strided_slice %456 {offsets = [0, 32], sizes = [8, 32], strides = [1, 1]} : vector<8x64xf32> to vector<8x32xf32>
    %459 = vector.extract_strided_slice %450 {offsets = [0, 64], sizes = [8, 32], strides = [1, 1]} : vector<8x128xf32> to vector<8x32xf32>
    %460 = vector.extract_strided_slice %450 {offsets = [0, 96], sizes = [8, 32], strides = [1, 1]} : vector<8x128xf32> to vector<8x32xf32>
    %461 = arith.mulf %457, %460 : vector<8x32xf32>
    %462 = arith.addf %459, %461 : vector<8x32xf32>
    %463 = math.tanh %462 : vector<8x32xf32>
    %cst_124 = arith.constant 1.000000e+00 : f32
    %464 = vector.broadcast %cst_124 : f32 to vector<8x32xf32>
    %465 = arith.subf %464, %458 : vector<8x32xf32>
    %466 = arith.mulf %465, %463 : vector<8x32xf32>
    %467 = arith.mulf %458, %412 : vector<8x32xf32>
    %468 = arith.addf %466, %467 : vector<8x32xf32>
    %469 = vector.shape_cast %58 : vector<8x1xi1> to vector<8x1xi1>
    %470 = vector.broadcast %469 : vector<8x1xi1> to vector<8x32xi1>
    %471 = arith.select %470, %468, %412 : vector<8x32xi1>, vector<8x32xf32>
    %cst_125 = arith.constant 0.000000e+00 : f32
    %472 = vector.shape_cast %58 : vector<8x1xi1> to vector<8x1xi1>
    %473 = vector.broadcast %472 : vector<8x1xi1> to vector<8x32xi1>
    %474 = vector.broadcast %cst_125 : f32 to vector<8x32xf32>
    %475 = arith.select %473, %471, %474 : vector<8x32xi1>, vector<8x32xf32>
    %cst_126 = arith.constant dense<0.000000e+00> : vector<8x96xf32>
    %476 = tpu.matmul %442, %3, %cst_126 {dimension_numbers = #tpu.dot_dimension_numbers<[1], [0], [0], [1], [0, 0, 1, 1], [], []>} : vector<8x32xf32>, vector<32x96xf32>, vector<8x96xf32> -> vector<8x96xf32>
    %477 = vector.broadcast %4 : vector<1x96xf32> to vector<8x96xf32>
    %478 = arith.addf %476, %477 : vector<8x96xf32>
    %479 = vector.extract_strided_slice %44 {offsets = [0, 0], sizes = [8, 64], strides = [1, 1]} : vector<8x96xf32> to vector<8x64xf32>
    %480 = vector.extract_strided_slice %478 {offsets = [0, 0], sizes = [8, 64], strides = [1, 1]} : vector<8x96xf32> to vector<8x64xf32>
    %481 = arith.addf %479, %480 : vector<8x64xf32>
    %482 = arith.negf %481 : vector<8x64xf32>
    %483 = math.exp %482 : vector<8x64xf32>
    %cst_127 = arith.constant 1.000000e+00 : f32
    %484 = vector.broadcast %cst_127 : f32 to vector<8x64xf32>
    %485 = arith.addf %484, %483 : vector<8x64xf32>
    %486 = arith.divf %484, %485 : vector<8x64xf32>
    %487 = vector.extract_strided_slice %486 {offsets = [0, 0], sizes = [8, 32], strides = [1, 1]} : vector<8x64xf32> to vector<8x32xf32>
    %488 = vector.extract_strided_slice %486 {offsets = [0, 32], sizes = [8, 32], strides = [1, 1]} : vector<8x64xf32> to vector<8x32xf32>
    %489 = vector.extract_strided_slice %44 {offsets = [0, 64], sizes = [8, 32], strides = [1, 1]} : vector<8x96xf32> to vector<8x32xf32>
    %490 = vector.extract_strided_slice %478 {offsets = [0, 64], sizes = [8, 32], strides = [1, 1]} : vector<8x96xf32> to vector<8x32xf32>
    %491 = arith.mulf %487, %490 : vector<8x32xf32>
    %492 = arith.addf %489, %491 : vector<8x32xf32>
    %493 = math.tanh %492 : vector<8x32xf32>
    %cst_128 = arith.constant 1.000000e+00 : f32
    %494 = vector.broadcast %cst_128 : f32 to vector<8x32xf32>
    %495 = arith.subf %494, %488 : vector<8x32xf32>
    %496 = arith.mulf %495, %493 : vector<8x32xf32>
    %497 = arith.mulf %488, %442 : vector<8x32xf32>
    %498 = arith.addf %496, %497 : vector<8x32xf32>
    %499 = vector.shape_cast %60 : vector<8x1xi1> to vector<8x1xi1>
    %500 = vector.broadcast %499 : vector<8x1xi1> to vector<8x32xi1>
    %501 = arith.select %500, %498, %442 : vector<8x32xi1>, vector<8x32xf32>
    %502 = tpu.concatenate %501, %471 in 1 : vector<8x32xf32>, vector<8x32xf32> -> vector<8x64xf32>
    %c0_129 = arith.constant 0 : index
    %c0_130 = arith.constant 0 : index
    %c0_131 = arith.constant 0 : index
    %503 = vector.load %arg6[%c0_129, %c0_130, %c0_131] : memref<1x64x128xf32, #tpu.memory_space<vmem>>, vector<1x64x128xf32>
    %504 = vector.shape_cast %503 : vector<1x64x128xf32> to vector<64x128xf32>
    %cst_132 = arith.constant dense<0.000000e+00> : vector<8x128xf32>
    %505 = tpu.matmul %502, %504, %cst_132 {dimension_numbers = #tpu.dot_dimension_numbers<[1], [0], [0], [1], [0, 0, 1, 1], [], []>} : vector<8x64xf32>, vector<64x128xf32>, vector<8x128xf32> -> vector<8x128xf32>
    %c0_133 = arith.constant 0 : index
    %c0_134 = arith.constant 0 : index
    %c0_135 = arith.constant 0 : index
    %506 = vector.load %arg7[%c0_133, %c0_134, %c0_135] : memref<1x1x128xf32, #tpu.memory_space<vmem>>, vector<1x1x128xf32>
    %507 = vector.shape_cast %506 : vector<1x1x128xf32> to vector<1x128xf32>
    %508 = vector.broadcast %507 : vector<1x128xf32> to vector<8x128xf32>
    %509 = arith.addf %505, %508 : vector<8x128xf32>
    %510 = vector.extract_strided_slice %509 {offsets = [0, 0], sizes = [8, 64], strides = [1, 1]} : vector<8x128xf32> to vector<8x64xf32>
    %511 = arith.negf %510 : vector<8x64xf32>
    %512 = math.exp %511 : vector<8x64xf32>
    %cst_136 = arith.constant 1.000000e+00 : f32
    %513 = vector.broadcast %cst_136 : f32 to vector<8x64xf32>
    %514 = arith.addf %513, %512 : vector<8x64xf32>
    %515 = arith.divf %513, %514 : vector<8x64xf32>
    %516 = vector.extract_strided_slice %515 {offsets = [0, 0], sizes = [8, 32], strides = [1, 1]} : vector<8x64xf32> to vector<8x32xf32>
    %517 = vector.extract_strided_slice %515 {offsets = [0, 32], sizes = [8, 32], strides = [1, 1]} : vector<8x64xf32> to vector<8x32xf32>
    %518 = vector.extract_strided_slice %509 {offsets = [0, 64], sizes = [8, 32], strides = [1, 1]} : vector<8x128xf32> to vector<8x32xf32>
    %519 = vector.extract_strided_slice %509 {offsets = [0, 96], sizes = [8, 32], strides = [1, 1]} : vector<8x128xf32> to vector<8x32xf32>
    %520 = arith.mulf %516, %519 : vector<8x32xf32>
    %521 = arith.addf %518, %520 : vector<8x32xf32>
    %522 = math.tanh %521 : vector<8x32xf32>
    %cst_137 = arith.constant 1.000000e+00 : f32
    %523 = vector.broadcast %cst_137 : f32 to vector<8x32xf32>
    %524 = arith.subf %523, %517 : vector<8x32xf32>
    %525 = arith.mulf %524, %522 : vector<8x32xf32>
    %526 = arith.mulf %517, %471 : vector<8x32xf32>
    %527 = arith.addf %525, %526 : vector<8x32xf32>
    %528 = vector.shape_cast %60 : vector<8x1xi1> to vector<8x1xi1>
    %529 = vector.broadcast %528 : vector<8x1xi1> to vector<8x32xi1>
    %530 = arith.select %529, %527, %471 : vector<8x32xi1>, vector<8x32xf32>
    %cst_138 = arith.constant 0.000000e+00 : f32
    %531 = vector.shape_cast %60 : vector<8x1xi1> to vector<8x1xi1>
    %532 = vector.broadcast %531 : vector<8x1xi1> to vector<8x32xi1>
    %533 = vector.broadcast %cst_138 : f32 to vector<8x32xf32>
    %534 = arith.select %532, %530, %533 : vector<8x32xi1>, vector<8x32xf32>
    %535 = tpu.concatenate %121, %180, %239, %298, %357, %416, %475, %534 in 1 : vector<8x32xf32>, vector<8x32xf32>, vector<8x32xf32>, vector<8x32xf32>, vector<8x32xf32>, vector<8x32xf32>, vector<8x32xf32>, vector<8x32xf32> -> vector<8x256xf32>
    %c0_139 = arith.constant 0 : index
    %c0_140 = arith.constant 0 : index
    %536 = vector.load %arg8[%c0_139, %c0_140] : memref<8x256xf32, #tpu.memory_space<vmem>>, vector<8x256xf32>
    tpu.vector_store %arg8[%c0_139, %c0_140], %535 {strides = array<i32>} : memref<8x256xf32, #tpu.memory_space<vmem>>, vector<8x256xf32>,
    %c0_141 = arith.constant 0 : index
    %c0_142 = arith.constant 0 : index
    %c0_143 = arith.constant 0 : index
    %537 = vector.load %arg9[%c0_141, %c0_142, %c0_143] : memref<2x8x32xf32, #tpu.memory_space<vmem>>, vector<1x8x32xf32>
    %538 = vector.shape_cast %537 : vector<1x8x32xf32> to vector<8x32xf32>
    %539 = vector.shape_cast %501 : vector<8x32xf32> to vector<1x8x32xf32>
    tpu.vector_store %arg9[%c0_141, %c0_142, %c0_143], %539 {strides = array<i32>} : memref<2x8x32xf32, #tpu.memory_space<vmem>>, vector<1x8x32xf32>,
    %c1_144 = arith.constant 1 : index
    %c0_145 = arith.constant 0 : index
    %c0_146 = arith.constant 0 : index
    %540 = vector.load %arg9[%c1_144, %c0_145, %c0_146] : memref<2x8x32xf32, #tpu.memory_space<vmem>>, vector<1x8x32xf32>
    %541 = vector.shape_cast %540 : vector<1x8x32xf32> to vector<8x32xf32>
    %542 = vector.shape_cast %530 : vector<8x32xf32> to vector<1x8x32xf32>
    tpu.vector_store %arg9[%c1_144, %c0_145, %c0_146], %542 {strides = array<i32>} : memref<2x8x32xf32, #tpu.memory_space<vmem>>, vector<1x8x32xf32>,
    return
  }
}

</mosaic_0001>

<llo_original>
// kernel: tpu_custom_call.1
$region0: #{tpu_custom_call.1}
  #allocation0 [shape = 'u32[]', space=smem, size = 0x4, offset = 0x4, fixed_abs, tag = 'smem constant byte address 0x4 - core index']
  #allocation1 [shape = 'u32[144,128]{1,0:T(1,128)}', space=vmem, size = 0x12000, scoped, tag = 'internal scratch']
  %s0 = inlined_call_operand.hbm [shape: f32[8,8,32], index: 0, kind: input, shape index: {}]
  %s1 = inlined_call_operand.vmem [shape: s32[8,1], index: 1, kind: input, shape index: {}]
  %s2 = inlined_call_operand.hbm [shape: f32[32,96], index: 2, kind: input, shape index: {}]
  %s3 = inlined_call_operand.vmem [shape: f32[1,96], index: 3, kind: input, shape index: {}]
  %s4 = inlined_call_operand.hbm [shape: f32[32,96], index: 4, kind: input, shape index: {}]
  %s5 = inlined_call_operand.vmem [shape: f32[1,96], index: 5, kind: input, shape index: {}]
  %s6 = inlined_call_operand.hbm [shape: f32[1,64,128], index: 6, kind: input, shape index: {}]
  %s7 = inlined_call_operand.vmem [shape: f32[1,1,128], index: 7, kind: input, shape index: {}]
  %s8 = inlined_call_operand.hbm [shape: f32[8,256], index: 8, kind: output, shape index: {0}]
  %s9 = inlined_call_operand.hbm [shape: f32[2,8,32], index: 9, kind: output, shape index: {1}]
  %10 = xla_tuple %s8, %s9
  %s11 = sld [smem:[#allocation0]]
  $region66: #{tpu_custom_call.1} parent=0
    _
  %s13 = ssub.s32 1, %s11
  %s14 = scalar_select 0, %s13, %s11
  $region1: #{tpu_custom_call.1} parent=0
    #allocation2 [shape = 'u8[32768]{0}', space=vmem, size = 0x8000, scoped, tag = 'input window, operand 0, single buffered']
    #allocation3 [shape = 's32[1]{0}', space=sflag, size = 0x4, scoped, tag = 'scoped memory for tpu_custom_call.1']
    #allocation4 [shape = 's32[1]{0}', space=sflag, size = 0x4, scoped, tag = 'scoped memory for tpu_custom_call.1']
    #allocation5 [shape = 'u8[16384]{0}', space=vmem, size = 0x4000, scoped, tag = 'input window, operand 2, single buffered']
    #allocation6 [shape = 's32[1]{0}', space=sflag, size = 0x4, scoped, tag = 'scoped memory for tpu_custom_call.1']
    #allocation7 [shape = 'u8[16384]{0}', space=vmem, size = 0x4000, scoped, tag = 'input window, operand 4, single buffered']
    #allocation8 [shape = 'u8[32768]{0}', space=vmem, size = 0x8000, scoped, tag = 'input window, operand 6, single buffered']
    #allocation9 [shape = 's32[1]{0}', space=sflag, size = 0x4, scoped, tag = 'scoped memory for tpu_custom_call.1']
    #allocation10 [shape = 'u8[8192]{0}', space=vmem, size = 0x2000, scoped, tag = 'output window, operand 0, single buffered']
    #allocation11 [shape = 'u8[8192]{0}', space=vmem, size = 0x2000, scoped, tag = 'output window, operand 1, single buffered']
    #allocation12 [shape = 's32[1]{0}', space=sflag, size = 0x4, scoped, tag = 'scoped memory for tpu_custom_call.1']
    %15 = vsyncpa [#allocation3], 0
    %16 = vsyncpa [#allocation6], 0
    %17 = vsyncpa [#allocation9], 0
    %18 = vsyncpa [#allocation4], 0
    %19 = vsyncpa [#allocation12], 0
    // Predicated region
    $region2: #{tpu_custom_call.1} parent=1 // pred_check
      _
    $region3: #{tpu_custom_call.1} parent=1 // pred_check_branch
      %21 = sbr.rel (0) target = $region5
    $region4: #{tpu_custom_call.1} parent=1 // pred_region
      %s23 = ssub.s32 1024, 1024
      %24 = vsyncadd [#allocation3], %s23
      %s25 = sshll.u32 [#allocation2], 4
      %s26 = int_to_ptr.vmem [resolvable:$true] %s25
      %31 = dma.hbm_to_vmem [thread:$0]  %s0, 1024, %s26, [#allocation3], 128, 128, 8
    $region5: #{tpu_custom_call.1} parent=1 // pred_fallthru
      _
    // Predicated region
    $region6: #{tpu_custom_call.1} parent=1 // pred_check
      _
    $region7: #{tpu_custom_call.1} parent=1 // pred_check_branch
      %33 = sbr.rel (0) target = $region9
    $region8: #{tpu_custom_call.1} parent=1 // pred_region
      _
    $region9: #{tpu_custom_call.1} parent=1 // pred_fallthru
      _
    // Predicated region
    $region10: #{tpu_custom_call.1} parent=1 // pred_check
      _
    $region11: #{tpu_custom_call.1} parent=1 // pred_check_branch
      %35 = sbr.rel (0) target = $region13
    $region12: #{tpu_custom_call.1} parent=1 // pred_region
      %s37 = ssub.s32 512, 512
      %38 = vsyncadd [#allocation6], %s37
      %s39 = sshll.u32 [#allocation5], 4
      %s40 = int_to_ptr.vmem [resolvable:$true] %s39
      %45 = dma.hbm_to_vmem [thread:$0]  %s2, 512, %s40, [#allocation6], 128, 128, 8
    $region13: #{tpu_custom_call.1} parent=1 // pred_fallthru
      _
    // Predicated region
    $region14: #{tpu_custom_call.1} parent=1 // pred_check
      _
    $region15: #{tpu_custom_call.1} parent=1 // pred_check_branch
      %47 = sbr.rel (0) target = $region17
    $region16: #{tpu_custom_call.1} parent=1 // pred_region
      _
    $region17: #{tpu_custom_call.1} parent=1 // pred_fallthru
      _
    // Predicated region
    $region18: #{tpu_custom_call.1} parent=1 // pred_check
      _
    $region19: #{tpu_custom_call.1} parent=1 // pred_check_branch
      %49 = sbr.rel (0) target = $region21
    $region20: #{tpu_custom_call.1} parent=1 // pred_region
      %s51 = ssub.s32 512, 512
      %52 = vsyncadd [#allocation6], %s51
      %s53 = sshll.u32 [#allocation7], 4
      %s54 = int_to_ptr.vmem [resolvable:$true] %s53
      %59 = dma.hbm_to_vmem [thread:$0]  %s4, 512, %s54, [#allocation6], 128, 128, 8
    $region21: #{tpu_custom_call.1} parent=1 // pred_fallthru
      _
    // Predicated region
    $region22: #{tpu_custom_call.1} parent=1 // pred_check
      _
    $region23: #{tpu_custom_call.1} parent=1 // pred_check_branch
      %61 = sbr.rel (0) target = $region25
    $region24: #{tpu_custom_call.1} parent=1 // pred_region
      _
    $region25: #{tpu_custom_call.1} parent=1 // pred_fallthru
      _
    // Predicated region
    $region26: #{tpu_custom_call.1} parent=1 // pred_check
      _
    $region27: #{tpu_custom_call.1} parent=1 // pred_check_branch
      %63 = sbr.rel (0) target = $region29
    $region28: #{tpu_custom_call.1} parent=1 // pred_region
      %s65 = ssub.s32 1024, 1024
      %66 = vsyncadd [#allocation9], %s65
      %s67 = sshll.u32 [#allocation8], 4
      %s68 = int_to_ptr.vmem [resolvable:$true] %s67
      %73 = dma.hbm_to_vmem [thread:$0]  %s6, 1024, %s68, [#allocation9], 128, 128, 8
    $region29: #{tpu_custom_call.1} parent=1 // pred_fallthru
      _
    // Predicated region
    $region30: #{tpu_custom_call.1} parent=1 // pred_check
      _
    $region31: #{tpu_custom_call.1} parent=1 // pred_check_branch
      %75 = sbr.rel (0) target = $region33
    $region32: #{tpu_custom_call.1} parent=1 // pred_region
      _
    $region33: #{tpu_custom_call.1} parent=1 // pred_fallthru
      _
    // Predicated region
    $region34: #{tpu_custom_call.1} parent=1 // pred_check
      _
    $region35: #{tpu_custom_call.1} parent=1 // pred_check_branch
      %77 = sbr.rel (0) target = $region37
    $region36: #{tpu_custom_call.1} parent=1 // pred_region
      %78 = dma.done [#allocation3], 1024
    $region37: #{tpu_custom_call.1} parent=1 // pred_fallthru
      _
    // Predicated region
    $region38: #{tpu_custom_call.1} parent=1 // pred_check
      _
    $region39: #{tpu_custom_call.1} parent=1 // pred_check_branch
      %80 = sbr.rel (0) target = $region41
    $region40: #{tpu_custom_call.1} parent=1 // pred_region
      %81 = dma.done [#allocation6], 512
    $region41: #{tpu_custom_call.1} parent=1 // pred_fallthru
      _
    // Predicated region
    $region42: #{tpu_custom_call.1} parent=1 // pred_check
      _
    $region43: #{tpu_custom_call.1} parent=1 // pred_check_branch
      %83 = sbr.rel (0) target = $region45
    $region44: #{tpu_custom_call.1} parent=1 // pred_region
      %84 = dma.done [#allocation6], 512
    $region45: #{tpu_custom_call.1} parent=1 // pred_fallthru
      _
    // Predicated region
    $region46: #{tpu_custom_call.1} parent=1 // pred_check
      _
    $region47: #{tpu_custom_call.1} parent=1 // pred_check_branch
      %86 = sbr.rel (0) target = $region49
    $region48: #{tpu_custom_call.1} parent=1 // pred_region
      %87 = dma.done [#allocation9], 1024
    $region49: #{tpu_custom_call.1} parent=1 // pred_fallthru
      _
    %v88 = vld [vmem:[%s1] sm:$0xff]
    %v89 = vld [vmem:[#allocation5] sm:$0xff]
    %v90 = vld [vmem:[#allocation5 + $0x8] sm:$0xff]
    %v91 = vld [vmem:[#allocation5 + $0x10] sm:$0xff]
    %v92 = vld [vmem:[#allocation5 + $0x18] sm:$0xff]
    %v93 = vld [vmem:[%s3] sm:$0x1]
    %v94 = vld [vmem:[#allocation7] sm:$0xff]
    %v95 = vld [vmem:[#allocation7 + $0x8] sm:$0xff]
    %v96 = vld [vmem:[#allocation7 + $0x10] sm:$0xff]
    %v97 = vld [vmem:[#allocation7 + $0x18] sm:$0xff]
    %v98 = vld [vmem:[%s5] sm:$0x1]
    %v99 = vld [vmem:[#allocation2] sm:$0xff]
    %v101 = vlaneseq
    %v102 = vshrl.u32 %v101, 7
    %v103 = vsub.s32 0, %v102
    %v104 = vrot.slane %v93, %v103
    %vm106 = vcmask 261120
    %v108 = vsel %vm106, %v99, 0
    %110 = vmatprep.subr.mxu0 0.0
    %111 = vmatpush1.msra.mxu0 0.0
    %112 = vmatprep.subr.mxu0 0.0
    %113 = vmatpush1.msra.mxu0 0.0
    %114 = vmatprep.subr.mxu0 0.0
    %115 = vmatpush1.msra.mxu0 0.0
    %116 = vmatprep.subr.mxu0 0.0
    %117 = vmatpush1.msra.mxu0 0.0
    %118 = vmatprep.subr.mxu0 0.0
    %119 = vmatpush1.msra.mxu0 0.0
    %120 = vmatprep.subr.mxu0 0.0
    %121 = vmatpush1.msra.mxu0 0.0
    %122 = vmatprep.subr.mxu0 0.0
    %123 = vmatpush1.msra.mxu0 0.0
    %124 = vmatprep.subr.mxu0 0.0
    %125 = vmatpush1.msra.mxu0 0.0
    %126 = vmatprep.subr.mxu0 0.0
    %127 = vmatpush1.msra.mxu0 0.0
    %128 = vmatprep.subr.mxu0 0.0
    %129 = vmatpush1.msra.mxu0 0.0
    %130 = vmatprep.subr.mxu0 0.0
    %131 = vmatpush1.msra.mxu0 0.0
    %132 = vmatprep.subr.mxu0 0.0
    %133 = vmatpush1.msra.mxu0 0.0
    %134 = vmatprep.subr.mxu0 0.0
    %135 = vmatpush1.msra.mxu0 %v92
    %136 = vmatprep.subr.mxu0 0.0
    %137 = vmatpush1.msra.mxu0 %v91
    %138 = vmatprep.subr.mxu0 0.0
    %139 = vmatpush1.msra.mxu0 %v90
    %140 = vmatprep.subr.mxu0 0.0
    %141 = vmatpush1.msra.mxu0 %v89
    %142 = vmatprep.subr.mxu0 0.0
    %143 = vmatpush2.msra.mxu0 0.0
    %144 = vmatprep.subr.mxu0 0.0
    %145 = vmatpush2.msra.mxu0 0.0
    %146 = vmatprep.subr.mxu0 0.0
    %147 = vmatpush2.msra.mxu0 0.0
    %148 = vmatprep.subr.mxu0 0.0
    %149 = vmatpush2.msra.mxu0 0.0
    %150 = vmatprep.subr.mxu0 0.0
    %151 = vmatpush2.msra.mxu0 0.0
    %152 = vmatprep.subr.mxu0 0.0
    %153 = vmatpush2.msra.mxu0 0.0
    %154 = vmatprep.subr.mxu0 0.0
    %155 = vmatpush2.msra.mxu0 0.0
    %156 = vmatprep.subr.mxu0 0.0
    %157 = vmatpush2.msra.mxu0 0.0
    %158 = vmatprep.subr.mxu0 0.0
    %159 = vmatpush2.msra.mxu0 0.0
    %160 = vmatprep.subr.mxu0 0.0
    %161 = vmatpush2.msra.mxu0 0.0
    %162 = vmatprep.subr.mxu0 0.0
    %163 = vmatpush2.msra.mxu0 0.0
    %164 = vmatprep.subr.mxu0 0.0
    %165 = vmatpush2.msra.mxu0 0.0
    %166 = vmatprep.subr.mxu0 0.0
    %167 = vmatpush2.msra.mxu0 0.0
    %168 = vmatprep.subr.mxu0 0.0
    %169 = vmatpush2.msra.mxu0 0.0
    %170 = vmatprep.subr.mxu0 0.0
    %171 = vmatpush2.msra.mxu0 0.0
    %172 = vmatprep.subr.mxu0 0.0
    %173 = vmatpush2.msra.mxu0 0.0
    %174 = vmatprep.mubr.f32.mxu0 0.0
    %175 = vmatmul.mubr.f32.gmra.mxu0 %v108
    %v176 = vpop.f32.mrf.mxu0
    %v177 = vadd.f32 %v104, %v176
    %v178 = vpop.f32.mrf.mxu0
    %179 = vdwg.mxu0
    %s180 = scalar_lea.vmem [#allocation2], 8
    %v181 = vld [vmem:[%s180] sm:$0xff]
    %v183 = vsel %vm106, %v181, 0
    %185 = vmatprep.subr.mxu0 0.0
    %186 = vmatpush1.msra.mxu0 0.0
    %187 = vmatprep.subr.mxu0 0.0
    %188 = vmatpush1.msra.mxu0 0.0
    %189 = vmatprep.subr.mxu0 0.0
    %190 = vmatpush1.msra.mxu0 0.0
    %191 = vmatprep.subr.mxu0 0.0
    %192 = vmatpush1.msra.mxu0 0.0
    %193 = vmatprep.subr.mxu0 0.0
    %194 = vmatpush1.msra.mxu0 0.0
    %195 = vmatprep.subr.mxu0 0.0
    %196 = vmatpush1.msra.mxu0 0.0
    %197 = vmatprep.subr.mxu0 0.0
    %198 = vmatpush1.msra.mxu0 0.0
    %199 = vmatprep.subr.mxu0 0.0
    %200 = vmatpush1.msra.mxu0 0.0
    %201 = vmatprep.subr.mxu0 0.0
    %202 = vmatpush1.msra.mxu0 0.0
    %203 = vmatprep.subr.mxu0 0.0
    %204 = vmatpush1.msra.mxu0 0.0
    %205 = vmatprep.subr.mxu0 0.0
    %206 = vmatpush1.msra.mxu0 0.0
    %207 = vmatprep.subr.mxu0 0.0
    %208 = vmatpush1.msra.mxu0 0.0
    %209 = vmatprep.subr.mxu0 0.0
    %210 = vmatpush1.msra.mxu0 %v92
    %211 = vmatprep.subr.mxu0 0.0
    %212 = vmatpush1.msra.mxu0 %v91
    %213 = vmatprep.subr.mxu0 0.0
    %214 = vmatpush1.msra.mxu0 %v90
    %215 = vmatprep.subr.mxu0 0.0
    %216 = vmatpush1.msra.mxu0 %v89
    %217 = vmatprep.subr.mxu0 0.0
    %218 = vmatpush2.msra.mxu0 0.0
    %219 = vmatprep.subr.mxu0 0.0
    %220 = vmatpush2.msra.mxu0 0.0
    %221 = vmatprep.subr.mxu0 0.0
    %222 = vmatpush2.msra.mxu0 0.0
    %223 = vmatprep.subr.mxu0 0.0
    %224 = vmatpush2.msra.mxu0 0.0
    %225 = vmatprep.subr.mxu0 0.0
    %226 = vmatpush2.msra.mxu0 0.0
    %227 = vmatprep.subr.mxu0 0.0
    %228 = vmatpush2.msra.mxu0 0.0
    %229 = vmatprep.subr.mxu0 0.0
    %230 = vmatpush2.msra.mxu0 0.0
    %231 = vmatprep.subr.mxu0 0.0
    %232 = vmatpush2.msra.mxu0 0.0
    %233 = vmatprep.subr.mxu0 0.0
    %234 = vmatpush2.msra.mxu0 0.0
    %235 = vmatprep.subr.mxu0 0.0
    %236 = vmatpush2.msra.mxu0 0.0
    %237 = vmatprep.subr.mxu0 0.0
    %238 = vmatpush2.msra.mxu0 0.0
    %239 = vmatprep.subr.mxu0 0.0
    %240 = vmatpush2.msra.mxu0 0.0
    %241 = vmatprep.subr.mxu0 0.0
    %242 = vmatpush2.msra.mxu0 0.0
    %243 = vmatprep.subr.mxu0 0.0
    %244 = vmatpush2.msra.mxu0 0.0
    %245 = vmatprep.subr.mxu0 0.0
    %246 = vmatpush2.msra.mxu0 0.0
    %247 = vmatprep.subr.mxu0 0.0
    %248 = vmatpush2.msra.mxu0 0.0
    %249 = vmatprep.mubr.f32.mxu0 0.0
    %250 = vmatmul.mubr.f32.gmra.mxu0 %v183
    %v251 = vpop.f32.mrf.mxu0
    %v252 = vadd.f32 %v104, %v251
    %v253 = vpop.f32.mrf.mxu0
    %254 = vdwg.mxu0
    %s255 = scalar_lea.vmem [#allocation2], 16
    %v256 = vld [vmem:[%s255] sm:$0xff]
    %v258 = vsel %vm106, %v256, 0
    %260 = vmatprep.subr.mxu0 0.0
    %261 = vmatpush1.msra.mxu0 0.0
    %262 = vmatprep.subr.mxu0 0.0
    %263 = vmatpush1.msra.mxu0 0.0
    %264 = vmatprep.subr.mxu0 0.0
    %265 = vmatpush1.msra.mxu0 0.0
    %266 = vmatprep.subr.mxu0 0.0
    %267 = vmatpush1.msra.mxu0 0.0
    %268 = vmatprep.subr.mxu0 0.0
    %269 = vmatpush1.msra.mxu0 0.0
    %270 = vmatprep.subr.mxu0 0.0
    %271 = vmatpush1.msra.mxu0 0.0
    %272 = vmatprep.subr.mxu0 0.0
    %273 = vmatpush1.msra.mxu0 0.0
    %274 = vmatprep.subr.mxu0 0.0
    %275 = vmatpush1.msra.mxu0 0.0
    %276 = vmatprep.subr.mxu0 0.0
    %277 = vmatpush1.msra.mxu0 0.0
    %278 = vmatprep.subr.mxu0 0.0
    %279 = vmatpush1.msra.mxu0 0.0
    %280 = vmatprep.subr.mxu0 0.0
    %281 = vmatpush1.msra.mxu0 0.0
    %282 = vmatprep.subr.mxu0 0.0
    %283 = vmatpush1.msra.mxu0 0.0
    %284 = vmatprep.subr.mxu0 0.0
    %285 = vmatpush1.msra.mxu0 %v92
    %286 = vmatprep.subr.mxu0 0.0
    %287 = vmatpush1.msra.mxu0 %v91
    %288 = vmatprep.subr.mxu0 0.0
    %289 = vmatpush1.msra.mxu0 %v90
    %290 = vmatprep.subr.mxu0 0.0
    %291 = vmatpush1.msra.mxu0 %v89
    %292 = vmatprep.subr.mxu0 0.0
    %293 = vmatpush2.msra.mxu0 0.0
    %294 = vmatprep.subr.mxu0 0.0
    %295 = vmatpush2.msra.mxu0 0.0
    %296 = vmatprep.subr.mxu0 0.0
    %297 = vmatpush2.msra.mxu0 0.0
    %298 = vmatprep.subr.mxu0 0.0
    %299 = vmatpush2.msra.mxu0 0.0
    %300 = vmatprep.subr.mxu0 0.0
    %301 = vmatpush2.msra.mxu0 0.0
    %302 = vmatprep.subr.mxu0 0.0
    %303 = vmatpush2.msra.mxu0 0.0
    %304 = vmatprep.subr.mxu0 0.0
    %305 = vmatpush2.msra.mxu0 0.0
    %306 = vmatprep.subr.mxu0 0.0
    %307 = vmatpush2.msra.mxu0 0.0
    %308 = vmatprep.subr.mxu0 0.0
    %309 = vmatpush2.msra.mxu0 0.0
    %310 = vmatprep.subr.mxu0 0.0
    %311 = vmatpush2.msra.mxu0 0.0
    %312 = vmatprep.subr.mxu0 0.0
    %313 = vmatpush2.msra.mxu0 0.0
    %314 = vmatprep.subr.mxu0 0.0
    %315 = vmatpush2.msra.mxu0 0.0
    %316 = vmatprep.subr.mxu0 0.0
    %317 = vmatpush2.msra.mxu0 0.0
    %318 = vmatprep.subr.mxu0 0.0
    %319 = vmatpush2.msra.mxu0 0.0
    %320 = vmatprep.subr.mxu0 0.0
    %321 = vmatpush2.msra.mxu0 0.0
    %322 = vmatprep.subr.mxu0 0.0
    %323 = vmatpush2.msra.mxu0 0.0
    %324 = vmatprep.mubr.f32.mxu0 0.0
    %325 = vmatmul.mubr.f32.gmra.mxu0 %v258
    %v326 = vpop.f32.mrf.mxu0
    %v327 = vadd.f32 %v104, %v326
    %v328 = vpop.f32.mrf.mxu0
    %329 = vdwg.mxu0
    %s330 = scalar_lea.vmem [#allocation2], 24
    %v331 = vld [vmem:[%s330] sm:$0xff]
    %v333 = vsel %vm106, %v331, 0
    %335 = vmatprep.subr.mxu0 0.0
    %336 = vmatpush1.msra.mxu0 0.0
    %337 = vmatprep.subr.mxu0 0.0
    %338 = vmatpush1.msra.mxu0 0.0
    %339 = vmatprep.subr.mxu0 0.0
    %340 = vmatpush1.msra.mxu0 0.0
    %341 = vmatprep.subr.mxu0 0.0
    %342 = vmatpush1.msra.mxu0 0.0
    %343 = vmatprep.subr.mxu0 0.0
    %344 = vmatpush1.msra.mxu0 0.0
    %345 = vmatprep.subr.mxu0 0.0
    %346 = vmatpush1.msra.mxu0 0.0
    %347 = vmatprep.subr.mxu0 0.0
    %348 = vmatpush1.msra.mxu0 0.0
    %349 = vmatprep.subr.mxu0 0.0
    %350 = vmatpush1.msra.mxu0 0.0
    %351 = vmatprep.subr.mxu0 0.0
    %352 = vmatpush1.msra.mxu0 0.0
    %353 = vmatprep.subr.mxu0 0.0
    %354 = vmatpush1.msra.mxu0 0.0
    %355 = vmatprep.subr.mxu0 0.0
    %356 = vmatpush1.msra.mxu0 0.0
    %357 = vmatprep.subr.mxu0 0.0
    %358 = vmatpush1.msra.mxu0 0.0
    %359 = vmatprep.subr.mxu0 0.0
    %360 = vmatpush1.msra.mxu0 %v92
    %361 = vmatprep.subr.mxu0 0.0
    %362 = vmatpush1.msra.mxu0 %v91
    %363 = vmatprep.subr.mxu0 0.0
    %364 = vmatpush1.msra.mxu0 %v90
    %365 = vmatprep.subr.mxu0 0.0
    %366 = vmatpush1.msra.mxu0 %v89
    %367 = vmatprep.subr.mxu0 0.0
    %368 = vmatpush2.msra.mxu0 0.0
    %369 = vmatprep.subr.mxu0 0.0
    %370 = vmatpush2.msra.mxu0 0.0
    %371 = vmatprep.subr.mxu0 0.0
    %372 = vmatpush2.msra.mxu0 0.0
    %373 = vmatprep.subr.mxu0 0.0
    %374 = vmatpush2.msra.mxu0 0.0
    %375 = vmatprep.subr.mxu0 0.0
    %376 = vmatpush2.msra.mxu0 0.0
    %377 = vmatprep.subr.mxu0 0.0
    %378 = vmatpush2.msra.mxu0 0.0
    %379 = vmatprep.subr.mxu0 0.0
    %380 = vmatpush2.msra.mxu0 0.0
    %381 = vmatprep.subr.mxu0 0.0
    %382 = vmatpush2.msra.mxu0 0.0
    %383 = vmatprep.subr.mxu0 0.0
    %384 = vmatpush2.msra.mxu0 0.0
    %385 = vmatprep.subr.mxu0 0.0
    %386 = vmatpush2.msra.mxu0 0.0
    %387 = vmatprep.subr.mxu0 0.0
    %388 = vmatpush2.msra.mxu0 0.0
    %389 = vmatprep.subr.mxu0 0.0
    %390 = vmatpush2.msra.mxu0 0.0
    %391 = vmatprep.subr.mxu0 0.0
    %392 = vmatpush2.msra.mxu0 0.0
    %393 = vmatprep.subr.mxu0 0.0
    %394 = vmatpush2.msra.mxu0 0.0
    %395 = vmatprep.subr.mxu0 0.0
    %396 = vmatpush2.msra.mxu0 0.0
    %397 = vmatprep.subr.mxu0 0.0
    %398 = vmatpush2.msra.mxu0 0.0
    %399 = vmatprep.mubr.f32.mxu0 0.0
    %400 = vmatmul.mubr.f32.gmra.mxu0 %v333
    %v401 = vpop.f32.mrf.mxu0
    %v402 = vadd.f32 %v104, %v401
    %v403 = vpop.f32.mrf.mxu0
    %404 = vdwg.mxu0
    %s405 = scalar_lea.vmem [#allocation2], 32
    %v406 = vld [vmem:[%s405] sm:$0xff]
    %v408 = vsel %vm106, %v406, 0
    %410 = vmatprep.subr.mxu0 0.0
    %411 = vmatpush1.msra.mxu0 0.0
    %412 = vmatprep.subr.mxu0 0.0
    %413 = vmatpush1.msra.mxu0 0.0
    %414 = vmatprep.subr.mxu0 0.0
    %415 = vmatpush1.msra.mxu0 0.0
    %416 = vmatprep.subr.mxu0 0.0
    %417 = vmatpush1.msra.mxu0 0.0
    %418 = vmatprep.subr.mxu0 0.0
    %419 = vmatpush1.msra.mxu0 0.0
    %420 = vmatprep.subr.mxu0 0.0
    %421 = vmatpush1.msra.mxu0 0.0
    %422 = vmatprep.subr.mxu0 0.0
    %423 = vmatpush1.msra.mxu0 0.0
    %424 = vmatprep.subr.mxu0 0.0
    %425 = vmatpush1.msra.mxu0 0.0
    %426 = vmatprep.subr.mxu0 0.0
    %427 = vmatpush1.msra.mxu0 0.0
    %428 = vmatprep.subr.mxu0 0.0
    %429 = vmatpush1.msra.mxu0 0.0
    %430 = vmatprep.subr.mxu0 0.0
    %431 = vmatpush1.msra.mxu0 0.0
    %432 = vmatprep.subr.mxu0 0.0
    %433 = vmatpush1.msra.mxu0 0.0
    %434 = vmatprep.subr.mxu0 0.0
    %435 = vmatpush1.msra.mxu0 %v92
    %436 = vmatprep.subr.mxu0 0.0
    %437 = vmatpush1.msra.mxu0 %v91
    %438 = vmatprep.subr.mxu0 0.0
    %439 = vmatpush1.msra.mxu0 %v90
    %440 = vmatprep.subr.mxu0 0.0
    %441 = vmatpush1.msra.mxu0 %v89
    %442 = vmatprep.subr.mxu0 0.0
    %443 = vmatpush2.msra.mxu0 0.0
    %444 = vmatprep.subr.mxu0 0.0
    %445 = vmatpush2.msra.mxu0 0.0
    %446 = vmatprep.subr.mxu0 0.0
    %447 = vmatpush2.msra.mxu0 0.0
    %448 = vmatprep.subr.mxu0 0.0
    %449 = vmatpush2.msra.mxu0 0.0
    %450 = vmatprep.subr.mxu0 0.0
    %451 = vmatpush2.msra.mxu0 0.0
    %452 = vmatprep.subr.mxu0 0.0
    %453 = vmatpush2.msra.mxu0 0.0
    %454 = vmatprep.subr.mxu0 0.0
    %455 = vmatpush2.msra.mxu0 0.0
    %456 = vmatprep.subr.mxu0 0.0
    %457 = vmatpush2.msra.mxu0 0.0
    %458 = vmatprep.subr.mxu0 0.0
    %459 = vmatpush2.msra.mxu0 0.0
    %460 = vmatprep.subr.mxu0 0.0
    %461 = vmatpush2.msra.mxu0 0.0
    %462 = vmatprep.subr.mxu0 0.0
    %463 = vmatpush2.msra.mxu0 0.0
    %464 = vmatprep.subr.mxu0 0.0
    %465 = vmatpush2.msra.mxu0 0.0
    %466 = vmatprep.subr.mxu0 0.0
    %467 = vmatpush2.msra.mxu0 0.0
    %468 = vmatprep.subr.mxu0 0.0
    %469 = vmatpush2.msra.mxu0 0.0
    %470 = vmatprep.subr.mxu0 0.0
    %471 = vmatpush2.msra.mxu0 0.0
    %472 = vmatprep.subr.mxu0 0.0
    %473 = vmatpush2.msra.mxu0 0.0
    %474 = vmatprep.mubr.f32.mxu0 0.0
    %475 = vmatmul.mubr.f32.gmra.mxu0 %v408
    %v476 = vpop.f32.mrf.mxu0
    %v477 = vadd.f32 %v104, %v476
    %v478 = vpop.f32.mrf.mxu0
    %479 = vdwg.mxu0
    %s480 = scalar_lea.vmem [#allocation2], 40
    %v481 = vld [vmem:[%s480] sm:$0xff]
    %v483 = vsel %vm106, %v481, 0
    %485 = vmatprep.subr.mxu0 0.0
    %486 = vmatpush1.msra.mxu0 0.0
    %487 = vmatprep.subr.mxu0 0.0
    %488 = vmatpush1.msra.mxu0 0.0
    %489 = vmatprep.subr.mxu0 0.0
    %490 = vmatpush1.msra.mxu0 0.0
    %491 = vmatprep.subr.mxu0 0.0
    %492 = vmatpush1.msra.mxu0 0.0
    %493 = vmatprep.subr.mxu0 0.0
    %494 = vmatpush1.msra.mxu0 0.0
    %495 = vmatprep.subr.mxu0 0.0
    %496 = vmatpush1.msra.mxu0 0.0
    %497 = vmatprep.subr.mxu0 0.0
    %498 = vmatpush1.msra.mxu0 0.0
    %499 = vmatprep.subr.mxu0 0.0
    %500 = vmatpush1.msra.mxu0 0.0
    %501 = vmatprep.subr.mxu0 0.0
    %502 = vmatpush1.msra.mxu0 0.0
    %503 = vmatprep.subr.mxu0 0.0
    %504 = vmatpush1.msra.mxu0 0.0
    %505 = vmatprep.subr.mxu0 0.0
    %506 = vmatpush1.msra.mxu0 0.0
    %507 = vmatprep.subr.mxu0 0.0
    %508 = vmatpush1.msra.mxu0 0.0
    %509 = vmatprep.subr.mxu0 0.0
    %510 = vmatpush1.msra.mxu0 %v92
    %511 = vmatprep.subr.mxu0 0.0
    %512 = vmatpush1.msra.mxu0 %v91
    %513 = vmatprep.subr.mxu0 0.0
    %514 = vmatpush1.msra.mxu0 %v90
    %515 = vmatprep.subr.mxu0 0.0
    %516 = vmatpush1.msra.mxu0 %v89
    %517 = vmatprep.subr.mxu0 0.0
    %518 = vmatpush2.msra.mxu0 0.0
    %519 = vmatprep.subr.mxu0 0.0
    %520 = vmatpush2.msra.mxu0 0.0
    %521 = vmatprep.subr.mxu0 0.0
    %522 = vmatpush2.msra.mxu0 0.0
    %523 = vmatprep.subr.mxu0 0.0
    %524 = vmatpush2.msra.mxu0 0.0
    %525 = vmatprep.subr.mxu0 0.0
    %526 = vmatpush2.msra.mxu0 0.0
    %527 = vmatprep.subr.mxu0 0.0
    %528 = vmatpush2.msra.mxu0 0.0
    %529 = vmatprep.subr.mxu0 0.0
    %530 = vmatpush2.msra.mxu0 0.0
    %531 = vmatprep.subr.mxu0 0.0
    %532 = vmatpush2.msra.mxu0 0.0
    %533 = vmatprep.subr.mxu0 0.0
    %534 = vmatpush2.msra.mxu0 0.0
    %535 = vmatprep.subr.mxu0 0.0
    %536 = vmatpush2.msra.mxu0 0.0
    %537 = vmatprep.subr.mxu0 0.0
    %538 = vmatpush2.msra.mxu0 0.0
    %539 = vmatprep.subr.mxu0 0.0
    %540 = vmatpush2.msra.mxu0 0.0
    %541 = vmatprep.subr.mxu0 0.0
    %542 = vmatpush2.msra.mxu0 0.0
    %543 = vmatprep.subr.mxu0 0.0
    %544 = vmatpush2.msra.mxu0 0.0
    %545 = vmatprep.subr.mxu0 0.0
    %546 = vmatpush2.msra.mxu0 0.0
    %547 = vmatprep.subr.mxu0 0.0
    %548 = vmatpush2.msra.mxu0 0.0
    %549 = vmatprep.mubr.f32.mxu0 0.0
    %550 = vmatmul.mubr.f32.gmra.mxu0 %v483
    %v551 = vpop.f32.mrf.mxu0
    %v552 = vadd.f32 %v104, %v551
    %v553 = vpop.f32.mrf.mxu0
    %554 = vdwg.mxu0
    %s555 = scalar_lea.vmem [#allocation2], 48
    %v556 = vld [vmem:[%s555] sm:$0xff]
    %v558 = vsel %vm106, %v556, 0
    %560 = vmatprep.subr.mxu0 0.0
    %561 = vmatpush1.msra.mxu0 0.0
    %562 = vmatprep.subr.mxu0 0.0
    %563 = vmatpush1.msra.mxu0 0.0
    %564 = vmatprep.subr.mxu0 0.0
    %565 = vmatpush1.msra.mxu0 0.0
    %566 = vmatprep.subr.mxu0 0.0
    %567 = vmatpush1.msra.mxu0 0.0
    %568 = vmatprep.subr.mxu0 0.0
    %569 = vmatpush1.msra.mxu0 0.0
    %570 = vmatprep.subr.mxu0 0.0
    %571 = vmatpush1.msra.mxu0 0.0
    %572 = vmatprep.subr.mxu0 0.0
    %573 = vmatpush1.msra.mxu0 0.0
    %574 = vmatprep.subr.mxu0 0.0
    %575 = vmatpush1.msra.mxu0 0.0
    %576 = vmatprep.subr.mxu0 0.0
    %577 = vmatpush1.msra.mxu0 0.0
    %578 = vmatprep.subr.mxu0 0.0
    %579 = vmatpush1.msra.mxu0 0.0
    %580 = vmatprep.subr.mxu0 0.0
    %581 = vmatpush1.msra.mxu0 0.0
    %582 = vmatprep.subr.mxu0 0.0
    %583 = vmatpush1.msra.mxu0 0.0
    %584 = vmatprep.subr.mxu0 0.0
    %585 = vmatpush1.msra.mxu0 %v92
    %586 = vmatprep.subr.mxu0 0.0
    %587 = vmatpush1.msra.mxu0 %v91
    %588 = vmatprep.subr.mxu0 0.0
    %589 = vmatpush1.msra.mxu0 %v90
    %590 = vmatprep.subr.mxu0 0.0
    %591 = vmatpush1.msra.mxu0 %v89
    %592 = vmatprep.subr.mxu0 0.0
    %593 = vmatpush2.msra.mxu0 0.0
    %594 = vmatprep.subr.mxu0 0.0
    %595 = vmatpush2.msra.mxu0 0.0
    %596 = vmatprep.subr.mxu0 0.0
    %597 = vmatpush2.msra.mxu0 0.0
    %598 = vmatprep.subr.mxu0 0.0
    %599 = vmatpush2.msra.mxu0 0.0
    %600 = vmatprep.subr.mxu0 0.0
    %601 = vmatpush2.msra.mxu0 0.0
    %602 = vmatprep.subr.mxu0 0.0
    %603 = vmatpush2.msra.mxu0 0.0
    %604 = vmatprep.subr.mxu0 0.0
    %605 = vmatpush2.msra.mxu0 0.0
    %606 = vmatprep.subr.mxu0 0.0
    %607 = vmatpush2.msra.mxu0 0.0
    %608 = vmatprep.subr.mxu0 0.0
    %609 = vmatpush2.msra.mxu0 0.0
    %610 = vmatprep.subr.mxu0 0.0
    %611 = vmatpush2.msra.mxu0 0.0
    %612 = vmatprep.subr.mxu0 0.0
    %613 = vmatpush2.msra.mxu0 0.0
    %614 = vmatprep.subr.mxu0 0.0
    %615 = vmatpush2.msra.mxu0 0.0
    %616 = vmatprep.subr.mxu0 0.0
    %617 = vmatpush2.msra.mxu0 0.0
    %618 = vmatprep.subr.mxu0 0.0
    %619 = vmatpush2.msra.mxu0 0.0
    %620 = vmatprep.subr.mxu0 0.0
    %621 = vmatpush2.msra.mxu0 0.0
    %622 = vmatprep.subr.mxu0 0.0
    %623 = vmatpush2.msra.mxu0 0.0
    %624 = vmatprep.mubr.f32.mxu0 0.0
    %625 = vmatmul.mubr.f32.gmra.mxu0 %v558
    %v626 = vpop.f32.mrf.mxu0
    %v627 = vadd.f32 %v104, %v626
    %v628 = vpop.f32.mrf.mxu0
    %629 = vdwg.mxu0
    %s630 = scalar_lea.vmem [#allocation2], 56
    %v631 = vld [vmem:[%s630] sm:$0xff]
    %v633 = vsel %vm106, %v631, 0
    %635 = vmatprep.subr.mxu0 0.0
    %636 = vmatpush1.msra.mxu0 0.0
    %637 = vmatprep.subr.mxu0 0.0
    %638 = vmatpush1.msra.mxu0 0.0
    %639 = vmatprep.subr.mxu0 0.0
    %640 = vmatpush1.msra.mxu0 0.0
    %641 = vmatprep.subr.mxu0 0.0
    %642 = vmatpush1.msra.mxu0 0.0
    %643 = vmatprep.subr.mxu0 0.0
    %644 = vmatpush1.msra.mxu0 0.0
    %645 = vmatprep.subr.mxu0 0.0
    %646 = vmatpush1.msra.mxu0 0.0
    %647 = vmatprep.subr.mxu0 0.0
    %648 = vmatpush1.msra.mxu0 0.0
    %649 = vmatprep.subr.mxu0 0.0
    %650 = vmatpush1.msra.mxu0 0.0
    %651 = vmatprep.subr.mxu0 0.0
    %652 = vmatpush1.msra.mxu0 0.0
    %653 = vmatprep.subr.mxu0 0.0
    %654 = vmatpush1.msra.mxu0 0.0
    %655 = vmatprep.subr.mxu0 0.0
    %656 = vmatpush1.msra.mxu0 0.0
    %657 = vmatprep.subr.mxu0 0.0
    %658 = vmatpush1.msra.mxu0 0.0
    %659 = vmatprep.subr.mxu0 0.0
    %660 = vmatpush1.msra.mxu0 %v92
    %661 = vmatprep.subr.mxu0 0.0
    %662 = vmatpush1.msra.mxu0 %v91
    %663 = vmatprep.subr.mxu0 0.0
    %664 = vmatpush1.msra.mxu0 %v90
    %665 = vmatprep.subr.mxu0 0.0
    %666 = vmatpush1.msra.mxu0 %v89
    %667 = vmatprep.subr.mxu0 0.0
    %668 = vmatpush2.msra.mxu0 0.0
    %669 = vmatprep.subr.mxu0 0.0
    %670 = vmatpush2.msra.mxu0 0.0
    %671 = vmatprep.subr.mxu0 0.0
    %672 = vmatpush2.msra.mxu0 0.0
    %673 = vmatprep.subr.mxu0 0.0
    %674 = vmatpush2.msra.mxu0 0.0
    %675 = vmatprep.subr.mxu0 0.0
    %676 = vmatpush2.msra.mxu0 0.0
    %677 = vmatprep.subr.mxu0 0.0
    %678 = vmatpush2.msra.mxu0 0.0
    %679 = vmatprep.subr.mxu0 0.0
    %680 = vmatpush2.msra.mxu0 0.0
    %681 = vmatprep.subr.mxu0 0.0
    %682 = vmatpush2.msra.mxu0 0.0
    %683 = vmatprep.subr.mxu0 0.0
    %684 = vmatpush2.msra.mxu0 0.0
    %685 = vmatprep.subr.mxu0 0.0
    %686 = vmatpush2.msra.mxu0 0.0
    %687 = vmatprep.subr.mxu0 0.0
    %688 = vmatpush2.msra.mxu0 0.0
    %689 = vmatprep.subr.mxu0 0.0
    %690 = vmatpush2.msra.mxu0 0.0
    %691 = vmatprep.subr.mxu0 0.0
    %692 = vmatpush2.msra.mxu0 0.0
    %693 = vmatprep.subr.mxu0 0.0
    %694 = vmatpush2.msra.mxu0 0.0
    %695 = vmatprep.subr.mxu0 0.0
    %696 = vmatpush2.msra.mxu0 0.0
    %697 = vmatprep.subr.mxu0 0.0
    %698 = vmatpush2.msra.mxu0 0.0
    %699 = vmatprep.mubr.f32.mxu0 0.0
    %700 = vmatmul.mubr.f32.gmra.mxu0 %v633
    %v701 = vpop.f32.mrf.mxu0
    %v702 = vadd.f32 %v104, %v701
    %v703 = vpop.f32.mrf.mxu0
    %704 = vdwg.mxu0
    %vm705 = vcmp.gt.s32.totalorder %v88, 0
    %vm706 = vcmp.gt.s32.totalorder %v88, 1
    %vm707 = vcmp.gt.s32.totalorder %v88, 2
    %vm708 = vcmp.gt.s32.totalorder %v88, 3
    %vm709 = vcmp.gt.s32.totalorder %v88, 4
    %vm710 = vcmp.gt.s32.totalorder %v88, 5
    %vm711 = vcmp.gt.s32.totalorder %v88, 6
    %vm712 = vcmp.gt.s32.totalorder %v88, 7
    %v714 = vlaneseq
    %v715 = vshrl.u32 %v714, 7
    %v716 = vsub.s32 0, %v715
    %v717 = vrot.slane %v98, %v716
    %v720 = vsel %vm106, 0.0, 0
    %722 = vmatprep.subr.mxu0 0.0
    %723 = vmatpush1.msra.mxu0 0.0
    %724 = vmatprep.subr.mxu0 0.0
    %725 = vmatpush1.msra.mxu0 0.0
    %726 = vmatprep.subr.mxu0 0.0
    %727 = vmatpush1.msra.mxu0 0.0
    %728 = vmatprep.subr.mxu0 0.0
    %729 = vmatpush1.msra.mxu0 0.0
    %730 = vmatprep.subr.mxu0 0.0
    %731 = vmatpush1.msra.mxu0 0.0
    %732 = vmatprep.subr.mxu0 0.0
    %733 = vmatpush1.msra.mxu0 0.0
    %734 = vmatprep.subr.mxu0 0.0
    %735 = vmatpush1.msra.mxu0 0.0
    %736 = vmatprep.subr.mxu0 0.0
    %737 = vmatpush1.msra.mxu0 0.0
    %738 = vmatprep.subr.mxu0 0.0
    %739 = vmatpush1.msra.mxu0 0.0
    %740 = vmatprep.subr.mxu0 0.0
    %741 = vmatpush1.msra.mxu0 0.0
    %742 = vmatprep.subr.mxu0 0.0
    %743 = vmatpush1.msra.mxu0 0.0
    %744 = vmatprep.subr.mxu0 0.0
    %745 = vmatpush1.msra.mxu0 0.0
    %746 = vmatprep.subr.mxu0 0.0
    %747 = vmatpush1.msra.mxu0 %v97
    %748 = vmatprep.subr.mxu0 0.0
    %749 = vmatpush1.msra.mxu0 %v96
    %750 = vmatprep.subr.mxu0 0.0
    %751 = vmatpush1.msra.mxu0 %v95
    %752 = vmatprep.subr.mxu0 0.0
    %753 = vmatpush1.msra.mxu0 %v94
    %754 = vmatprep.subr.mxu0 0.0
    %755 = vmatpush2.msra.mxu0 0.0
    %756 = vmatprep.subr.mxu0 0.0
    %757 = vmatpush2.msra.mxu0 0.0
    %758 = vmatprep.subr.mxu0 0.0
    %759 = vmatpush2.msra.mxu0 0.0
    %760 = vmatprep.subr.mxu0 0.0
    %761 = vmatpush2.msra.mxu0 0.0
    %762 = vmatprep.subr.mxu0 0.0
    %763 = vmatpush2.msra.mxu0 0.0
    %764 = vmatprep.subr.mxu0 0.0
    %765 = vmatpush2.msra.mxu0 0.0
    %766 = vmatprep.subr.mxu0 0.0
    %767 = vmatpush2.msra.mxu0 0.0
    %768 = vmatprep.subr.mxu0 0.0
    %769 = vmatpush2.msra.mxu0 0.0
    %770 = vmatprep.subr.mxu0 0.0
    %771 = vmatpush2.msra.mxu0 0.0
    %772 = vmatprep.subr.mxu0 0.0
    %773 = vmatpush2.msra.mxu0 0.0
    %774 = vmatprep.subr.mxu0 0.0
    %775 = vmatpush2.msra.mxu0 0.0
    %776 = vmatprep.subr.mxu0 0.0
    %777 = vmatpush2.msra.mxu0 0.0
    %778 = vmatprep.subr.mxu0 0.0
    %779 = vmatpush2.msra.mxu0 0.0
    %780 = vmatprep.subr.mxu0 0.0
    %781 = vmatpush2.msra.mxu0 0.0
    %782 = vmatprep.subr.mxu0 0.0
    %783 = vmatpush2.msra.mxu0 0.0
    %784 = vmatprep.subr.mxu0 0.0
    %785 = vmatpush2.msra.mxu0 0.0
    %786 = vmatprep.mubr.f32.mxu0 0.0
    %787 = vmatmul.mubr.f32.gmra.mxu0 %v720
    %v788 = vpop.f32.mrf.mxu0
    %v789 = vadd.f32 %v717, %v788
    %v790 = vpop.f32.mrf.mxu0
    %791 = vdwg.mxu0
    %v792 = vadd.f32 %v177, %v789
    %v793 = vxor.u32 %v792, 2147483648
    %v794 = vmul.f32 %v793, 1.442695
    %v795 = vpow.pop %v794
    %v796 = vadd.f32 %v795, 1.0
    %v797 = vrcp.pop %v796
    %v798 = vmul.f32 1.0, %v797
    %800 = vrot.lane.b32.xlu0 %v789, 64
    %v801 = vpop.permute.xlu0 %800
    %v803 = vmul.f32 %v798, %v801
    %805 = vrot.lane.b32.xlu0 %v803, 64
    %v806 = vpop.permute.xlu0 %805
    %v808 = vadd.f32 %v177, %v806
    %v809 = vtanh.pop %v808
    %v810 = vsub.f32 1.0, %v798
    %812 = vrot.lane.b32.xlu0 %v809, 96
    %v813 = vpop.permute.xlu0 %812
    %v815 = vmul.f32 %v810, %v813
    %v816 = vmul.f32 %v798, 0.0
    %v817 = vadd.f32 %v815, %v816
    %v818 = vsel %vm705, 1, 0
    %819 = vset.pattern.permute.xlu0 0
    %820 = vperm.xlu0 %819, %v818
    %v821 = vpop.permute.xlu0 %820
    %vm822 = vcmp.eq.s32.totalorder %v821, 1
    %v823 = vsel %vm822, %v817, 0.0
    %825 = vrot.lane.b32.xlu0 %v823, 96
    %v826 = vpop.permute.xlu0 %825
    %v828 = vsel %vm106, %v826, 0.0
    %v829 = vld [vmem:[#allocation8] sm:$0xff]
    %v830 = vld [vmem:[#allocation8 + $0x8] sm:$0xff]
    %v831 = vld [vmem:[#allocation8 + $0x10] sm:$0xff]
    %v832 = vld [vmem:[#allocation8 + $0x18] sm:$0xff]
    %v833 = vld [vmem:[#allocation8 + $0x20] sm:$0xff]
    %v834 = vld [vmem:[#allocation8 + $0x28] sm:$0xff]
    %v835 = vld [vmem:[#allocation8 + $0x30] sm:$0xff]
    %v836 = vld [vmem:[#allocation8 + $0x38] sm:$0xff]
    %v837 = vld [vmem:[%s7] sm:$0x1]
    %v839 = vlaneseq
    %v840 = vshrl.u32 %v839, 7
    %v841 = vsub.s32 0, %v840
    %v842 = vrot.slane %v837, %v841
    %vm844 = vcmask 523264
    %v846 = vsel %vm844, %v828, 0
    %848 = vmatprep.subr.mxu0 0.0
    %849 = vmatpush1.msra.mxu0 0.0
    %850 = vmatprep.subr.mxu0 0.0
    %851 = vmatpush1.msra.mxu0 0.0
    %852 = vmatprep.subr.mxu0 0.0
    %853 = vmatpush1.msra.mxu0 0.0
    %854 = vmatprep.subr.mxu0 0.0
    %855 = vmatpush1.msra.mxu0 0.0
    %856 = vmatprep.subr.mxu0 0.0
    %857 = vmatpush1.msra.mxu0 0.0
    %858 = vmatprep.subr.mxu0 0.0
    %859 = vmatpush1.msra.mxu0 0.0
    %860 = vmatprep.subr.mxu0 0.0
    %861 = vmatpush1.msra.mxu0 0.0
    %862 = vmatprep.subr.mxu0 0.0
    %863 = vmatpush1.msra.mxu0 0.0
    %864 = vmatprep.subr.mxu0 0.0
    %865 = vmatpush1.msra.mxu0 %v836
    %866 = vmatprep.subr.mxu0 0.0
    %867 = vmatpush1.msra.mxu0 %v835
    %868 = vmatprep.subr.mxu0 0.0
    %869 = vmatpush1.msra.mxu0 %v834
    %870 = vmatprep.subr.mxu0 0.0
    %871 = vmatpush1.msra.mxu0 %v833
    %872 = vmatprep.subr.mxu0 0.0
    %873 = vmatpush1.msra.mxu0 %v832
    %874 = vmatprep.subr.mxu0 0.0
    %875 = vmatpush1.msra.mxu0 %v831
    %876 = vmatprep.subr.mxu0 0.0
    %877 = vmatpush1.msra.mxu0 %v830
    %878 = vmatprep.subr.mxu0 0.0
    %879 = vmatpush1.msra.mxu0 %v829
    %880 = vmatprep.subr.mxu0 0.0
    %881 = vmatpush2.msra.mxu0 0.0
    %882 = vmatprep.subr.mxu0 0.0
    %883 = vmatpush2.msra.mxu0 0.0
    %884 = vmatprep.subr.mxu0 0.0
    %885 = vmatpush2.msra.mxu0 0.0
    %886 = vmatprep.subr.mxu0 0.0
    %887 = vmatpush2.msra.mxu0 0.0
    %888 = vmatprep.subr.mxu0 0.0
    %889 = vmatpush2.msra.mxu0 0.0
    %890 = vmatprep.subr.mxu0 0.0
    %891 = vmatpush2.msra.mxu0 0.0
    %892 = vmatprep.subr.mxu0 0.0
    %893 = vmatpush2.msra.mxu0 0.0
    %894 = vmatprep.subr.mxu0 0.0
    %895 = vmatpush2.msra.mxu0 0.0
    %896 = vmatprep.subr.mxu0 0.0
    %897 = vmatpush2.msra.mxu0 0.0
    %898 = vmatprep.subr.mxu0 0.0
    %899 = vmatpush2.msra.mxu0 0.0
    %900 = vmatprep.subr.mxu0 0.0
    %901 = vmatpush2.msra.mxu0 0.0
    %902 = vmatprep.subr.mxu0 0.0
    %903 = vmatpush2.msra.mxu0 0.0
    %904 = vmatprep.subr.mxu0 0.0
    %905 = vmatpush2.msra.mxu0 0.0
    %906 = vmatprep.subr.mxu0 0.0
    %907 = vmatpush2.msra.mxu0 0.0
    %908 = vmatprep.subr.mxu0 0.0
    %909 = vmatpush2.msra.mxu0 0.0
    %910 = vmatprep.subr.mxu0 0.0
    %911 = vmatpush2.msra.mxu0 0.0
    %912 = vmatprep.mubr.f32.mxu0 0.0
    %913 = vmatmul.mubr.f32.gmra.mxu0 %v846
    %v914 = vpop.f32.mrf.mxu0
    %v915 = vadd.f32 %v842, %v914
    %v916 = vpop.f32.mrf.mxu0
    %917 = vdwg.mxu0
    %v918 = vxor.u32 %v915, 2147483648
    %v919 = vmul.f32 %v918, 1.442695
    %v920 = vpow.pop %v919
    %v921 = vadd.f32 %v920, 1.0
    %v922 = vrcp.pop %v921
    %v923 = vmul.f32 1.0, %v922
    %925 = vrot.lane.b32.xlu0 %v915, 32
    %v926 = vpop.permute.xlu0 %925
    %v928 = vmul.f32 %v923, %v926
    %930 = vrot.lane.b32.xlu0 %v928, 64
    %v931 = vpop.permute.xlu0 %930
    %v933 = vadd.f32 %v915, %v931
    %v934 = vtanh.pop %v933
    %v935 = vsub.f32 1.0, %v923
    %937 = vrot.lane.b32.xlu0 %v934, 96
    %v938 = vpop.permute.xlu0 %937
    %v940 = vmul.f32 %v935, %v938
    %v941 = vmul.f32 %v923, 0.0
    %v942 = vadd.f32 %v940, %v941
    %v943 = vsel %vm822, %v942, 0.0
    %v944 = vsel %vm106, %v826, 0
    %946 = vmatprep.subr.mxu0 0.0
    %947 = vmatpush1.msra.mxu0 0.0
    %948 = vmatprep.subr.mxu0 0.0
    %949 = vmatpush1.msra.mxu0 0.0
    %950 = vmatprep.subr.mxu0 0.0
    %951 = vmatpush1.msra.mxu0 0.0
    %952 = vmatprep.subr.mxu0 0.0
    %953 = vmatpush1.msra.mxu0 0.0
    %954 = vmatprep.subr.mxu0 0.0
    %955 = vmatpush1.msra.mxu0 0.0
    %956 = vmatprep.subr.mxu0 0.0
    %957 = vmatpush1.msra.mxu0 0.0
    %958 = vmatprep.subr.mxu0 0.0
    %959 = vmatpush1.msra.mxu0 0.0
    %960 = vmatprep.subr.mxu0 0.0
    %961 = vmatpush1.msra.mxu0 0.0
    %962 = vmatprep.subr.mxu0 0.0
    %963 = vmatpush1.msra.mxu0 0.0
    %964 = vmatprep.subr.mxu0 0.0
    %965 = vmatpush1.msra.mxu0 0.0
    %966 = vmatprep.subr.mxu0 0.0
    %967 = vmatpush1.msra.mxu0 0.0
    %968 = vmatprep.subr.mxu0 0.0
    %969 = vmatpush1.msra.mxu0 0.0
    %970 = vmatprep.subr.mxu0 0.0
    %971 = vmatpush1.msra.mxu0 %v97
    %972 = vmatprep.subr.mxu0 0.0
    %973 = vmatpush1.msra.mxu0 %v96
    %974 = vmatprep.subr.mxu0 0.0
    %975 = vmatpush1.msra.mxu0 %v95
    %976 = vmatprep.subr.mxu0 0.0
    %977 = vmatpush1.msra.mxu0 %v94
    %978 = vmatprep.subr.mxu0 0.0
    %979 = vmatpush2.msra.mxu0 0.0
    %980 = vmatprep.subr.mxu0 0.0
    %981 = vmatpush2.msra.mxu0 0.0
    %982 = vmatprep.subr.mxu0 0.0
    %983 = vmatpush2.msra.mxu0 0.0
    %984 = vmatprep.subr.mxu0 0.0
    %985 = vmatpush2.msra.mxu0 0.0
    %986 = vmatprep.subr.mxu0 0.0
    %987 = vmatpush2.msra.mxu0 0.0
    %988 = vmatprep.subr.mxu0 0.0
    %989 = vmatpush2.msra.mxu0 0.0
    %990 = vmatprep.subr.mxu0 0.0
    %991 = vmatpush2.msra.mxu0 0.0
    %992 = vmatprep.subr.mxu0 0.0
    %993 = vmatpush2.msra.mxu0 0.0
    %994 = vmatprep.subr.mxu0 0.0
    %995 = vmatpush2.msra.mxu0 0.0
    %996 = vmatprep.subr.mxu0 0.0
    %997 = vmatpush2.msra.mxu0 0.0
    %998 = vmatprep.subr.mxu0 0.0
    %999 = vmatpush2.msra.mxu0 0.0
    %1000 = vmatprep.subr.mxu0 0.0
    %1001 = vmatpush2.msra.mxu0 0.0
    %1002 = vmatprep.subr.mxu0 0.0
    %1003 = vmatpush2.msra.mxu0 0.0
    %1004 = vmatprep.subr.mxu0 0.0
    %1005 = vmatpush2.msra.mxu0 0.0
    %1006 = vmatprep.subr.mxu0 0.0
    %1007 = vmatpush2.msra.mxu0 0.0
    %1008 = vmatprep.subr.mxu0 0.0
    %1009 = vmatpush2.msra.mxu0 0.0
    %1010 = vmatprep.mubr.f32.mxu0 0.0
    %1011 = vmatmul.mubr.f32.gmra.mxu0 %v944
    %v1012 = vpop.f32.mrf.mxu0
    %v1013 = vadd.f32 %v717, %v1012
    %v1014 = vpop.f32.mrf.mxu0
    %1015 = vdwg.mxu0
    %v1016 = vadd.f32 %v252, %v1013
    %v1017 = vxor.u32 %v1016, 2147483648
    %v1018 = vmul.f32 %v1017, 1.442695
    %v1019 = vpow.pop %v1018
    %v1020 = vadd.f32 %v1019, 1.0
    %v1021 = vrcp.pop %v1020
    %v1022 = vmul.f32 1.0, %v1021
    %1024 = vrot.lane.b32.xlu0 %v1013, 64
    %v1025 = vpop.permute.xlu0 %1024
    %v1027 = vmul.f32 %v1022, %v1025
    %1029 = vrot.lane.b32.xlu0 %v1027, 64
    %v1030 = vpop.permute.xlu0 %1029
    %v1032 = vadd.f32 %v252, %v1030
    %v1033 = vtanh.pop %v1032
    %v1034 = vsub.f32 1.0, %v1022
    %1036 = vrot.lane.b32.xlu0 %v1033, 96
    %v1037 = vpop.permute.xlu0 %1036
    %v1039 = vmul.f32 %v1034, %v1037
    %v1040 = vmul.f32 %v1022, %v823
    %v1041 = vadd.f32 %v1039, %v1040
    %v1042 = vsel %vm706, 1, 0
    %1043 = vset.pattern.permute.xlu0 0
    %1044 = vperm.xlu0 %1043, %v1042
    %v1045 = vpop.permute.xlu0 %1044
    %vm1046 = vcmp.eq.s32.totalorder %v1045, 1
    %v1047 = vsel %vm1046, %v1041, %v823
    %1049 = vrot.lane.b32.xlu0 %v1047, 96
    %v1050 = vpop.permute.xlu0 %1049
    %v1052 = vsel %vm106, %v1050, %v943
    %v1054 = vsel %vm844, %v1052, 0
    %1056 = vmatprep.subr.mxu0 0.0
    %1057 = vmatpush1.msra.mxu0 0.0
    %1058 = vmatprep.subr.mxu0 0.0
    %1059 = vmatpush1.msra.mxu0 0.0
    %1060 = vmatprep.subr.mxu0 0.0
    %1061 = vmatpush1.msra.mxu0 0.0
    %1062 = vmatprep.subr.mxu0 0.0
    %1063 = vmatpush1.msra.mxu0 0.0
    %1064 = vmatprep.subr.mxu0 0.0
    %1065 = vmatpush1.msra.mxu0 0.0
    %1066 = vmatprep.subr.mxu0 0.0
    %1067 = vmatpush1.msra.mxu0 0.0
    %1068 = vmatprep.subr.mxu0 0.0
    %1069 = vmatpush1.msra.mxu0 0.0
    %1070 = vmatprep.subr.mxu0 0.0
    %1071 = vmatpush1.msra.mxu0 0.0
    %1072 = vmatprep.subr.mxu0 0.0
    %1073 = vmatpush1.msra.mxu0 %v836
    %1074 = vmatprep.subr.mxu0 0.0
    %1075 = vmatpush1.msra.mxu0 %v835
    %1076 = vmatprep.subr.mxu0 0.0
    %1077 = vmatpush1.msra.mxu0 %v834
    %1078 = vmatprep.subr.mxu0 0.0
    %1079 = vmatpush1.msra.mxu0 %v833
    %1080 = vmatprep.subr.mxu0 0.0
    %1081 = vmatpush1.msra.mxu0 %v832
    %1082 = vmatprep.subr.mxu0 0.0
    %1083 = vmatpush1.msra.mxu0 %v831
    %1084 = vmatprep.subr.mxu0 0.0
    %1085 = vmatpush1.msra.mxu0 %v830
    %1086 = vmatprep.subr.mxu0 0.0
    %1087 = vmatpush1.msra.mxu0 %v829
    %1088 = vmatprep.subr.mxu0 0.0
    %1089 = vmatpush2.msra.mxu0 0.0
    %1090 = vmatprep.subr.mxu0 0.0
    %1091 = vmatpush2.msra.mxu0 0.0
    %1092 = vmatprep.subr.mxu0 0.0
    %1093 = vmatpush2.msra.mxu0 0.0
    %1094 = vmatprep.subr.mxu0 0.0
    %1095 = vmatpush2.msra.mxu0 0.0
    %1096 = vmatprep.subr.mxu0 0.0
    %1097 = vmatpush2.msra.mxu0 0.0
    %1098 = vmatprep.subr.mxu0 0.0
    %1099 = vmatpush2.msra.mxu0 0.0
    %1100 = vmatprep.subr.mxu0 0.0
    %1101 = vmatpush2.msra.mxu0 0.0
    %1102 = vmatprep.subr.mxu0 0.0
    %1103 = vmatpush2.msra.mxu0 0.0
    %1104 = vmatprep.subr.mxu0 0.0
    %1105 = vmatpush2.msra.mxu0 0.0
    %1106 = vmatprep.subr.mxu0 0.0
    %1107 = vmatpush2.msra.mxu0 0.0
    %1108 = vmatprep.subr.mxu0 0.0
    %1109 = vmatpush2.msra.mxu0 0.0
    %1110 = vmatprep.subr.mxu0 0.0
    %1111 = vmatpush2.msra.mxu0 0.0
    %1112 = vmatprep.subr.mxu0 0.0
    %1113 = vmatpush2.msra.mxu0 0.0
    %1114 = vmatprep.subr.mxu0 0.0
    %1115 = vmatpush2.msra.mxu0 0.0
    %1116 = vmatprep.subr.mxu0 0.0
    %1117 = vmatpush2.msra.mxu0 0.0
    %1118 = vmatprep.subr.mxu0 0.0
    %1119 = vmatpush2.msra.mxu0 0.0
    %1120 = vmatprep.mubr.f32.mxu0 0.0
    %1121 = vmatmul.mubr.f32.gmra.mxu0 %v1054
    %v1122 = vpop.f32.mrf.mxu0
    %v1123 = vadd.f32 %v842, %v1122
    %v1124 = vpop.f32.mrf.mxu0
    %1125 = vdwg.mxu0
    %v1126 = vxor.u32 %v1123, 2147483648
    %v1127 = vmul.f32 %v1126, 1.442695
    %v1128 = vpow.pop %v1127
    %v1129 = vadd.f32 %v1128, 1.0
    %v1130 = vrcp.pop %v1129
    %v1131 = vmul.f32 1.0, %v1130
    %1133 = vrot.lane.b32.xlu0 %v1123, 32
    %v1134 = vpop.permute.xlu0 %1133
    %v1136 = vmul.f32 %v1131, %v1134
    %1138 = vrot.lane.b32.xlu0 %v1136, 64
    %v1139 = vpop.permute.xlu0 %1138
    %v1141 = vadd.f32 %v1123, %v1139
    %v1142 = vtanh.pop %v1141
    %v1143 = vsub.f32 1.0, %v1131
    %1145 = vrot.lane.b32.xlu0 %v1142, 96
    %v1146 = vpop.permute.xlu0 %1145
    %v1148 = vmul.f32 %v1143, %v1146
    %v1149 = vmul.f32 %v1131, %v943
    %v1150 = vadd.f32 %v1148, %v1149
    %v1151 = vsel %vm1046, %v1150, %v943
    %v1152 = vsel %vm1046, %v1150, 0.0
    %v1153 = vsel %vm106, %v1050, 0
    %1155 = vmatprep.subr.mxu0 0.0
    %1156 = vmatpush1.msra.mxu0 0.0
    %1157 = vmatprep.subr.mxu0 0.0
    %1158 = vmatpush1.msra.mxu0 0.0
    %1159 = vmatprep.subr.mxu0 0.0
    %1160 = vmatpush1.msra.mxu0 0.0
    %1161 = vmatprep.subr.mxu0 0.0
    %1162 = vmatpush1.msra.mxu0 0.0
    %1163 = vmatprep.subr.mxu0 0.0
    %1164 = vmatpush1.msra.mxu0 0.0
    %1165 = vmatprep.subr.mxu0 0.0
    %1166 = vmatpush1.msra.mxu0 0.0
    %1167 = vmatprep.subr.mxu0 0.0
    %1168 = vmatpush1.msra.mxu0 0.0
    %1169 = vmatprep.subr.mxu0 0.0
    %1170 = vmatpush1.msra.mxu0 0.0
    %1171 = vmatprep.subr.mxu0 0.0
    %1172 = vmatpush1.msra.mxu0 0.0
    %1173 = vmatprep.subr.mxu0 0.0
    %1174 = vmatpush1.msra.mxu0 0.0
    %1175 = vmatprep.subr.mxu0 0.0
    %1176 = vmatpush1.msra.mxu0 0.0
    %1177 = vmatprep.subr.mxu0 0.0
    %1178 = vmatpush1.msra.mxu0 0.0
    %1179 = vmatprep.subr.mxu0 0.0
    %1180 = vmatpush1.msra.mxu0 %v97
    %1181 = vmatprep.subr.mxu0 0.0
    %1182 = vmatpush1.msra.mxu0 %v96
    %1183 = vmatprep.subr.mxu0 0.0
    %1184 = vmatpush1.msra.mxu0 %v95
    %1185 = vmatprep.subr.mxu0 0.0
    %1186 = vmatpush1.msra.mxu0 %v94
    %1187 = vmatprep.subr.mxu0 0.0
    %1188 = vmatpush2.msra.mxu0 0.0
    %1189 = vmatprep.subr.mxu0 0.0
    %1190 = vmatpush2.msra.mxu0 0.0
    %1191 = vmatprep.subr.mxu0 0.0
    %1192 = vmatpush2.msra.mxu0 0.0
    %1193 = vmatprep.subr.mxu0 0.0
    %1194 = vmatpush2.msra.mxu0 0.0
    %1195 = vmatprep.subr.mxu0 0.0
    %1196 = vmatpush2.msra.mxu0 0.0
    %1197 = vmatprep.subr.mxu0 0.0
    %1198 = vmatpush2.msra.mxu0 0.0
    %1199 = vmatprep.subr.mxu0 0.0
    %1200 = vmatpush2.msra.mxu0 0.0
    %1201 = vmatprep.subr.mxu0 0.0
    %1202 = vmatpush2.msra.mxu0 0.0
    %1203 = vmatprep.subr.mxu0 0.0
    %1204 = vmatpush2.msra.mxu0 0.0
    %1205 = vmatprep.subr.mxu0 0.0
    %1206 = vmatpush2.msra.mxu0 0.0
    %1207 = vmatprep.subr.mxu0 0.0
    %1208 = vmatpush2.msra.mxu0 0.0
    %1209 = vmatprep.subr.mxu0 0.0
    %1210 = vmatpush2.msra.mxu0 0.0
    %1211 = vmatprep.subr.mxu0 0.0
    %1212 = vmatpush2.msra.mxu0 0.0
    %1213 = vmatprep.subr.mxu0 0.0
    %1214 = vmatpush2.msra.mxu0 0.0
    %1215 = vmatprep.subr.mxu0 0.0
    %1216 = vmatpush2.msra.mxu0 0.0
    %1217 = vmatprep.subr.mxu0 0.0
    %1218 = vmatpush2.msra.mxu0 0.0
    %1219 = vmatprep.mubr.f32.mxu0 0.0
    %1220 = vmatmul.mubr.f32.gmra.mxu0 %v1153
    %v1221 = vpop.f32.mrf.mxu0
    %v1222 = vadd.f32 %v717, %v1221
    %v1223 = vpop.f32.mrf.mxu0
    %1224 = vdwg.mxu0
    %v1225 = vadd.f32 %v327, %v1222
    %v1226 = vxor.u32 %v1225, 2147483648
    %v1227 = vmul.f32 %v1226, 1.442695
    %v1228 = vpow.pop %v1227
    %v1229 = vadd.f32 %v1228, 1.0
    %v1230 = vrcp.pop %v1229
    %v1231 = vmul.f32 1.0, %v1230
    %1233 = vrot.lane.b32.xlu0 %v1222, 64
    %v1234 = vpop.permute.xlu0 %1233
    %v1236 = vmul.f32 %v1231, %v1234
    %1238 = vrot.lane.b32.xlu0 %v1236, 64
    %v1239 = vpop.permute.xlu0 %1238
    %v1241 = vadd.f32 %v327, %v1239
    %v1242 = vtanh.pop %v1241
    %v1243 = vsub.f32 1.0, %v1231
    %1245 = vrot.lane.b32.xlu0 %v1242, 96
    %v1246 = vpop.permute.xlu0 %1245
    %v1248 = vmul.f32 %v1243, %v1246
    %v1249 = vmul.f32 %v1231, %v1047
    %v1250 = vadd.f32 %v1248, %v1249
    %v1251 = vsel %vm707, 1, 0
    %1252 = vset.pattern.permute.xlu0 0
    %1253 = vperm.xlu0 %1252, %v1251
    %v1254 = vpop.permute.xlu0 %1253
    %vm1255 = vcmp.eq.s32.totalorder %v1254, 1
    %v1256 = vsel %vm1255, %v1250, %v1047
    %1258 = vrot.lane.b32.xlu0 %v1256, 96
    %v1259 = vpop.permute.xlu0 %1258
    %v1261 = vsel %vm106, %v1259, %v1151
    %v1263 = vsel %vm844, %v1261, 0
    %1265 = vmatprep.subr.mxu0 0.0
    %1266 = vmatpush1.msra.mxu0 0.0
    %1267 = vmatprep.subr.mxu0 0.0
    %1268 = vmatpush1.msra.mxu0 0.0
    %1269 = vmatprep.subr.mxu0 0.0
    %1270 = vmatpush1.msra.mxu0 0.0
    %1271 = vmatprep.subr.mxu0 0.0
    %1272 = vmatpush1.msra.mxu0 0.0
    %1273 = vmatprep.subr.mxu0 0.0
    %1274 = vmatpush1.msra.mxu0 0.0
    %1275 = vmatprep.subr.mxu0 0.0
    %1276 = vmatpush1.msra.mxu0 0.0
    %1277 = vmatprep.subr.mxu0 0.0
    %1278 = vmatpush1.msra.mxu0 0.0
    %1279 = vmatprep.subr.mxu0 0.0
    %1280 = vmatpush1.msra.mxu0 0.0
    %1281 = vmatprep.subr.mxu0 0.0
    %1282 = vmatpush1.msra.mxu0 %v836
    %1283 = vmatprep.subr.mxu0 0.0
    %1284 = vmatpush1.msra.mxu0 %v835
    %1285 = vmatprep.subr.mxu0 0.0
    %1286 = vmatpush1.msra.mxu0 %v834
    %1287 = vmatprep.subr.mxu0 0.0
    %1288 = vmatpush1.msra.mxu0 %v833
    %1289 = vmatprep.subr.mxu0 0.0
    %1290 = vmatpush1.msra.mxu0 %v832
    %1291 = vmatprep.subr.mxu0 0.0
    %1292 = vmatpush1.msra.mxu0 %v831
    %1293 = vmatprep.subr.mxu0 0.0
    %1294 = vmatpush1.msra.mxu0 %v830
    %1295 = vmatprep.subr.mxu0 0.0
    %1296 = vmatpush1.msra.mxu0 %v829
    %1297 = vmatprep.subr.mxu0 0.0
    %1298 = vmatpush2.msra.mxu0 0.0
    %1299 = vmatprep.subr.mxu0 0.0
    %1300 = vmatpush2.msra.mxu0 0.0
    %1301 = vmatprep.subr.mxu0 0.0
    %1302 = vmatpush2.msra.mxu0 0.0
    %1303 = vmatprep.subr.mxu0 0.0
    %1304 = vmatpush2.msra.mxu0 0.0
    %1305 = vmatprep.subr.mxu0 0.0
    %1306 = vmatpush2.msra.mxu0 0.0
    %1307 = vmatprep.subr.mxu0 0.0
    %1308 = vmatpush2.msra.mxu0 0.0
    %1309 = vmatprep.subr.mxu0 0.0
    %1310 = vmatpush2.msra.mxu0 0.0
    %1311 = vmatprep.subr.mxu0 0.0
    %1312 = vmatpush2.msra.mxu0 0.0
    %1313 = vmatprep.subr.mxu0 0.0
    %1314 = vmatpush2.msra.mxu0 0.0
    %1315 = vmatprep.subr.mxu0 0.0
    %1316 = vmatpush2.msra.mxu0 0.0
    %1317 = vmatprep.subr.mxu0 0.0
    %1318 = vmatpush2.msra.mxu0 0.0
    %1319 = vmatprep.subr.mxu0 0.0
    %1320 = vmatpush2.msra.mxu0 0.0
    %1321 = vmatprep.subr.mxu0 0.0
    %1322 = vmatpush2.msra.mxu0 0.0
    %1323 = vmatprep.subr.mxu0 0.0
    %1324 = vmatpush2.msra.mxu0 0.0
    %1325 = vmatprep.subr.mxu0 0.0
    %1326 = vmatpush2.msra.mxu0 0.0
    %1327 = vmatprep.subr.mxu0 0.0
    %1328 = vmatpush2.msra.mxu0 0.0
    %1329 = vmatprep.mubr.f32.mxu0 0.0
    %1330 = vmatmul.mubr.f32.gmra.mxu0 %v1263
    %v1331 = vpop.f32.mrf.mxu0
    %v1332 = vadd.f32 %v842, %v1331
    %v1333 = vpop.f32.mrf.mxu0
    %1334 = vdwg.mxu0
    %v1335 = vxor.u32 %v1332, 2147483648
    %v1336 = vmul.f32 %v1335, 1.442695
    %v1337 = vpow.pop %v1336
    %v1338 = vadd.f32 %v1337, 1.0
    %v1339 = vrcp.pop %v1338
    %v1340 = vmul.f32 1.0, %v1339
    %1342 = vrot.lane.b32.xlu0 %v1332, 32
    %v1343 = vpop.permute.xlu0 %1342
    %v1345 = vmul.f32 %v1340, %v1343
    %1347 = vrot.lane.b32.xlu0 %v1345, 64
    %v1348 = vpop.permute.xlu0 %1347
    %v1350 = vadd.f32 %v1332, %v1348
    %v1351 = vtanh.pop %v1350
    %v1352 = vsub.f32 1.0, %v1340
    %1354 = vrot.lane.b32.xlu0 %v1351, 96
    %v1355 = vpop.permute.xlu0 %1354
    %v1357 = vmul.f32 %v1352, %v1355
    %v1358 = vmul.f32 %v1340, %v1151
    %v1359 = vadd.f32 %v1357, %v1358
    %v1360 = vsel %vm1255, %v1359, %v1151
    %v1361 = vsel %vm1255, %v1359, 0.0
    %v1362 = vsel %vm106, %v1259, 0
    %1364 = vmatprep.subr.mxu0 0.0
    %1365 = vmatpush1.msra.mxu0 0.0
    %1366 = vmatprep.subr.mxu0 0.0
    %1367 = vmatpush1.msra.mxu0 0.0
    %1368 = vmatprep.subr.mxu0 0.0
    %1369 = vmatpush1.msra.mxu0 0.0
    %1370 = vmatprep.subr.mxu0 0.0
    %1371 = vmatpush1.msra.mxu0 0.0
    %1372 = vmatprep.subr.mxu0 0.0
    %1373 = vmatpush1.msra.mxu0 0.0
    %1374 = vmatprep.subr.mxu0 0.0
    %1375 = vmatpush1.msra.mxu0 0.0
    %1376 = vmatprep.subr.mxu0 0.0
    %1377 = vmatpush1.msra.mxu0 0.0
    %1378 = vmatprep.subr.mxu0 0.0
    %1379 = vmatpush1.msra.mxu0 0.0
    %1380 = vmatprep.subr.mxu0 0.0
    %1381 = vmatpush1.msra.mxu0 0.0
    %1382 = vmatprep.subr.mxu0 0.0
    %1383 = vmatpush1.msra.mxu0 0.0
    %1384 = vmatprep.subr.mxu0 0.0
    %1385 = vmatpush1.msra.mxu0 0.0
    %1386 = vmatprep.subr.mxu0 0.0
    %1387 = vmatpush1.msra.mxu0 0.0
    %1388 = vmatprep.subr.mxu0 0.0
    %1389 = vmatpush1.msra.mxu0 %v97
    %1390 = vmatprep.subr.mxu0 0.0
    %1391 = vmatpush1.msra.mxu0 %v96
    %1392 = vmatprep.subr.mxu0 0.0
    %1393 = vmatpush1.msra.mxu0 %v95
    %1394 = vmatprep.subr.mxu0 0.0
    %1395 = vmatpush1.msra.mxu0 %v94
    %1396 = vmatprep.subr.mxu0 0.0
    %1397 = vmatpush2.msra.mxu0 0.0
    %1398 = vmatprep.subr.mxu0 0.0
    %1399 = vmatpush2.msra.mxu0 0.0
    %1400 = vmatprep.subr.mxu0 0.0
    %1401 = vmatpush2.msra.mxu0 0.0
    %1402 = vmatprep.subr.mxu0 0.0
    %1403 = vmatpush2.msra.mxu0 0.0
    %1404 = vmatprep.subr.mxu0 0.0
    %1405 = vmatpush2.msra.mxu0 0.0
    %1406 = vmatprep.subr.mxu0 0.0
    %1407 = vmatpush2.msra.mxu0 0.0
    %1408 = vmatprep.subr.mxu0 0.0
    %1409 = vmatpush2.msra.mxu0 0.0
    %1410 = vmatprep.subr.mxu0 0.0
    %1411 = vmatpush2.msra.mxu0 0.0
    %1412 = vmatprep.subr.mxu0 0.0
    %1413 = vmatpush2.msra.mxu0 0.0
    %1414 = vmatprep.subr.mxu0 0.0
    %1415 = vmatpush2.msra.mxu0 0.0
    %1416 = vmatprep.subr.mxu0 0.0
    %1417 = vmatpush2.msra.mxu0 0.0
    %1418 = vmatprep.subr.mxu0 0.0
    %1419 = vmatpush2.msra.mxu0 0.0
    %1420 = vmatprep.subr.mxu0 0.0
    %1421 = vmatpush2.msra.mxu0 0.0
    %1422 = vmatprep.subr.mxu0 0.0
    %1423 = vmatpush2.msra.mxu0 0.0
    %1424 = vmatprep.subr.mxu0 0.0
    %1425 = vmatpush2.msra.mxu0 0.0
    %1426 = vmatprep.subr.mxu0 0.0
    %1427 = vmatpush2.msra.mxu0 0.0
    %1428 = vmatprep.mubr.f32.mxu0 0.0
    %1429 = vmatmul.mubr.f32.gmra.mxu0 %v1362
    %v1430 = vpop.f32.mrf.mxu0
    %v1431 = vadd.f32 %v717, %v1430
    %v1432 = vpop.f32.mrf.mxu0
    %1433 = vdwg.mxu0
    %v1434 = vadd.f32 %v402, %v1431
    %v1435 = vxor.u32 %v1434, 2147483648
    %v1436 = vmul.f32 %v1435, 1.442695
    %v1437 = vpow.pop %v1436
    %v1438 = vadd.f32 %v1437, 1.0
    %v1439 = vrcp.pop %v1438
    %v1440 = vmul.f32 1.0, %v1439
    %1442 = vrot.lane.b32.xlu0 %v1431, 64
    %v1443 = vpop.permute.xlu0 %1442
    %v1445 = vmul.f32 %v1440, %v1443
    %1447 = vrot.lane.b32.xlu0 %v1445, 64
    %v1448 = vpop.permute.xlu0 %1447
    %v1450 = vadd.f32 %v402, %v1448
    %v1451 = vtanh.pop %v1450
    %v1452 = vsub.f32 1.0, %v1440
    %1454 = vrot.lane.b32.xlu0 %v1451, 96
    %v1455 = vpop.permute.xlu0 %1454
    %v1457 = vmul.f32 %v1452, %v1455
    %v1458 = vmul.f32 %v1440, %v1256
    %v1459 = vadd.f32 %v1457, %v1458
    %v1460 = vsel %vm708, 1, 0
    %1461 = vset.pattern.permute.xlu0 0
    %1462 = vperm.xlu0 %1461, %v1460
    %v1463 = vpop.permute.xlu0 %1462
    %vm1464 = vcmp.eq.s32.totalorder %v1463, 1
    %v1465 = vsel %vm1464, %v1459, %v1256
    %1467 = vrot.lane.b32.xlu0 %v1465, 96
    %v1468 = vpop.permute.xlu0 %1467
    %v1470 = vsel %vm106, %v1468, %v1360
    %v1472 = vsel %vm844, %v1470, 0
    %1474 = vmatprep.subr.mxu0 0.0
    %1475 = vmatpush1.msra.mxu0 0.0
    %1476 = vmatprep.subr.mxu0 0.0
    %1477 = vmatpush1.msra.mxu0 0.0
    %1478 = vmatprep.subr.mxu0 0.0
    %1479 = vmatpush1.msra.mxu0 0.0
    %1480 = vmatprep.subr.mxu0 0.0
    %1481 = vmatpush1.msra.mxu0 0.0
    %1482 = vmatprep.subr.mxu0 0.0
    %1483 = vmatpush1.msra.mxu0 0.0
    %1484 = vmatprep.subr.mxu0 0.0
    %1485 = vmatpush1.msra.mxu0 0.0
    %1486 = vmatprep.subr.mxu0 0.0
    %1487 = vmatpush1.msra.mxu0 0.0
    %1488 = vmatprep.subr.mxu0 0.0
    %1489 = vmatpush1.msra.mxu0 0.0
    %1490 = vmatprep.subr.mxu0 0.0
    %1491 = vmatpush1.msra.mxu0 %v836
    %1492 = vmatprep.subr.mxu0 0.0
    %1493 = vmatpush1.msra.mxu0 %v835
    %1494 = vmatprep.subr.mxu0 0.0
    %1495 = vmatpush1.msra.mxu0 %v834
    %1496 = vmatprep.subr.mxu0 0.0
    %1497 = vmatpush1.msra.mxu0 %v833
    %1498 = vmatprep.subr.mxu0 0.0
    %1499 = vmatpush1.msra.mxu0 %v832
    %1500 = vmatprep.subr.mxu0 0.0
    %1501 = vmatpush1.msra.mxu0 %v831
    %1502 = vmatprep.subr.mxu0 0.0
    %1503 = vmatpush1.msra.mxu0 %v830
    %1504 = vmatprep.subr.mxu0 0.0
    %1505 = vmatpush1.msra.mxu0 %v829
    %1506 = vmatprep.subr.mxu0 0.0
    %1507 = vmatpush2.msra.mxu0 0.0
    %1508 = vmatprep.subr.mxu0 0.0
    %1509 = vmatpush2.msra.mxu0 0.0
    %1510 = vmatprep.subr.mxu0 0.0
    %1511 = vmatpush2.msra.mxu0 0.0
    %1512 = vmatprep.subr.mxu0 0.0
    %1513 = vmatpush2.msra.mxu0 0.0
    %1514 = vmatprep.subr.mxu0 0.0
    %1515 = vmatpush2.msra.mxu0 0.0
    %1516 = vmatprep.subr.mxu0 0.0
    %1517 = vmatpush2.msra.mxu0 0.0
    %1518 = vmatprep.subr.mxu0 0.0
    %1519 = vmatpush2.msra.mxu0 0.0
    %1520 = vmatprep.subr.mxu0 0.0
    %1521 = vmatpush2.msra.mxu0 0.0
    %1522 = vmatprep.subr.mxu0 0.0
    %1523 = vmatpush2.msra.mxu0 0.0
    %1524 = vmatprep.subr.mxu0 0.0
    %1525 = vmatpush2.msra.mxu0 0.0
    %1526 = vmatprep.subr.mxu0 0.0
    %1527 = vmatpush2.msra.mxu0 0.0
    %1528 = vmatprep.subr.mxu0 0.0
    %1529 = vmatpush2.msra.mxu0 0.0
    %1530 = vmatprep.subr.mxu0 0.0
    %1531 = vmatpush2.msra.mxu0 0.0
    %1532 = vmatprep.subr.mxu0 0.0
    %1533 = vmatpush2.msra.mxu0 0.0
    %1534 = vmatprep.subr.mxu0 0.0
    %1535 = vmatpush2.msra.mxu0 0.0
    %1536 = vmatprep.subr.mxu0 0.0
    %1537 = vmatpush2.msra.mxu0 0.0
    %1538 = vmatprep.mubr.f32.mxu0 0.0
    %1539 = vmatmul.mubr.f32.gmra.mxu0 %v1472
    %v1540 = vpop.f32.mrf.mxu0
    %v1541 = vadd.f32 %v842, %v1540
    %v1542 = vpop.f32.mrf.mxu0
    %1543 = vdwg.mxu0
    %v1544 = vxor.u32 %v1541, 2147483648
    %v1545 = vmul.f32 %v1544, 1.442695
    %v1546 = vpow.pop %v1545
    %v1547 = vadd.f32 %v1546, 1.0
    %v1548 = vrcp.pop %v1547
    %v1549 = vmul.f32 1.0, %v1548
    %1551 = vrot.lane.b32.xlu0 %v1541, 32
    %v1552 = vpop.permute.xlu0 %1551
    %v1554 = vmul.f32 %v1549, %v1552
    %1556 = vrot.lane.b32.xlu0 %v1554, 64
    %v1557 = vpop.permute.xlu0 %1556
    %v1559 = vadd.f32 %v1541, %v1557
    %v1560 = vtanh.pop %v1559
    %v1561 = vsub.f32 1.0, %v1549
    %1563 = vrot.lane.b32.xlu0 %v1560, 96
    %v1564 = vpop.permute.xlu0 %1563
    %v1566 = vmul.f32 %v1561, %v1564
    %v1567 = vmul.f32 %v1549, %v1360
    %v1568 = vadd.f32 %v1566, %v1567
    %v1569 = vsel %vm1464, %v1568, %v1360
    %v1570 = vsel %vm1464, %v1568, 0.0
    %v1571 = vsel %vm106, %v1468, 0
    %1573 = vmatprep.subr.mxu0 0.0
    %1574 = vmatpush1.msra.mxu0 0.0
    %1575 = vmatprep.subr.mxu0 0.0
    %1576 = vmatpush1.msra.mxu0 0.0
    %1577 = vmatprep.subr.mxu0 0.0
    %1578 = vmatpush1.msra.mxu0 0.0
    %1579 = vmatprep.subr.mxu0 0.0
    %1580 = vmatpush1.msra.mxu0 0.0
    %1581 = vmatprep.subr.mxu0 0.0
    %1582 = vmatpush1.msra.mxu0 0.0
    %1583 = vmatprep.subr.mxu0 0.0
    %1584 = vmatpush1.msra.mxu0 0.0
    %1585 = vmatprep.subr.mxu0 0.0
    %1586 = vmatpush1.msra.mxu0 0.0
    %1587 = vmatprep.subr.mxu0 0.0
    %1588 = vmatpush1.msra.mxu0 0.0
    %1589 = vmatprep.subr.mxu0 0.0
    %1590 = vmatpush1.msra.mxu0 0.0
    %1591 = vmatprep.subr.mxu0 0.0
    %1592 = vmatpush1.msra.mxu0 0.0
    %1593 = vmatprep.subr.mxu0 0.0
    %1594 = vmatpush1.msra.mxu0 0.0
    %1595 = vmatprep.subr.mxu0 0.0
    %1596 = vmatpush1.msra.mxu0 0.0
    %1597 = vmatprep.subr.mxu0 0.0
    %1598 = vmatpush1.msra.mxu0 %v97
    %1599 = vmatprep.subr.mxu0 0.0
    %1600 = vmatpush1.msra.mxu0 %v96
    %1601 = vmatprep.subr.mxu0 0.0
    %1602 = vmatpush1.msra.mxu0 %v95
    %1603 = vmatprep.subr.mxu0 0.0
    %1604 = vmatpush1.msra.mxu0 %v94
    %1605 = vmatprep.subr.mxu0 0.0
    %1606 = vmatpush2.msra.mxu0 0.0
    %1607 = vmatprep.subr.mxu0 0.0
    %1608 = vmatpush2.msra.mxu0 0.0
    %1609 = vmatprep.subr.mxu0 0.0
    %1610 = vmatpush2.msra.mxu0 0.0
    %1611 = vmatprep.subr.mxu0 0.0
    %1612 = vmatpush2.msra.mxu0 0.0
    %1613 = vmatprep.subr.mxu0 0.0
    %1614 = vmatpush2.msra.mxu0 0.0
    %1615 = vmatprep.subr.mxu0 0.0
    %1616 = vmatpush2.msra.mxu0 0.0
    %1617 = vmatprep.subr.mxu0 0.0
    %1618 = vmatpush2.msra.mxu0 0.0
    %1619 = vmatprep.subr.mxu0 0.0
    %1620 = vmatpush2.msra.mxu0 0.0
    %1621 = vmatprep.subr.mxu0 0.0
    %1622 = vmatpush2.msra.mxu0 0.0
    %1623 = vmatprep.subr.mxu0 0.0
    %1624 = vmatpush2.msra.mxu0 0.0
    %1625 = vmatprep.subr.mxu0 0.0
    %1626 = vmatpush2.msra.mxu0 0.0
    %1627 = vmatprep.subr.mxu0 0.0
    %1628 = vmatpush2.msra.mxu0 0.0
    %1629 = vmatprep.subr.mxu0 0.0
    %1630 = vmatpush2.msra.mxu0 0.0
    %1631 = vmatprep.subr.mxu0 0.0
    %1632 = vmatpush2.msra.mxu0 0.0
    %1633 = vmatprep.subr.mxu0 0.0
    %1634 = vmatpush2.msra.mxu0 0.0
    %1635 = vmatprep.subr.mxu0 0.0
    %1636 = vmatpush2.msra.mxu0 0.0
    %1637 = vmatprep.mubr.f32.mxu0 0.0
    %1638 = vmatmul.mubr.f32.gmra.mxu0 %v1571
    %v1639 = vpop.f32.mrf.mxu0
    %v1640 = vadd.f32 %v717, %v1639
    %v1641 = vpop.f32.mrf.mxu0
    %1642 = vdwg.mxu0
    %v1643 = vadd.f32 %v477, %v1640
    %v1644 = vxor.u32 %v1643, 2147483648
    %v1645 = vmul.f32 %v1644, 1.442695
    %v1646 = vpow.pop %v1645
    %v1647 = vadd.f32 %v1646, 1.0
    %v1648 = vrcp.pop %v1647
    %v1649 = vmul.f32 1.0, %v1648
    %1651 = vrot.lane.b32.xlu0 %v1640, 64
    %v1652 = vpop.permute.xlu0 %1651
    %v1654 = vmul.f32 %v1649, %v1652
    %1656 = vrot.lane.b32.xlu0 %v1654, 64
    %v1657 = vpop.permute.xlu0 %1656
    %v1659 = vadd.f32 %v477, %v1657
    %v1660 = vtanh.pop %v1659
    %v1661 = vsub.f32 1.0, %v1649
    %1663 = vrot.lane.b32.xlu0 %v1660, 96
    %v1664 = vpop.permute.xlu0 %1663
    %v1666 = vmul.f32 %v1661, %v1664
    %v1667 = vmul.f32 %v1649, %v1465
    %v1668 = vadd.f32 %v1666, %v1667
    %v1669 = vsel %vm709, 1, 0
    %1670 = vset.pattern.permute.xlu0 0
    %1671 = vperm.xlu0 %1670, %v1669
    %v1672 = vpop.permute.xlu0 %1671
    %vm1673 = vcmp.eq.s32.totalorder %v1672, 1
    %v1674 = vsel %vm1673, %v1668, %v1465
    %1676 = vrot.lane.b32.xlu0 %v1674, 96
    %v1677 = vpop.permute.xlu0 %1676
    %v1679 = vsel %vm106, %v1677, %v1569
    %v1681 = vsel %vm844, %v1679, 0
    %1683 = vmatprep.subr.mxu0 0.0
    %1684 = vmatpush1.msra.mxu0 0.0
    %1685 = vmatprep.subr.mxu0 0.0
    %1686 = vmatpush1.msra.mxu0 0.0
    %1687 = vmatprep.subr.mxu0 0.0
    %1688 = vmatpush1.msra.mxu0 0.0
    %1689 = vmatprep.subr.mxu0 0.0
    %1690 = vmatpush1.msra.mxu0 0.0
    %1691 = vmatprep.subr.mxu0 0.0
    %1692 = vmatpush1.msra.mxu0 0.0
    %1693 = vmatprep.subr.mxu0 0.0
    %1694 = vmatpush1.msra.mxu0 0.0
    %1695 = vmatprep.subr.mxu0 0.0
    %1696 = vmatpush1.msra.mxu0 0.0
    %1697 = vmatprep.subr.mxu0 0.0
    %1698 = vmatpush1.msra.mxu0 0.0
    %1699 = vmatprep.subr.mxu0 0.0
    %1700 = vmatpush1.msra.mxu0 %v836
    %1701 = vmatprep.subr.mxu0 0.0
    %1702 = vmatpush1.msra.mxu0 %v835
    %1703 = vmatprep.subr.mxu0 0.0
    %1704 = vmatpush1.msra.mxu0 %v834
    %1705 = vmatprep.subr.mxu0 0.0
    %1706 = vmatpush1.msra.mxu0 %v833
    %1707 = vmatprep.subr.mxu0 0.0
    %1708 = vmatpush1.msra.mxu0 %v832
    %1709 = vmatprep.subr.mxu0 0.0
    %1710 = vmatpush1.msra.mxu0 %v831
    %1711 = vmatprep.subr.mxu0 0.0
    %1712 = vmatpush1.msra.mxu0 %v830
    %1713 = vmatprep.subr.mxu0 0.0
    %1714 = vmatpush1.msra.mxu0 %v829
    %1715 = vmatprep.subr.mxu0 0.0
    %1716 = vmatpush2.msra.mxu0 0.0
    %1717 = vmatprep.subr.mxu0 0.0
    %1718 = vmatpush2.msra.mxu0 0.0
    %1719 = vmatprep.subr.mxu0 0.0
    %1720 = vmatpush2.msra.mxu0 0.0
    %1721 = vmatprep.subr.mxu0 0.0
    %1722 = vmatpush2.msra.mxu0 0.0
    %1723 = vmatprep.subr.mxu0 0.0
    %1724 = vmatpush2.msra.mxu0 0.0
    %1725 = vmatprep.subr.mxu0 0.0
    %1726 = vmatpush2.msra.mxu0 0.0
    %1727 = vmatprep.subr.mxu0 0.0
    %1728 = vmatpush2.msra.mxu0 0.0
    %1729 = vmatprep.subr.mxu0 0.0
    %1730 = vmatpush2.msra.mxu0 0.0
    %1731 = vmatprep.subr.mxu0 0.0
    %1732 = vmatpush2.msra.mxu0 0.0
    %1733 = vmatprep.subr.mxu0 0.0
    %1734 = vmatpush2.msra.mxu0 0.0
    %1735 = vmatprep.subr.mxu0 0.0
    %1736 = vmatpush2.msra.mxu0 0.0
    %1737 = vmatprep.subr.mxu0 0.0
    %1738 = vmatpush2.msra.mxu0 0.0
    %1739 = vmatprep.subr.mxu0 0.0
    %1740 = vmatpush2.msra.mxu0 0.0
    %1741 = vmatprep.subr.mxu0 0.0
    %1742 = vmatpush2.msra.mxu0 0.0
    %1743 = vmatprep.subr.mxu0 0.0
    %1744 = vmatpush2.msra.mxu0 0.0
    %1745 = vmatprep.subr.mxu0 0.0
    %1746 = vmatpush2.msra.mxu0 0.0
    %1747 = vmatprep.mubr.f32.mxu0 0.0
    %1748 = vmatmul.mubr.f32.gmra.mxu0 %v1681
    %v1749 = vpop.f32.mrf.mxu0
    %v1750 = vadd.f32 %v842, %v1749
    %v1751 = vpop.f32.mrf.mxu0
    %1752 = vdwg.mxu0
    %v1753 = vxor.u32 %v1750, 2147483648
    %v1754 = vmul.f32 %v1753, 1.442695
    %v1755 = vpow.pop %v1754
    %v1756 = vadd.f32 %v1755, 1.0
    %v1757 = vrcp.pop %v1756
    %v1758 = vmul.f32 1.0, %v1757
    %1760 = vrot.lane.b32.xlu0 %v1750, 32
    %v1761 = vpop.permute.xlu0 %1760
    %v1763 = vmul.f32 %v1758, %v1761
    %1765 = vrot.lane.b32.xlu0 %v1763, 64
    %v1766 = vpop.permute.xlu0 %1765
    %v1768 = vadd.f32 %v1750, %v1766
    %v1769 = vtanh.pop %v1768
    %v1770 = vsub.f32 1.0, %v1758
    %1772 = vrot.lane.b32.xlu0 %v1769, 96
    %v1773 = vpop.permute.xlu0 %1772
    %v1775 = vmul.f32 %v1770, %v1773
    %v1776 = vmul.f32 %v1758, %v1569
    %v1777 = vadd.f32 %v1775, %v1776
    %v1778 = vsel %vm1673, %v1777, %v1569
    %v1779 = vsel %vm1673, %v1777, 0.0
    %v1780 = vsel %vm106, %v1677, 0
    %1782 = vmatprep.subr.mxu0 0.0
    %1783 = vmatpush1.msra.mxu0 0.0
    %1784 = vmatprep.subr.mxu0 0.0
    %1785 = vmatpush1.msra.mxu0 0.0
    %1786 = vmatprep.subr.mxu0 0.0
    %1787 = vmatpush1.msra.mxu0 0.0
    %1788 = vmatprep.subr.mxu0 0.0
    %1789 = vmatpush1.msra.mxu0 0.0
    %1790 = vmatprep.subr.mxu0 0.0
    %1791 = vmatpush1.msra.mxu0 0.0
    %1792 = vmatprep.subr.mxu0 0.0
    %1793 = vmatpush1.msra.mxu0 0.0
    %1794 = vmatprep.subr.mxu0 0.0
    %1795 = vmatpush1.msra.mxu0 0.0
    %1796 = vmatprep.subr.mxu0 0.0
    %1797 = vmatpush1.msra.mxu0 0.0
    %1798 = vmatprep.subr.mxu0 0.0
    %1799 = vmatpush1.msra.mxu0 0.0
    %1800 = vmatprep.subr.mxu0 0.0
    %1801 = vmatpush1.msra.mxu0 0.0
    %1802 = vmatprep.subr.mxu0 0.0
    %1803 = vmatpush1.msra.mxu0 0.0
    %1804 = vmatprep.subr.mxu0 0.0
    %1805 = vmatpush1.msra.mxu0 0.0
    %1806 = vmatprep.subr.mxu0 0.0
    %1807 = vmatpush1.msra.mxu0 %v97
    %1808 = vmatprep.subr.mxu0 0.0
    %1809 = vmatpush1.msra.mxu0 %v96
    %1810 = vmatprep.subr.mxu0 0.0
    %1811 = vmatpush1.msra.mxu0 %v95
    %1812 = vmatprep.subr.mxu0 0.0
    %1813 = vmatpush1.msra.mxu0 %v94
    %1814 = vmatprep.subr.mxu0 0.0
    %1815 = vmatpush2.msra.mxu0 0.0
    %1816 = vmatprep.subr.mxu0 0.0
    %1817 = vmatpush2.msra.mxu0 0.0
    %1818 = vmatprep.subr.mxu0 0.0
    %1819 = vmatpush2.msra.mxu0 0.0
    %1820 = vmatprep.subr.mxu0 0.0
    %1821 = vmatpush2.msra.mxu0 0.0
    %1822 = vmatprep.subr.mxu0 0.0
    %1823 = vmatpush2.msra.mxu0 0.0
    %1824 = vmatprep.subr.mxu0 0.0
    %1825 = vmatpush2.msra.mxu0 0.0
    %1826 = vmatprep.subr.mxu0 0.0
    %1827 = vmatpush2.msra.mxu0 0.0
    %1828 = vmatprep.subr.mxu0 0.0
    %1829 = vmatpush2.msra.mxu0 0.0
    %1830 = vmatprep.subr.mxu0 0.0
    %1831 = vmatpush2.msra.mxu0 0.0
    %1832 = vmatprep.subr.mxu0 0.0
    %1833 = vmatpush2.msra.mxu0 0.0
    %1834 = vmatprep.subr.mxu0 0.0
    %1835 = vmatpush2.msra.mxu0 0.0
    %1836 = vmatprep.subr.mxu0 0.0
    %1837 = vmatpush2.msra.mxu0 0.0
    %1838 = vmatprep.subr.mxu0 0.0
    %1839 = vmatpush2.msra.mxu0 0.0
    %1840 = vmatprep.subr.mxu0 0.0
    %1841 = vmatpush2.msra.mxu0 0.0
    %1842 = vmatprep.subr.mxu0 0.0
    %1843 = vmatpush2.msra.mxu0 0.0
    %1844 = vmatprep.subr.mxu0 0.0
    %1845 = vmatpush2.msra.mxu0 0.0
    %1846 = vmatprep.mubr.f32.mxu0 0.0
    %1847 = vmatmul.mubr.f32.gmra.mxu0 %v1780
    %v1848 = vpop.f32.mrf.mxu0
    %v1849 = vadd.f32 %v717, %v1848
    %v1850 = vpop.f32.mrf.mxu0
    %1851 = vdwg.mxu0
    %v1852 = vadd.f32 %v552, %v1849
    %v1853 = vxor.u32 %v1852, 2147483648
    %v1854 = vmul.f32 %v1853, 1.442695
    %v1855 = vpow.pop %v1854
    %v1856 = vadd.f32 %v1855, 1.0
    %v1857 = vrcp.pop %v1856
    %v1858 = vmul.f32 1.0, %v1857
    %1860 = vrot.lane.b32.xlu0 %v1849, 64
    %v1861 = vpop.permute.xlu0 %1860
    %v1863 = vmul.f32 %v1858, %v1861
    %1865 = vrot.lane.b32.xlu0 %v1863, 64
    %v1866 = vpop.permute.xlu0 %1865
    %v1868 = vadd.f32 %v552, %v1866
    %v1869 = vtanh.pop %v1868
    %v1870 = vsub.f32 1.0, %v1858
    %1872 = vrot.lane.b32.xlu0 %v1869, 96
    %v1873 = vpop.permute.xlu0 %1872
    %v1875 = vmul.f32 %v1870, %v1873
    %v1876 = vmul.f32 %v1858, %v1674
    %v1877 = vadd.f32 %v1875, %v1876
    %v1878 = vsel %vm710, 1, 0
    %1879 = vset.pattern.permute.xlu0 0
    %1880 = vperm.xlu0 %1879, %v1878
    %v1881 = vpop.permute.xlu0 %1880
    %vm1882 = vcmp.eq.s32.totalorder %v1881, 1
    %v1883 = vsel %vm1882, %v1877, %v1674
    %1885 = vrot.lane.b32.xlu0 %v1883, 96
    %v1886 = vpop.permute.xlu0 %1885
    %v1888 = vsel %vm106, %v1886, %v1778
    %v1890 = vsel %vm844, %v1888, 0
    %1892 = vmatprep.subr.mxu0 0.0
    %1893 = vmatpush1.msra.mxu0 0.0
    %1894 = vmatprep.subr.mxu0 0.0
    %1895 = vmatpush1.msra.mxu0 0.0
    %1896 = vmatprep.subr.mxu0 0.0
    %1897 = vmatpush1.msra.mxu0 0.0
    %1898 = vmatprep.subr.mxu0 0.0
    %1899 = vmatpush1.msra.mxu0 0.0
    %1900 = vmatprep.subr.mxu0 0.0
    %1901 = vmatpush1.msra.mxu0 0.0
    %1902 = vmatprep.subr.mxu0 0.0
    %1903 = vmatpush1.msra.mxu0 0.0
    %1904 = vmatprep.subr.mxu0 0.0
    %1905 = vmatpush1.msra.mxu0 0.0
    %1906 = vmatprep.subr.mxu0 0.0
    %1907 = vmatpush1.msra.mxu0 0.0
    %1908 = vmatprep.subr.mxu0 0.0
    %1909 = vmatpush1.msra.mxu0 %v836
    %1910 = vmatprep.subr.mxu0 0.0
    %1911 = vmatpush1.msra.mxu0 %v835
    %1912 = vmatprep.subr.mxu0 0.0
    %1913 = vmatpush1.msra.mxu0 %v834
    %1914 = vmatprep.subr.mxu0 0.0
    %1915 = vmatpush1.msra.mxu0 %v833
    %1916 = vmatprep.subr.mxu0 0.0
    %1917 = vmatpush1.msra.mxu0 %v832
    %1918 = vmatprep.subr.mxu0 0.0
    %1919 = vmatpush1.msra.mxu0 %v831
    %1920 = vmatprep.subr.mxu0 0.0
    %1921 = vmatpush1.msra.mxu0 %v830
    %1922 = vmatprep.subr.mxu0 0.0
    %1923 = vmatpush1.msra.mxu0 %v829
    %1924 = vmatprep.subr.mxu0 0.0
    %1925 = vmatpush2.msra.mxu0 0.0
    %1926 = vmatprep.subr.mxu0 0.0
    %1927 = vmatpush2.msra.mxu0 0.0
    %1928 = vmatprep.subr.mxu0 0.0
    %1929 = vmatpush2.msra.mxu0 0.0
    %1930 = vmatprep.subr.mxu0 0.0
    %1931 = vmatpush2.msra.mxu0 0.0
    %1932 = vmatprep.subr.mxu0 0.0
    %1933 = vmatpush2.msra.mxu0 0.0
    %1934 = vmatprep.subr.mxu0 0.0
    %1935 = vmatpush2.msra.mxu0 0.0
    %1936 = vmatprep.subr.mxu0 0.0
    %1937 = vmatpush2.msra.mxu0 0.0
    %1938 = vmatprep.subr.mxu0 0.0
    %1939 = vmatpush2.msra.mxu0 0.0
    %1940 = vmatprep.subr.mxu0 0.0
    %1941 = vmatpush2.msra.mxu0 0.0
    %1942 = vmatprep.subr.mxu0 0.0
    %1943 = vmatpush2.msra.mxu0 0.0
    %1944 = vmatprep.subr.mxu0 0.0
    %1945 = vmatpush2.msra.mxu0 0.0
    %1946 = vmatprep.subr.mxu0 0.0
    %1947 = vmatpush2.msra.mxu0 0.0
    %1948 = vmatprep.subr.mxu0 0.0
    %1949 = vmatpush2.msra.mxu0 0.0
    %1950 = vmatprep.subr.mxu0 0.0
    %1951 = vmatpush2.msra.mxu0 0.0
    %1952 = vmatprep.subr.mxu0 0.0
    %1953 = vmatpush2.msra.mxu0 0.0
    %1954 = vmatprep.subr.mxu0 0.0
    %1955 = vmatpush2.msra.mxu0 0.0
    %1956 = vmatprep.mubr.f32.mxu0 0.0
    %1957 = vmatmul.mubr.f32.gmra.mxu0 %v1890
    %v1958 = vpop.f32.mrf.mxu0
    %v1959 = vadd.f32 %v842, %v1958
    %v1960 = vpop.f32.mrf.mxu0
    %1961 = vdwg.mxu0
    %v1962 = vxor.u32 %v1959, 2147483648
    %v1963 = vmul.f32 %v1962, 1.442695
    %v1964 = vpow.pop %v1963
    %v1965 = vadd.f32 %v1964, 1.0
    %v1966 = vrcp.pop %v1965
    %v1967 = vmul.f32 1.0, %v1966
    %1969 = vrot.lane.b32.xlu0 %v1959, 32
    %v1970 = vpop.permute.xlu0 %1969
    %v1972 = vmul.f32 %v1967, %v1970
    %1974 = vrot.lane.b32.xlu0 %v1972, 64
    %v1975 = vpop.permute.xlu0 %1974
    %v1977 = vadd.f32 %v1959, %v1975
    %v1978 = vtanh.pop %v1977
    %v1979 = vsub.f32 1.0, %v1967
    %1981 = vrot.lane.b32.xlu0 %v1978, 96
    %v1982 = vpop.permute.xlu0 %1981
    %v1984 = vmul.f32 %v1979, %v1982
    %v1985 = vmul.f32 %v1967, %v1778
    %v1986 = vadd.f32 %v1984, %v1985
    %v1987 = vsel %vm1882, %v1986, %v1778
    %v1988 = vsel %vm1882, %v1986, 0.0
    %v1989 = vsel %vm106, %v1886, 0
    %1991 = vmatprep.subr.mxu0 0.0
    %1992 = vmatpush1.msra.mxu0 0.0
    %1993 = vmatprep.subr.mxu0 0.0
    %1994 = vmatpush1.msra.mxu0 0.0
    %1995 = vmatprep.subr.mxu0 0.0
    %1996 = vmatpush1.msra.mxu0 0.0
    %1997 = vmatprep.subr.mxu0 0.0
    %1998 = vmatpush1.msra.mxu0 0.0
    %1999 = vmatprep.subr.mxu0 0.0
    %2000 = vmatpush1.msra.mxu0 0.0
    %2001 = vmatprep.subr.mxu0 0.0
    %2002 = vmatpush1.msra.mxu0 0.0
    %2003 = vmatprep.subr.mxu0 0.0
    %2004 = vmatpush1.msra.mxu0 0.0
    %2005 = vmatprep.subr.mxu0 0.0
    %2006 = vmatpush1.msra.mxu0 0.0
    %2007 = vmatprep.subr.mxu0 0.0
    %2008 = vmatpush1.msra.mxu0 0.0
    %2009 = vmatprep.subr.mxu0 0.0
    %2010 = vmatpush1.msra.mxu0 0.0
    %2011 = vmatprep.subr.mxu0 0.0
    %2012 = vmatpush1.msra.mxu0 0.0
    %2013 = vmatprep.subr.mxu0 0.0
    %2014 = vmatpush1.msra.mxu0 0.0
    %2015 = vmatprep.subr.mxu0 0.0
    %2016 = vmatpush1.msra.mxu0 %v97
    %2017 = vmatprep.subr.mxu0 0.0
    %2018 = vmatpush1.msra.mxu0 %v96
    %2019 = vmatprep.subr.mxu0 0.0
    %2020 = vmatpush1.msra.mxu0 %v95
    %2021 = vmatprep.subr.mxu0 0.0
    %2022 = vmatpush1.msra.mxu0 %v94
    %2023 = vmatprep.subr.mxu0 0.0
    %2024 = vmatpush2.msra.mxu0 0.0
    %2025 = vmatprep.subr.mxu0 0.0
    %2026 = vmatpush2.msra.mxu0 0.0
    %2027 = vmatprep.subr.mxu0 0.0
    %2028 = vmatpush2.msra.mxu0 0.0
    %2029 = vmatprep.subr.mxu0 0.0
    %2030 = vmatpush2.msra.mxu0 0.0
    %2031 = vmatprep.subr.mxu0 0.0
    %2032 = vmatpush2.msra.mxu0 0.0
    %2033 = vmatprep.subr.mxu0 0.0
    %2034 = vmatpush2.msra.mxu0 0.0
    %2035 = vmatprep.subr.mxu0 0.0
    %2036 = vmatpush2.msra.mxu0 0.0
    %2037 = vmatprep.subr.mxu0 0.0
    %2038 = vmatpush2.msra.mxu0 0.0
    %2039 = vmatprep.subr.mxu0 0.0
    %2040 = vmatpush2.msra.mxu0 0.0
    %2041 = vmatprep.subr.mxu0 0.0
    %2042 = vmatpush2.msra.mxu0 0.0
    %2043 = vmatprep.subr.mxu0 0.0
    %2044 = vmatpush2.msra.mxu0 0.0
    %2045 = vmatprep.subr.mxu0 0.0
    %2046 = vmatpush2.msra.mxu0 0.0
    %2047 = vmatprep.subr.mxu0 0.0
    %2048 = vmatpush2.msra.mxu0 0.0
    %2049 = vmatprep.subr.mxu0 0.0
    %2050 = vmatpush2.msra.mxu0 0.0
    %2051 = vmatprep.subr.mxu0 0.0
    %2052 = vmatpush2.msra.mxu0 0.0
    %2053 = vmatprep.subr.mxu0 0.0
    %2054 = vmatpush2.msra.mxu0 0.0
    %2055 = vmatprep.mubr.f32.mxu0 0.0
    %2056 = vmatmul.mubr.f32.gmra.mxu0 %v1989
    %v2057 = vpop.f32.mrf.mxu0
    %v2058 = vadd.f32 %v717, %v2057
    %v2059 = vpop.f32.mrf.mxu0
    %2060 = vdwg.mxu0
    %v2061 = vadd.f32 %v627, %v2058
    %v2062 = vxor.u32 %v2061, 2147483648
    %v2063 = vmul.f32 %v2062, 1.442695
    %v2064 = vpow.pop %v2063
    %v2065 = vadd.f32 %v2064, 1.0
    %v2066 = vrcp.pop %v2065
    %v2067 = vmul.f32 1.0, %v2066
    %2069 = vrot.lane.b32.xlu0 %v2058, 64
    %v2070 = vpop.permute.xlu0 %2069
    %v2072 = vmul.f32 %v2067, %v2070
    %2074 = vrot.lane.b32.xlu0 %v2072, 64
    %v2075 = vpop.permute.xlu0 %2074
    %v2077 = vadd.f32 %v627, %v2075
    %v2078 = vtanh.pop %v2077
    %v2079 = vsub.f32 1.0, %v2067
    %2081 = vrot.lane.b32.xlu0 %v2078, 96
    %v2082 = vpop.permute.xlu0 %2081
    %v2084 = vmul.f32 %v2079, %v2082
    %v2085 = vmul.f32 %v2067, %v1883
    %v2086 = vadd.f32 %v2084, %v2085
    %v2087 = vsel %vm711, 1, 0
    %2088 = vset.pattern.permute.xlu0 0
    %2089 = vperm.xlu0 %2088, %v2087
    %v2090 = vpop.permute.xlu0 %2089
    %vm2091 = vcmp.eq.s32.totalorder %v2090, 1
    %v2092 = vsel %vm2091, %v2086, %v1883
    %2094 = vrot.lane.b32.xlu0 %v2092, 96
    %v2095 = vpop.permute.xlu0 %2094
    %v2097 = vsel %vm106, %v2095, %v1987
    %v2099 = vsel %vm844, %v2097, 0
    %2101 = vmatprep.subr.mxu0 0.0
    %2102 = vmatpush1.msra.mxu0 0.0
    %2103 = vmatprep.subr.mxu0 0.0
    %2104 = vmatpush1.msra.mxu0 0.0
    %2105 = vmatprep.subr.mxu0 0.0
    %2106 = vmatpush1.msra.mxu0 0.0
    %2107 = vmatprep.subr.mxu0 0.0
    %2108 = vmatpush1.msra.mxu0 0.0
    %2109 = vmatprep.subr.mxu0 0.0
    %2110 = vmatpush1.msra.mxu0 0.0
    %2111 = vmatprep.subr.mxu0 0.0
    %2112 = vmatpush1.msra.mxu0 0.0
    %2113 = vmatprep.subr.mxu0 0.0
    %2114 = vmatpush1.msra.mxu0 0.0
    %2115 = vmatprep.subr.mxu0 0.0
    %2116 = vmatpush1.msra.mxu0 0.0
    %2117 = vmatprep.subr.mxu0 0.0
    %2118 = vmatpush1.msra.mxu0 %v836
    %2119 = vmatprep.subr.mxu0 0.0
    %2120 = vmatpush1.msra.mxu0 %v835
    %2121 = vmatprep.subr.mxu0 0.0
    %2122 = vmatpush1.msra.mxu0 %v834
    %2123 = vmatprep.subr.mxu0 0.0
    %2124 = vmatpush1.msra.mxu0 %v833
    %2125 = vmatprep.subr.mxu0 0.0
    %2126 = vmatpush1.msra.mxu0 %v832
    %2127 = vmatprep.subr.mxu0 0.0
    %2128 = vmatpush1.msra.mxu0 %v831
    %2129 = vmatprep.subr.mxu0 0.0
    %2130 = vmatpush1.msra.mxu0 %v830
    %2131 = vmatprep.subr.mxu0 0.0
    %2132 = vmatpush1.msra.mxu0 %v829
    %2133 = vmatprep.subr.mxu0 0.0
    %2134 = vmatpush2.msra.mxu0 0.0
    %2135 = vmatprep.subr.mxu0 0.0
    %2136 = vmatpush2.msra.mxu0 0.0
    %2137 = vmatprep.subr.mxu0 0.0
    %2138 = vmatpush2.msra.mxu0 0.0
    %2139 = vmatprep.subr.mxu0 0.0
    %2140 = vmatpush2.msra.mxu0 0.0
    %2141 = vmatprep.subr.mxu0 0.0
    %2142 = vmatpush2.msra.mxu0 0.0
    %2143 = vmatprep.subr.mxu0 0.0
    %2144 = vmatpush2.msra.mxu0 0.0
    %2145 = vmatprep.subr.mxu0 0.0
    %2146 = vmatpush2.msra.mxu0 0.0
    %2147 = vmatprep.subr.mxu0 0.0
    %2148 = vmatpush2.msra.mxu0 0.0
    %2149 = vmatprep.subr.mxu0 0.0
    %2150 = vmatpush2.msra.mxu0 0.0
    %2151 = vmatprep.subr.mxu0 0.0
    %2152 = vmatpush2.msra.mxu0 0.0
    %2153 = vmatprep.subr.mxu0 0.0
    %2154 = vmatpush2.msra.mxu0 0.0
    %2155 = vmatprep.subr.mxu0 0.0
    %2156 = vmatpush2.msra.mxu0 0.0
    %2157 = vmatprep.subr.mxu0 0.0
    %2158 = vmatpush2.msra.mxu0 0.0
    %2159 = vmatprep.subr.mxu0 0.0
    %2160 = vmatpush2.msra.mxu0 0.0
    %2161 = vmatprep.subr.mxu0 0.0
    %2162 = vmatpush2.msra.mxu0 0.0
    %2163 = vmatprep.subr.mxu0 0.0
    %2164 = vmatpush2.msra.mxu0 0.0
    %2165 = vmatprep.mubr.f32.mxu0 0.0
    %2166 = vmatmul.mubr.f32.gmra.mxu0 %v2099
    %v2167 = vpop.f32.mrf.mxu0
    %v2168 = vadd.f32 %v842, %v2167
    %v2169 = vpop.f32.mrf.mxu0
    %2170 = vdwg.mxu0
    %v2171 = vxor.u32 %v2168, 2147483648
    %v2172 = vmul.f32 %v2171, 1.442695
    %v2173 = vpow.pop %v2172
    %v2174 = vadd.f32 %v2173, 1.0
    %v2175 = vrcp.pop %v2174
    %v2176 = vmul.f32 1.0, %v2175
    %2178 = vrot.lane.b32.xlu0 %v2168, 32
    %v2179 = vpop.permute.xlu0 %2178
    %v2181 = vmul.f32 %v2176, %v2179
    %2183 = vrot.lane.b32.xlu0 %v2181, 64
    %v2184 = vpop.permute.xlu0 %2183
    %v2186 = vadd.f32 %v2168, %v2184
    %v2187 = vtanh.pop %v2186
    %v2188 = vsub.f32 1.0, %v2176
    %2190 = vrot.lane.b32.xlu0 %v2187, 96
    %v2191 = vpop.permute.xlu0 %2190
    %v2193 = vmul.f32 %v2188, %v2191
    %v2194 = vmul.f32 %v2176, %v1987
    %v2195 = vadd.f32 %v2193, %v2194
    %v2196 = vsel %vm2091, %v2195, %v1987
    %v2197 = vsel %vm2091, %v2195, 0.0
    %v2198 = vsel %vm106, %v2095, 0
    %2200 = vmatprep.subr.mxu0 0.0
    %2201 = vmatpush1.msra.mxu0 0.0
    %2202 = vmatprep.subr.mxu0 0.0
    %2203 = vmatpush1.msra.mxu0 0.0
    %2204 = vmatprep.subr.mxu0 0.0
    %2205 = vmatpush1.msra.mxu0 0.0
    %2206 = vmatprep.subr.mxu0 0.0
    %2207 = vmatpush1.msra.mxu0 0.0
    %2208 = vmatprep.subr.mxu0 0.0
    %2209 = vmatpush1.msra.mxu0 0.0
    %2210 = vmatprep.subr.mxu0 0.0
    %2211 = vmatpush1.msra.mxu0 0.0
    %2212 = vmatprep.subr.mxu0 0.0
    %2213 = vmatpush1.msra.mxu0 0.0
    %2214 = vmatprep.subr.mxu0 0.0
    %2215 = vmatpush1.msra.mxu0 0.0
    %2216 = vmatprep.subr.mxu0 0.0
    %2217 = vmatpush1.msra.mxu0 0.0
    %2218 = vmatprep.subr.mxu0 0.0
    %2219 = vmatpush1.msra.mxu0 0.0
    %2220 = vmatprep.subr.mxu0 0.0
    %2221 = vmatpush1.msra.mxu0 0.0
    %2222 = vmatprep.subr.mxu0 0.0
    %2223 = vmatpush1.msra.mxu0 0.0
    %2224 = vmatprep.subr.mxu0 0.0
    %2225 = vmatpush1.msra.mxu0 %v97
    %2226 = vmatprep.subr.mxu0 0.0
    %2227 = vmatpush1.msra.mxu0 %v96
    %2228 = vmatprep.subr.mxu0 0.0
    %2229 = vmatpush1.msra.mxu0 %v95
    %2230 = vmatprep.subr.mxu0 0.0
    %2231 = vmatpush1.msra.mxu0 %v94
    %2232 = vmatprep.subr.mxu0 0.0
    %2233 = vmatpush2.msra.mxu0 0.0
    %2234 = vmatprep.subr.mxu0 0.0
    %2235 = vmatpush2.msra.mxu0 0.0
    %2236 = vmatprep.subr.mxu0 0.0
    %2237 = vmatpush2.msra.mxu0 0.0
    %2238 = vmatprep.subr.mxu0 0.0
    %2239 = vmatpush2.msra.mxu0 0.0
    %2240 = vmatprep.subr.mxu0 0.0
    %2241 = vmatpush2.msra.mxu0 0.0
    %2242 = vmatprep.subr.mxu0 0.0
    %2243 = vmatpush2.msra.mxu0 0.0
    %2244 = vmatprep.subr.mxu0 0.0
    %2245 = vmatpush2.msra.mxu0 0.0
    %2246 = vmatprep.subr.mxu0 0.0
    %2247 = vmatpush2.msra.mxu0 0.0
    %2248 = vmatprep.subr.mxu0 0.0
    %2249 = vmatpush2.msra.mxu0 0.0
    %2250 = vmatprep.subr.mxu0 0.0
    %2251 = vmatpush2.msra.mxu0 0.0
    %2252 = vmatprep.subr.mxu0 0.0
    %2253 = vmatpush2.msra.mxu0 0.0
    %2254 = vmatprep.subr.mxu0 0.0
    %2255 = vmatpush2.msra.mxu0 0.0
    %2256 = vmatprep.subr.mxu0 0.0
    %2257 = vmatpush2.msra.mxu0 0.0
    %2258 = vmatprep.subr.mxu0 0.0
    %2259 = vmatpush2.msra.mxu0 0.0
    %2260 = vmatprep.subr.mxu0 0.0
    %2261 = vmatpush2.msra.mxu0 0.0
    %2262 = vmatprep.subr.mxu0 0.0
    %2263 = vmatpush2.msra.mxu0 0.0
    %2264 = vmatprep.mubr.f32.mxu0 0.0
    %2265 = vmatmul.mubr.f32.gmra.mxu0 %v2198
    %v2266 = vpop.f32.mrf.mxu0
    %v2267 = vadd.f32 %v717, %v2266
    %v2268 = vpop.f32.mrf.mxu0
    %2269 = vdwg.mxu0
    %v2270 = vadd.f32 %v702, %v2267
    %v2271 = vxor.u32 %v2270, 2147483648
    %v2272 = vmul.f32 %v2271, 1.442695
    %v2273 = vpow.pop %v2272
    %v2274 = vadd.f32 %v2273, 1.0
    %v2275 = vrcp.pop %v2274
    %v2276 = vmul.f32 1.0, %v2275
    %2278 = vrot.lane.b32.xlu0 %v2267, 64
    %v2279 = vpop.permute.xlu0 %2278
    %v2281 = vmul.f32 %v2276, %v2279
    %2283 = vrot.lane.b32.xlu0 %v2281, 64
    %v2284 = vpop.permute.xlu0 %2283
    %v2286 = vadd.f32 %v702, %v2284
    %v2287 = vtanh.pop %v2286
    %v2288 = vsub.f32 1.0, %v2276
    %2290 = vrot.lane.b32.xlu0 %v2287, 96
    %v2291 = vpop.permute.xlu0 %2290
    %v2293 = vmul.f32 %v2288, %v2291
    %v2294 = vmul.f32 %v2276, %v2092
    %v2295 = vadd.f32 %v2293, %v2294
    %v2296 = vsel %vm712, 1, 0
    %2297 = vset.pattern.permute.xlu0 0
    %2298 = vperm.xlu0 %2297, %v2296
    %v2299 = vpop.permute.xlu0 %2298
    %vm2300 = vcmp.eq.s32.totalorder %v2299, 1
    %v2301 = vsel %vm2300, %v2295, %v2092
    %2303 = vrot.lane.b32.xlu0 %v2301, 96
    %v2304 = vpop.permute.xlu0 %2303
    %v2306 = vsel %vm106, %v2304, %v2196
    %v2308 = vsel %vm844, %v2306, 0
    %2310 = vmatprep.subr.mxu0 0.0
    %2311 = vmatpush1.msra.mxu0 0.0
    %2312 = vmatprep.subr.mxu0 0.0
    %2313 = vmatpush1.msra.mxu0 0.0
    %2314 = vmatprep.subr.mxu0 0.0
    %2315 = vmatpush1.msra.mxu0 0.0
    %2316 = vmatprep.subr.mxu0 0.0
    %2317 = vmatpush1.msra.mxu0 0.0
    %2318 = vmatprep.subr.mxu0 0.0
    %2319 = vmatpush1.msra.mxu0 0.0
    %2320 = vmatprep.subr.mxu0 0.0
    %2321 = vmatpush1.msra.mxu0 0.0
    %2322 = vmatprep.subr.mxu0 0.0
    %2323 = vmatpush1.msra.mxu0 0.0
    %2324 = vmatprep.subr.mxu0 0.0
    %2325 = vmatpush1.msra.mxu0 0.0
    %2326 = vmatprep.subr.mxu0 0.0
    %2327 = vmatpush1.msra.mxu0 %v836
    %2328 = vmatprep.subr.mxu0 0.0
    %2329 = vmatpush1.msra.mxu0 %v835
    %2330 = vmatprep.subr.mxu0 0.0
    %2331 = vmatpush1.msra.mxu0 %v834
    %2332 = vmatprep.subr.mxu0 0.0
    %2333 = vmatpush1.msra.mxu0 %v833
    %2334 = vmatprep.subr.mxu0 0.0
    %2335 = vmatpush1.msra.mxu0 %v832
    %2336 = vmatprep.subr.mxu0 0.0
    %2337 = vmatpush1.msra.mxu0 %v831
    %2338 = vmatprep.subr.mxu0 0.0
    %2339 = vmatpush1.msra.mxu0 %v830
    %2340 = vmatprep.subr.mxu0 0.0
    %2341 = vmatpush1.msra.mxu0 %v829
    %2342 = vmatprep.subr.mxu0 0.0
    %2343 = vmatpush2.msra.mxu0 0.0
    %2344 = vmatprep.subr.mxu0 0.0
    %2345 = vmatpush2.msra.mxu0 0.0
    %2346 = vmatprep.subr.mxu0 0.0
    %2347 = vmatpush2.msra.mxu0 0.0
    %2348 = vmatprep.subr.mxu0 0.0
    %2349 = vmatpush2.msra.mxu0 0.0
    %2350 = vmatprep.subr.mxu0 0.0
    %2351 = vmatpush2.msra.mxu0 0.0
    %2352 = vmatprep.subr.mxu0 0.0
    %2353 = vmatpush2.msra.mxu0 0.0
    %2354 = vmatprep.subr.mxu0 0.0
    %2355 = vmatpush2.msra.mxu0 0.0
    %2356 = vmatprep.subr.mxu0 0.0
    %2357 = vmatpush2.msra.mxu0 0.0
    %2358 = vmatprep.subr.mxu0 0.0
    %2359 = vmatpush2.msra.mxu0 0.0
    %2360 = vmatprep.subr.mxu0 0.0
    %2361 = vmatpush2.msra.mxu0 0.0
    %2362 = vmatprep.subr.mxu0 0.0
    %2363 = vmatpush2.msra.mxu0 0.0
    %2364 = vmatprep.subr.mxu0 0.0
    %2365 = vmatpush2.msra.mxu0 0.0
    %2366 = vmatprep.subr.mxu0 0.0
    %2367 = vmatpush2.msra.mxu0 0.0
    %2368 = vmatprep.subr.mxu0 0.0
    %2369 = vmatpush2.msra.mxu0 0.0
    %2370 = vmatprep.subr.mxu0 0.0
    %2371 = vmatpush2.msra.mxu0 0.0
    %2372 = vmatprep.subr.mxu0 0.0
    %2373 = vmatpush2.msra.mxu0 0.0
    %2374 = vmatprep.mubr.f32.mxu0 0.0
    %2375 = vmatmul.mubr.f32.gmra.mxu0 %v2308
    %v2376 = vpop.f32.mrf.mxu0
    %v2377 = vadd.f32 %v842, %v2376
    %v2378 = vpop.f32.mrf.mxu0
    %2379 = vdwg.mxu0
    %v2380 = vxor.u32 %v2377, 2147483648
    %v2381 = vmul.f32 %v2380, 1.442695
    %v2382 = vpow.pop %v2381
    %v2383 = vadd.f32 %v2382, 1.0
    %v2384 = vrcp.pop %v2383
    %v2385 = vmul.f32 1.0, %v2384
    %2387 = vrot.lane.b32.xlu0 %v2377, 32
    %v2388 = vpop.permute.xlu0 %2387
    %v2390 = vmul.f32 %v2385, %v2388
    %2392 = vrot.lane.b32.xlu0 %v2390, 64
    %v2393 = vpop.permute.xlu0 %2392
    %v2395 = vadd.f32 %v2377, %v2393
    %v2396 = vtanh.pop %v2395
    %v2397 = vsub.f32 1.0, %v2385
    %2399 = vrot.lane.b32.xlu0 %v2396, 96
    %v2400 = vpop.permute.xlu0 %2399
    %v2402 = vmul.f32 %v2397, %v2400
    %v2403 = vmul.f32 %v2385, %v2196
    %v2404 = vadd.f32 %v2402, %v2403
    %v2405 = vsel %vm2300, %v2404, %v2196
    %v2406 = vsel %vm2300, %v2404, 0.0
    %2408 = vrot.lane.b32.xlu0 %v943, 96
    %v2409 = vpop.permute.xlu0 %2408
    %2412 = vrot.lane.b32.xlu0 %v1361, 32
    %v2413 = vpop.permute.xlu0 %2412
    %2416 = vrot.lane.b32.xlu0 %v1570, 64
    %v2417 = vpop.permute.xlu0 %2416
    %2420 = vrot.lane.b32.xlu0 %v1779, 96
    %v2421 = vpop.permute.xlu0 %2420
    %2424 = vrot.lane.b32.xlu0 %v2197, 32
    %v2425 = vpop.permute.xlu0 %2424
    %2428 = vrot.lane.b32.xlu0 %v2406, 64
    %v2429 = vpop.permute.xlu0 %2428
    %v2431 = vsel %vm106, %v2409, %v1152
    %v2432 = vsel %vm844, %v2431, %v2413
    %vm2433 = vcmask 785408
    %v2434 = vsel %vm2433, %v2432, %v2417
    %v2435 = vsel %vm106, %v2421, %v1988
    %v2436 = vsel %vm844, %v2435, %v2425
    %v2437 = vsel %vm2433, %v2436, %v2429
    %2438 = vst [vmem:[#allocation10] sm:$0xff] %v2434
    %2439 = vst [vmem:[#allocation10 + $0x8] sm:$0xff] %v2437
    %2440 = vst.msk [vmem:[#allocation11] sm:$0xff] %vm106, %v2304
    %2442 = vrot.lane.b32.xlu0 %v2405, 96
    %v2443 = vpop.permute.xlu0 %2442
    %s2445 = scalar_lea.vmem [#allocation11], 8
    %2446 = vst.msk [vmem:[%s2445] sm:$0xff] %vm106, %v2443
    // Predicated region
    $region50: #{tpu_custom_call.1} parent=1 // pred_check
      _
    $region51: #{tpu_custom_call.1} parent=1 // pred_check_branch
      %2448 = sbr.rel (0) target = $region53
    $region52: #{tpu_custom_call.1} parent=1 // pred_region
      %s2450 = ssub.s32 256, 256
      %2451 = vsyncadd [#allocation4], %s2450
      %s2453 = sshll.u32 [#allocation10], 4
      %s2454 = int_to_ptr.vmem [resolvable:$true] %s2453
      %2456 = dma.vmem_to_hbm [thread:$0]  %s2454, 256, %s8, [#allocation4]
    $region53: #{tpu_custom_call.1} parent=1 // pred_fallthru
      _
    // Predicated region
    $region54: #{tpu_custom_call.1} parent=1 // pred_check
      _
    $region55: #{tpu_custom_call.1} parent=1 // pred_check_branch
      %2458 = sbr.rel (0) target = $region57
    $region56: #{tpu_custom_call.1} parent=1 // pred_region
      %s2460 = ssub.s32 256, 256
      %2461 = vsyncadd [#allocation12], %s2460
      %s2462 = sshll.u32 [#allocation11], 4
      %s2463 = int_to_ptr.vmem [resolvable:$true] %s2462
      %2468 = dma.vmem_to_hbm [thread:$0]  %s2463, 256, %s9, [#allocation12], 128, 128, 8
    $region57: #{tpu_custom_call.1} parent=1 // pred_fallthru
      _
    // Predicated region
    $region58: #{tpu_custom_call.1} parent=1 // pred_check
      _
    $region59: #{tpu_custom_call.1} parent=1 // pred_check_branch
      %2470 = sbr.rel (0) target = $region61
    $region60: #{tpu_custom_call.1} parent=1 // pred_region
      %2471 = dma.done [#allocation4], 256
    $region61: #{tpu_custom_call.1} parent=1 // pred_fallthru
      _
    // Predicated region
    $region62: #{tpu_custom_call.1} parent=1 // pred_check
      _
    $region63: #{tpu_custom_call.1} parent=1 // pred_check_branch
      %2473 = sbr.rel (0) target = $region65
    $region64: #{tpu_custom_call.1} parent=1 // pred_region
      %2474 = dma.done [#allocation12], 256
    $region65: #{tpu_custom_call.1} parent=1 // pred_fallthru
      _
    %2475 = vsyncpa [#allocation3], 1
    %2476 = vsyncpa [#allocation6], 1
    %2477 = vsyncpa [#allocation9], 1
    %2478 = vsyncpa [#allocation4], 1
    %2479 = vsyncpa [#allocation12], 1

</llo_original>
